<compile_context>
chip_gen: v5e
topology: v5e:2x2
jax: 0.10.0
libtpu: 0.0.40
codegen_flags: <defaults>
</compile_context>

<pallas_src>
import functools

import jax
import jax.numpy as jnp
from jax import lax
from jax.experimental import pallas as pl
from jax.experimental.pallas import tpu as pltpu

EPS = 1e-6


# ----------------------------------------------------------------------------
# Fused kernel: (all residual FFN layers) + final LayerNormalization
# ----------------------------------------------------------------------------
def _decoder_kernel(alpha_ref, bias_ref, x_ref, w1_ref, b1_ref, w2_ref, b2_ref,
                    o_ref, *, n_layers, h_tile):
    # Residual stream stays in f32 for the whole stack (matches reference).
    x = x_ref[...].astype(jnp.float32)                         # (TR, D)
    mm_dtype = w1_ref.dtype                                    # matmul operand dtype
    h_total = w1_ref.shape[-1]
    n_chunks = h_total // h_tile

    def layer_body(l, x):
        xc = x.astype(mm_dtype)                                # cast once per layer
        y = jnp.zeros_like(x)                                  # (TR, D) f32 accumulator
        # Static chunking over H bounds the (TR, H) live intermediate
        # (vreg / VMEM pressure); exact because ReLU is elementwise over H.
        for c in range(n_chunks):
            sl = slice(c * h_tile, (c + 1) * h_tile)
            hck = jnp.dot(xc, w1_ref[l, :, sl],
                          preferred_element_type=jnp.float32)  # (TR, h_tile)
            hck = jnp.maximum(hck + b1_ref[l, :, sl].astype(jnp.float32), 0.0)
            y = y + jnp.dot(hck.astype(mm_dtype), w2_ref[l, sl, :],
                            preferred_element_type=jnp.float32)  # (TR, D)
        y = y + b2_ref[l].astype(jnp.float32)
        return x + y                                           # residual add (f32)

    # fori_loop bounds live ranges (vs. static Python unroll); unroll small stacks.
    x = lax.fori_loop(0, n_layers, layer_body, x, unroll=n_layers <= 4)

    # LayerNormalization: scalar alpha/bias, unbiased std (N-1), eps added to std.
    d = x.shape[-1]
    mean = jnp.mean(x, axis=-1, keepdims=True)
    diff = x - mean
    var = jnp.sum(diff * diff, axis=-1, keepdims=True) / (d - 1)
    # alpha folded into the per-row (TR,1) scale -> (TR,D) epilogue is one FMA.
    # Exact divide kept (only a column; approx reciprocal would graze 1e-4).
    scale = alpha_ref[0] / (jnp.sqrt(var) + EPS)
    o_ref[...] = (diff * scale + bias_ref[0]).astype(o_ref.dtype)


# ----------------------------------------------------------------------------
# Device-aware tiling helpers
# ----------------------------------------------------------------------------
def _tpu_vmem_capacity_bytes():
    try:
        return int(pltpu.get_tpu_info().vmem_capacity_bytes)
    except Exception:
        return 64 * 1024 * 1024   # conservative fallback: v7x per-TensorCore VMEM


def _pick_row_tile(rows, d, h_tile, weight_bytes, vmem_cap):
    """Largest row tile that fits the VMEM budget; prefer a grid of >= 2 steps
    so both v7x TensorCores get work on the 'parallel' axis."""
    budget = int(0.7 * vmem_cap) - weight_bytes
    feasible = []
    for rt in (1024, 512, 256, 128, 64, 32, 16, 8):
        if rt > rows or rows % rt != 0:
            continue
        # double-buffered in/out tiles + f32 residual + hidden-chunk intermediate
        act = 2 * 2 * rt * d * 4 + rt * (d + h_tile) * 4
        if act <= budget:
            feasible.append(rt)
    if not feasible:
        return rows                      # tiny problem: single grid step
    for rt in feasible:                  # feasible is sorted large -> small
        if rows // rt >= 2:
            return rt
    return feasible[0]


# ----------------------------------------------------------------------------
# Wrapper: one pallas_call over row tiles, weights resident (single-buffered)
# ----------------------------------------------------------------------------
def decoder_forward(x, w1s, b1s, w2s, b2s, alpha, bias, *,
                    row_tile=None, h_tile=512):
    b, s, d = x.shape
    rows = b * s
    x2d = x.reshape(rows, d)

    n_layers, _, h = w1s.shape
    h_tile = h_tile if (h_tile < h and h % h_tile == 0) else h

    weight_bytes = (w1s.size * w1s.dtype.itemsize + w2s.size * w2s.dtype.itemsize
                    + b1s.size * b1s.dtype.itemsize + b2s.size * b2s.dtype.itemsize)
    vmem_cap = _tpu_vmem_capacity_bytes()

    if row_tile is None:
        row_tile = _pick_row_tile(rows, d, h_tile, weight_bytes, vmem_cap)
    row_tile = min(row_tile, rows)
    assert rows % row_tile == 0, "rows must be divisible by row_tile"
    grid = (rows // row_tile,)

    # Advisory cost estimate for the XLA scheduler.
    flops = 4 * rows * d * h * n_layers + 8 * rows * d
    bytes_accessed = 2 * rows * d * x2d.dtype.itemsize + weight_bytes

    # Device-aware VMEM budget: single-buffered resident weights + double-buffered
    # in/out row tiles + in-kernel live values + headroom, clamped to the chip.
    act_bytes = 2 * 2 * row_tile * d * x2d.dtype.itemsize
    live_bytes = row_tile * (d + h_tile) * 4
    vmem_limit = weight_bytes + act_bytes + live_bytes + (8 << 20)
    vmem_limit = int(min(max(vmem_limit, 32 << 20), int(0.9 * vmem_cap)))

    kernel = functools.partial(_decoder_kernel, n_layers=n_layers, h_tile=h_tile)

    # Constant-index weight stacks are VMEM-resident; Buffered(1) disables the
    # default double-buffering for them (they are never re-fetched).
    resident = dict(pipeline_mode=pl.Buffered(1))

    # TODO(synk): for weight stacks approaching ~half of VMEM, switch to a
    # layer-streaming design: inner "arbitrary" grid axis over layers, activation
    # in a VMEM scratch accumulator, W1/W2 blocks indexed by the layer axis.
    out2d = pl.pallas_call(
        kernel,
        out_shape=jax.ShapeDtypeStruct((rows, d), x2d.dtype),
        grid=grid,
        in_specs=[
            pl.BlockSpec(memory_space=pltpu.MemorySpace.SMEM),                # alpha (1,)
            pl.BlockSpec(memory_space=pltpu.MemorySpace.SMEM),                # bias  (1,)
            pl.BlockSpec((row_tile, d), lambda i: (i, 0)),                    # x row tile
            pl.BlockSpec((n_layers, d, h), lambda i: (0, 0, 0), **resident),  # W1 stack
            pl.BlockSpec((n_layers, 1, h), lambda i: (0, 0, 0), **resident),  # b1 stack
            pl.BlockSpec((n_layers, h, d), lambda i: (0, 0, 0), **resident),  # W2 stack
            pl.BlockSpec((n_layers, 1, d), lambda i: (0, 0, 0), **resident),  # b2 stack
        ],
        out_specs=pl.BlockSpec((row_tile, d), lambda i: (i, 0)),
        compiler_params=pltpu.CompilerParams(
            dimension_semantics=("parallel",),
            vmem_limit_bytes=vmem_limit),
        cost_estimate=pl.CostEstimate(
            flops=int(flops),
            transcendentals=int(rows),
            bytes_accessed=int(bytes_accessed)),
    )(alpha, bias, x2d, w1s, b1s, w2s, b2s)

    return out2d.reshape(b, s, d)


# ----------------------------------------------------------------------------
# Decoder wrapper: for layer in layers: x = layer(x); return norm(x)
# ----------------------------------------------------------------------------
class Decoder:
    def __init__(self, layer_params, alpha, bias, *,
                 matmul_dtype=jnp.bfloat16, row_tile=None, h_tile=512):
        # Stack per-layer params so the whole stack rides in VMEM as one ref.
        # Matmul operands default to bf16 (2-4x MXU throughput, half the weight
        # VMEM/HBM traffic); biases / residual / LayerNorm stay strictly f32.
        # TODO(synk): optional fp8 weights on v7x for another 2x VMEM saving.
        self.w1s = jnp.stack([p[0] for p in layer_params]).astype(matmul_dtype)
        self.b1s = jnp.stack([p[1] for p in layer_params]).astype(jnp.float32)
        self.w2s = jnp.stack([p[2] for p in layer_params]).astype(matmul_dtype)
        self.b2s = jnp.stack([p[3] for p in layer_params]).astype(jnp.float32)
        self.alpha = jnp.asarray(alpha, jnp.float32)
        self.bias = jnp.asarray(bias, jnp.float32)
        self.row_tile = row_tile
        self.h_tile = h_tile

    def __call__(self, x):
        return decoder_forward(x, self.w1s, self.b1s, self.w2s, self.b2s,
                               self.alpha, self.bias,
                               row_tile=self.row_tile, h_tile=self.h_tile)


# ----------------------------------------------------------------------------
# Pure-JAX reference (for sanity check)
# ----------------------------------------------------------------------------
def decoder_ref(x, layer_params, alpha, bias):
    b, s, d = x.shape
    y = x.reshape(b * s, d).astype(jnp.float32)
    for (w1, b1, w2, b2) in layer_params:
        h = jnp.maximum(y @ w1 + b1, 0.0)
        y = y + (h @ w2 + b2)
    mean = jnp.mean(y, axis=-1, keepdims=True)
    diff = y - mean
    std = jnp.sqrt(jnp.sum(diff * diff, axis=-1, keepdims=True) / (d - 1))
    y = alpha[0] * diff / (std + EPS) + bias[0]
    return y.reshape(b, s, d)


if __name__ == "__main__":
    key = jax.random.PRNGKey(0)
    # Lane-dense dims (D, H multiples of 128) keep every store a full vst.
    B, S, D, H = 2, 256, 128, 256
    n_layers = 2

    keys = jax.random.split(key, 1 + 4 * n_layers)
    x = jax.random.normal(keys[0], (B, S, D), dtype=jnp.float32)

    layer_params = []
    for l in range(n_layers):
        k1, k2, k3, k4 = keys[1 + 4 * l: 5 + 4 * l]
        w1 = jax.random.normal(k1, (D, H), dtype=jnp.float32) * 0.05
        b1 = jax.random.normal(k2, (1, H), dtype=jnp.float32) * 0.01
        w2 = jax.random.normal(k3, (H, D), dtype=jnp.float32) * 0.05
        b2 = jax.random.normal(k4, (1, D), dtype=jnp.float32) * 0.01
        layer_params.append((w1, b1, w2, b2))

    # LayerNormalization params: alpha = ones(1), bias = zeros(1) (as in __init__)
    alpha = jnp.ones((1,), dtype=jnp.float32)
    bias = jnp.zeros((1,), dtype=jnp.float32)

    ref = decoder_ref(x, layer_params, alpha, bias)

    # Exact path (f32 matmul operands): must match the reference to 1e-4.
    dec_f32 = Decoder(layer_params, alpha, bias, matmul_dtype=jnp.float32)
    out_f32 = jax.block_until_ready(dec_f32(x))
    assert out_f32.shape == (B, S, D)
    assert jnp.allclose(out_f32, ref, atol=1e-4, rtol=1e-4), "f32 mismatch vs reference"

    # Default fast path (bf16 matmul operands, f32 accumulation/residual/norm):
    # dtype-aware (loosened) tolerance per the review.
    dec_bf16 = Decoder(layer_params, alpha, bias)
    out_bf16 = jax.block_until_ready(dec_bf16(x))
    assert out_bf16.shape == (B, S, D)
    assert jnp.allclose(out_bf16, ref, atol=3e-2, rtol=3e-2), "bf16 mismatch vs reference"

    print("KERNEL_OK")
</pallas_src>

<mosaic_0001>
module attributes {stable_mosaic.version = 11 : i64} {
  func.func @_decoder_kernel(%arg0: i32, %arg1: memref<1xf32, #tpu.memory_space<smem>>, %arg2: memref<1xf32, #tpu.memory_space<smem>>, %arg3: memref<256x128xf32, #tpu.memory_space<vmem>>, %arg4: memref<2x128x256xf32, #tpu.memory_space<vmem>>, %arg5: memref<2x1x256xf32, #tpu.memory_space<vmem>>, %arg6: memref<2x256x128xf32, #tpu.memory_space<vmem>>, %arg7: memref<2x1x128xf32, #tpu.memory_space<vmem>>, %arg8: memref<256x128xf32, #tpu.memory_space<vmem>>) attributes {dimension_semantics = [#tpu.dimension_semantics<parallel>], iteration_bounds = array<i64: 2>, scalar_prefetch = 0 : i64, scratch_operands = 0 : i64, tpu.core_type = #tpu.core_type<tc>, window_params = [{transform_indices = @transform_0, window_bounds = array<i64: 1>}, {transform_indices = @transform_1, window_bounds = array<i64: 1>}, {transform_indices = @transform_2, window_bounds = array<i64: 256, 128>}, {pipeline_mode = #tpu.pipeline_mode<synchronous>, transform_indices = @transform_3, window_bounds = array<i64: 2, 128, 256>}, {pipeline_mode = #tpu.pipeline_mode<synchronous>, transform_indices = @transform_4, window_bounds = array<i64: 2, 1, 256>}, {pipeline_mode = #tpu.pipeline_mode<synchronous>, transform_indices = @transform_5, window_bounds = array<i64: 2, 256, 128>}, {pipeline_mode = #tpu.pipeline_mode<synchronous>, transform_indices = @transform_6, window_bounds = array<i64: 2, 1, 128>}, {transform_indices = @transform_7, window_bounds = array<i64: 256, 128>}]} {
    %c0 = arith.constant 0 : index
    %c0_0 = arith.constant 0 : index
    %0 = vector.load %arg3[%c0, %c0_0] : memref<256x128xf32, #tpu.memory_space<vmem>>, vector<256x128xf32>
    %c0_i32 = arith.constant 0 : i32
    %cst = arith.constant 0.000000e+00 : f32
    %1 = vector.broadcast %cst : f32 to vector<256x128xf32>
    %2 = arith.index_cast %c0_i32 : i32 to index
    %c0_1 = arith.constant 0 : index
    %c0_2 = arith.constant 0 : index
    %3 = vector.load %arg4[%2, %c0_1, %c0_2] : memref<2x128x256xf32, #tpu.memory_space<vmem>>, vector<1x128x256xf32>
    %4 = vector.shape_cast %3 : vector<1x128x256xf32> to vector<128x256xf32>
    %cst_3 = arith.constant dense<0.000000e+00> : vector<256x256xf32>
    %5 = tpu.matmul %0, %4, %cst_3 {dimension_numbers = #tpu.dot_dimension_numbers<[1], [0], [0], [1], [0, 0, 1, 1], [], []>} : vector<256x128xf32>, vector<128x256xf32>, vector<256x256xf32> -> vector<256x256xf32>
    %6 = arith.index_cast %c0_i32 : i32 to index
    %c0_4 = arith.constant 0 : index
    %c0_5 = arith.constant 0 : index
    %7 = vector.load %arg5[%6, %c0_4, %c0_5] : memref<2x1x256xf32, #tpu.memory_space<vmem>>, vector<1x1x256xf32>
    %8 = vector.shape_cast %7 : vector<1x1x256xf32> to vector<1x256xf32>
    %9 = vector.broadcast %8 : vector<1x256xf32> to vector<256x256xf32>
    %10 = arith.addf %5, %9 : vector<256x256xf32>
    %cst_6 = arith.constant 0.000000e+00 : f32
    %11 = vector.broadcast %cst_6 : f32 to vector<256x256xf32>
    %12 = arith.maximumf %10, %11 : vector<256x256xf32>
    %13 = arith.index_cast %c0_i32 : i32 to index
    %c0_7 = arith.constant 0 : index
    %c0_8 = arith.constant 0 : index
    %14 = vector.load %arg6[%13, %c0_7, %c0_8] : memref<2x256x128xf32, #tpu.memory_space<vmem>>, vector<1x256x128xf32>
    %15 = vector.shape_cast %14 : vector<1x256x128xf32> to vector<256x128xf32>
    %cst_9 = arith.constant dense<0.000000e+00> : vector<256x128xf32>
    %16 = tpu.matmul %12, %15, %cst_9 {dimension_numbers = #tpu.dot_dimension_numbers<[1], [0], [0], [1], [0, 0, 1, 1], [], []>} : vector<256x256xf32>, vector<256x128xf32>, vector<256x128xf32> -> vector<256x128xf32>
    %17 = arith.addf %1, %16 : vector<256x128xf32>
    %18 = arith.index_cast %c0_i32 : i32 to index
    %c0_10 = arith.constant 0 : index
    %c0_11 = arith.constant 0 : index
    %19 = vector.load %arg7[%18, %c0_10, %c0_11] : memref<2x1x128xf32, #tpu.memory_space<vmem>>, vector<1x1x128xf32>
    %20 = vector.shape_cast %19 : vector<1x1x128xf32> to vector<1x128xf32>
    %21 = vector.broadcast %20 : vector<1x128xf32> to vector<256x128xf32>
    %22 = arith.addf %17, %21 : vector<256x128xf32>
    %23 = arith.addf %0, %22 : vector<256x128xf32>
    %c1_i32 = arith.constant 1 : i32
    %cst_12 = arith.constant 0.000000e+00 : f32
    %24 = vector.broadcast %cst_12 : f32 to vector<256x128xf32>
    %25 = arith.index_cast %c1_i32 : i32 to index
    %c0_13 = arith.constant 0 : index
    %c0_14 = arith.constant 0 : index
    %26 = vector.load %arg4[%25, %c0_13, %c0_14] : memref<2x128x256xf32, #tpu.memory_space<vmem>>, vector<1x128x256xf32>
    %27 = vector.shape_cast %26 : vector<1x128x256xf32> to vector<128x256xf32>
    %cst_15 = arith.constant dense<0.000000e+00> : vector<256x256xf32>
    %28 = tpu.matmul %23, %27, %cst_15 {dimension_numbers = #tpu.dot_dimension_numbers<[1], [0], [0], [1], [0, 0, 1, 1], [], []>} : vector<256x128xf32>, vector<128x256xf32>, vector<256x256xf32> -> vector<256x256xf32>
    %29 = arith.index_cast %c1_i32 : i32 to index
    %c0_16 = arith.constant 0 : index
    %c0_17 = arith.constant 0 : index
    %30 = vector.load %arg5[%29, %c0_16, %c0_17] : memref<2x1x256xf32, #tpu.memory_space<vmem>>, vector<1x1x256xf32>
    %31 = vector.shape_cast %30 : vector<1x1x256xf32> to vector<1x256xf32>
    %32 = vector.broadcast %31 : vector<1x256xf32> to vector<256x256xf32>
    %33 = arith.addf %28, %32 : vector<256x256xf32>
    %cst_18 = arith.constant 0.000000e+00 : f32
    %34 = vector.broadcast %cst_18 : f32 to vector<256x256xf32>
    %35 = arith.maximumf %33, %34 : vector<256x256xf32>
    %36 = arith.index_cast %c1_i32 : i32 to index
    %c0_19 = arith.constant 0 : index
    %c0_20 = arith.constant 0 : index
    %37 = vector.load %arg6[%36, %c0_19, %c0_20] : memref<2x256x128xf32, #tpu.memory_space<vmem>>, vector<1x256x128xf32>
    %38 = vector.shape_cast %37 : vector<1x256x128xf32> to vector<256x128xf32>
    %cst_21 = arith.constant dense<0.000000e+00> : vector<256x128xf32>
    %39 = tpu.matmul %35, %38, %cst_21 {dimension_numbers = #tpu.dot_dimension_numbers<[1], [0], [0], [1], [0, 0, 1, 1], [], []>} : vector<256x256xf32>, vector<256x128xf32>, vector<256x128xf32> -> vector<256x128xf32>
    %40 = arith.addf %24, %39 : vector<256x128xf32>
    %41 = arith.index_cast %c1_i32 : i32 to index
    %c0_22 = arith.constant 0 : index
    %c0_23 = arith.constant 0 : index
    %42 = vector.load %arg7[%41, %c0_22, %c0_23] : memref<2x1x128xf32, #tpu.memory_space<vmem>>, vector<1x1x128xf32>
    %43 = vector.shape_cast %42 : vector<1x1x128xf32> to vector<1x128xf32>
    %44 = vector.broadcast %43 : vector<1x128xf32> to vector<256x128xf32>
    %45 = arith.addf %40, %44 : vector<256x128xf32>
    %46 = arith.addf %23, %45 : vector<256x128xf32>
    %c2_i32 = arith.constant 2 : i32
    %cst_24 = arith.constant dense<0.000000e+00> : vector<256xf32>
    %47 = vector.multi_reduction <add>, %46, %cst_24 [1] : vector<256x128xf32> to vector<256xf32>
    %48 = vector.shape_cast %47 : vector<256xf32> to vector<256x1xf32>
    %cst_25 = arith.constant 1.280000e+02 : f32
    %49 = vector.broadcast %cst_25 : f32 to vector<256x1xf32>
    %50 = arith.divf %48, %49 : vector<256x1xf32>
    %51 = vector.broadcast %50 : vector<256x1xf32> to vector<256x128xf32>
    %52 = arith.subf %46, %51 : vector<256x128xf32>
    %53 = arith.mulf %52, %52 : vector<256x128xf32>
    %cst_26 = arith.constant dense<0.000000e+00> : vector<256xf32>
    %54 = vector.multi_reduction <add>, %53, %cst_26 [1] : vector<256x128xf32> to vector<256xf32>
    %55 = vector.shape_cast %54 : vector<256xf32> to vector<256x1xf32>
    %cst_27 = arith.constant 1.270000e+02 : f32
    %56 = vector.broadcast %cst_27 : f32 to vector<256x1xf32>
    %57 = arith.divf %55, %56 : vector<256x1xf32>
    %c0_28 = arith.constant 0 : index
    %58 = memref.load %arg1[%c0_28] : memref<1xf32, #tpu.memory_space<smem>>
    %59 = math.sqrt %57 : vector<256x1xf32>
    %cst_29 = arith.constant 9.99999997E-7 : f32
    %60 = vector.broadcast %cst_29 : f32 to vector<256x1xf32>
    %61 = arith.addf %59, %60 : vector<256x1xf32>
    %62 = vector.broadcast %58 : f32 to vector<256x1xf32>
    %63 = arith.divf %62, %61 : vector<256x1xf32>
    %64 = vector.broadcast %63 : vector<256x1xf32> to vector<256x128xf32>
    %65 = arith.mulf %52, %64 : vector<256x128xf32>
    %c0_30 = arith.constant 0 : index
    %66 = memref.load %arg2[%c0_30] : memref<1xf32, #tpu.memory_space<smem>>
    %67 = vector.broadcast %66 : f32 to vector<256x128xf32>
    %68 = arith.addf %65, %67 : vector<256x128xf32>
    %c0_31 = arith.constant 0 : index
    %c0_32 = arith.constant 0 : index
    %69 = vector.load %arg8[%c0_31, %c0_32] : memref<256x128xf32, #tpu.memory_space<vmem>>, vector<256x128xf32>
    tpu.vector_store %arg8[%c0_31, %c0_32], %68 {strides = array<i32>} : memref<256x128xf32, #tpu.memory_space<vmem>>, vector<256x128xf32>,
    return
  }
  func.func @transform_0(%arg0: i32) -> i32 {
    %c0_i32 = arith.constant 0 : i32
    %c0_i32_0 = arith.constant 0 : i32
    return %c0_i32 : i32
  }
  func.func @transform_1(%arg0: i32) -> i32 {
    %c0_i32 = arith.constant 0 : i32
    %c0_i32_0 = arith.constant 0 : i32
    return %c0_i32 : i32
  }
  func.func @transform_2(%arg0: i32) -> (i32, i32) {
    %c0_i32 = arith.constant 0 : i32
    %c0_i32_0 = arith.constant 0 : i32
    return %arg0, %c0_i32 : i32, i32
  }
  func.func @transform_3(%arg0: i32) -> (i32, i32, i32) {
    %c0_i32 = arith.constant 0 : i32
    %c0_i32_0 = arith.constant 0 : i32
    %c0_i32_1 = arith.constant 0 : i32
    %c0_i32_2 = arith.constant 0 : i32
    return %c0_i32, %c0_i32_0, %c0_i32_1 : i32, i32, i32
  }
  func.func @transform_4(%arg0: i32) -> (i32, i32, i32) {
    %c0_i32 = arith.constant 0 : i32
    %c0_i32_0 = arith.constant 0 : i32
    %c0_i32_1 = arith.constant 0 : i32
    %c0_i32_2 = arith.constant 0 : i32
    return %c0_i32, %c0_i32_0, %c0_i32_1 : i32, i32, i32
  }
  func.func @transform_5(%arg0: i32) -> (i32, i32, i32) {
    %c0_i32 = arith.constant 0 : i32
    %c0_i32_0 = arith.constant 0 : i32
    %c0_i32_1 = arith.constant 0 : i32
    %c0_i32_2 = arith.constant 0 : i32
    return %c0_i32, %c0_i32_0, %c0_i32_1 : i32, i32, i32
  }
  func.func @transform_6(%arg0: i32) -> (i32, i32, i32) {
    %c0_i32 = arith.constant 0 : i32
    %c0_i32_0 = arith.constant 0 : i32
    %c0_i32_1 = arith.constant 0 : i32
    %c0_i32_2 = arith.constant 0 : i32
    return %c0_i32, %c0_i32_0, %c0_i32_1 : i32, i32, i32
  }
  func.func @transform_7(%arg0: i32) -> (i32, i32) {
    %c0_i32 = arith.constant 0 : i32
    %c0_i32_0 = arith.constant 0 : i32
    return %arg0, %c0_i32 : i32, i32
  }
}

</mosaic_0001>

<llo_original>
// kernel: tpu_custom_call.1
$region0: #{tpu_custom_call.1}
  #allocation0 [shape = 'u32[]', space=smem, size = 0x4, offset = 0x4, fixed_abs, tag = 'smem constant byte address 0x4 - core index']
  #allocation1 [shape = 'u32[72,128]{1,0:T(1,128)}', space=vmem, size = 0x9000, scoped, tag = 'internal scratch']
  #allocation2 [shape = 'f32[1]{0:T(128)S(6)}', space=smem, size = 0x200, scoped, tag = 'scoped memory for tpu_custom_call.1']
  #allocation3 [shape = 'f32[1]{0:T(128)S(6)}', space=smem, size = 0x200, scoped, tag = 'scoped memory for tpu_custom_call.1']
  %s0 = inlined_call_operand.<no memory space> [shape: f32[1], index: 0, kind: input, shape index: {}]
  %s1 = inlined_call_operand.<no memory space> [shape: f32[1], index: 1, kind: input, shape index: {}]
  %s2 = inlined_call_operand.hbm [shape: f32[512,128], index: 2, kind: input, shape index: {}]
  %s3 = inlined_call_operand.hbm [shape: f32[2,128,256], index: 3, kind: input, shape index: {}]
  %s4 = inlined_call_operand.vmem [shape: f32[2,1,256], index: 4, kind: input, shape index: {}]
  %s5 = inlined_call_operand.hbm [shape: f32[2,256,128], index: 5, kind: input, shape index: {}]
  %s6 = inlined_call_operand.vmem [shape: f32[2,1,128], index: 6, kind: input, shape index: {}]
  %s7 = inlined_call_operand.hbm [shape: f32[512,128], index: 7, kind: output, shape index: {}]
  %s8 = sld [smem:[#allocation0]]
  $region73: #{tpu_custom_call.1} parent=0
    _
  %s10 = ssub.s32 1, %s8
  %s11 = scalar_select 0, %s10, %s8
  %12 = sst [smem:[#allocation2]] %s0
  %13 = sst [smem:[#allocation3]] %s1
  $region1: #{tpu_custom_call.1} parent=0
    #allocation4 [shape = 'u8[262144]{0}', space=vmem, size = 0x40000, scoped, tag = 'input window, operand 2']
    #allocation5 [shape = 's32[2]{0}', space=sflag, size = 0x8, scoped, tag = 'scoped memory for tpu_custom_call.1']
    #allocation6 [shape = 's32[2]{0}', space=sflag, size = 0x8, scoped, tag = 'scoped memory for tpu_custom_call.1']
    #allocation7 [shape = 'u8[262144]{0}', space=vmem, size = 0x40000, scoped, tag = 'input window, operand 3, single buffered']
    #allocation8 [shape = 's32[1]{0}', space=sflag, size = 0x4, scoped, tag = 'scoped memory for tpu_custom_call.1']
    #allocation9 [shape = 'u8[262144]{0}', space=vmem, size = 0x40000, scoped, tag = 'input window, operand 5, single buffered']
    #allocation10 [shape = 'u8[262144]{0}', space=vmem, size = 0x40000, scoped, tag = 'output window, operand 0']
    %14 = vsyncpa [#allocation5], 0
    %s15 = scalar_lea.sflag [#allocation5], 1
    %16 = vsyncpa %s15, 0
    %17 = vsyncpa [#allocation8], 0
    %18 = vsyncpa [#allocation6], 0
    %s19 = scalar_lea.sflag [#allocation6], 1
    %20 = vsyncpa %s19, 0
    loop: start=0, step=1, limit=4
    $region2: #{tpu_custom_call.1} parent=1 // loop_pre_header
      _
    $region3: #{tpu_custom_call.1} parent=1 // loop_header
      %s22 = sphi 0, %s26
      %p23 = scmp.ge.s32.totalorder %s22, 4
      %s30 = sphi 0, %s30
      %s32 = sphi 0, %s30
      %s33 = sphi 0, %s32
      %s47 = sphi 0, %s33
      %s51 = sphi 0, %s51
      %s53 = sphi 0, %s51
      %s54 = sphi 0, %s53
      %s68 = sphi 0, %s54
      %s74 = sphi 0, %s76
      %s77 = sphi 0, %s74
      %s78 = sphi 0, %s77
      %s94 = sphi 0, %s78
      %s98 = sphi 0, %s98
      %s100 = sphi 0, %s98
      %s101 = sphi 0, %s100
      %s115 = sphi 0, %s101
      %s119 = sphi 0, %s119
      %s121 = sphi 0, %s119
      %s122 = sphi 0, %s121
      %s136 = sphi 0, %s122
      %s140 = sphi 0, %s140
      %s142 = sphi 0, %s140
      %s143 = sphi 0, %s142
      %s157 = sphi 0, %s143
      %s161 = sphi 0, %s161
      %s163 = sphi 0, %s161
      %s164 = sphi 0, %s163
      %s178 = sphi 0, %s164
      %s184 = sphi 0, %s186
      %s187 = sphi 0, %s184
      %s188 = sphi 0, %s187
      %s204 = sphi 0, %s188
    $region4: #{tpu_custom_call.1} parent=1 // loop_header_branch
      %25 = sbr.rel (%p23) target = $region8
    $region5: #{tpu_custom_call.1} parent=1 // loop_body
      %s27 = ssub.s32 %s22, 1
      %s28 = ssub.s32 %s22, 2
      %s29 = sadd.s32 %s22, 1
      %s31 = sadd.s32 %s30, 1
      %p34 = scmp.eq.s32.totalorder %s22, 1
      %p35 = scmp.ne.s32.totalorder %s30, %s32
      %p36 = scmp.eq.s32.totalorder %s22, 0
      %p37 = por %p35, %p36
      %p38 = scmp.ne.s32.totalorder %s30, %s32
      %p39 = scmp.eq.s32.totalorder %s27, 1
      %p40 = por %p38, %p39
      %p41 = scmp.ne.s32.totalorder %s32, %s33
      %p42 = scmp.eq.s32.totalorder %s27, 0
      %p43 = por %p41, %p42
      %p44 = scmp.ne.s32.totalorder %s32, %s33
      %p45 = scmp.eq.s32.totalorder %s28, 1
      %p46 = por %p44, %p45
      %p48 = scmp.ne.s32.totalorder %s33, %s47
      %p49 = scmp.eq.s32.totalorder %s28, 0
      %p50 = por %p48, %p49
      %s52 = sadd.s32 %s51, 1
      %p55 = scmp.eq.s32.totalorder %s22, 1
      %p56 = scmp.ne.s32.totalorder %s51, %s53
      %p57 = scmp.eq.s32.totalorder %s22, 0
      %p58 = por %p56, %p57
      %p59 = scmp.ne.s32.totalorder %s51, %s53
      %p60 = scmp.eq.s32.totalorder %s27, 1
      %p61 = por %p59, %p60
      %p62 = scmp.ne.s32.totalorder %s53, %s54
      %p63 = scmp.eq.s32.totalorder %s27, 0
      %p64 = por %p62, %p63
      %p65 = scmp.ne.s32.totalorder %s53, %s54
      %p66 = scmp.eq.s32.totalorder %s28, 1
      %p67 = por %p65, %p66
      %p69 = scmp.ne.s32.totalorder %s54, %s68
      %p70 = scmp.eq.s32.totalorder %s28, 0
      %p71 = por %p69, %p70
      %s72 = ssub.s32 %s22, %s29
      %p73 = scmp.eq.s32.totalorder %s72, 0
      %s75 = sadd.s32 %s74, 1
      %s76 = scalar_select %p73, %s74, %s75
      %p79 = pneg %p73
      %p80 = scmp.eq.s32.totalorder %s22, 1
      %p81 = por %p79, %p80
      %p82 = scmp.ne.s32.totalorder %s74, %s77
      %p83 = scmp.eq.s32.totalorder %s22, 0
      %p84 = por %p82, %p83
      %p85 = scmp.ne.s32.totalorder %s74, %s77
      %p86 = scmp.eq.s32.totalorder %s27, 1
      %p87 = por %p85, %p86
      %p88 = scmp.ne.s32.totalorder %s77, %s78
      %p89 = scmp.eq.s32.totalorder %s27, 0
      %p90 = por %p88, %p89
      %p91 = scmp.ne.s32.totalorder %s77, %s78
      %p92 = scmp.eq.s32.totalorder %s28, 1
      %p93 = por %p91, %p92
      %p95 = scmp.ne.s32.totalorder %s78, %s94
      %p96 = scmp.eq.s32.totalorder %s28, 0
      %p97 = por %p95, %p96
      %s99 = sadd.s32 %s98, 1
      %p102 = scmp.eq.s32.totalorder %s22, 1
      %p103 = scmp.ne.s32.totalorder %s98, %s100
      %p104 = scmp.eq.s32.totalorder %s22, 0
      %p105 = por %p103, %p104
      %p106 = scmp.ne.s32.totalorder %s98, %s100
      %p107 = scmp.eq.s32.totalorder %s27, 1
      %p108 = por %p106, %p107
      %p109 = scmp.ne.s32.totalorder %s100, %s101
      %p110 = scmp.eq.s32.totalorder %s27, 0
      %p111 = por %p109, %p110
      %p112 = scmp.ne.s32.totalorder %s100, %s101
      %p113 = scmp.eq.s32.totalorder %s28, 1
      %p114 = por %p112, %p113
      %p116 = scmp.ne.s32.totalorder %s101, %s115
      %p117 = scmp.eq.s32.totalorder %s28, 0
      %p118 = por %p116, %p117
      %s120 = sadd.s32 %s119, 1
      %p123 = scmp.eq.s32.totalorder %s22, 1
      %p124 = scmp.ne.s32.totalorder %s119, %s121
      %p125 = scmp.eq.s32.totalorder %s22, 0
      %p126 = por %p124, %p125
      %p127 = scmp.ne.s32.totalorder %s119, %s121
      %p128 = scmp.eq.s32.totalorder %s27, 1
      %p129 = por %p127, %p128
      %p130 = scmp.ne.s32.totalorder %s121, %s122
      %p131 = scmp.eq.s32.totalorder %s27, 0
      %p132 = por %p130, %p131
      %p133 = scmp.ne.s32.totalorder %s121, %s122
      %p134 = scmp.eq.s32.totalorder %s28, 1
      %p135 = por %p133, %p134
      %p137 = scmp.ne.s32.totalorder %s122, %s136
      %p138 = scmp.eq.s32.totalorder %s28, 0
      %p139 = por %p137, %p138
      %s141 = sadd.s32 %s140, 1
      %p144 = scmp.eq.s32.totalorder %s22, 1
      %p145 = scmp.ne.s32.totalorder %s140, %s142
      %p146 = scmp.eq.s32.totalorder %s22, 0
      %p147 = por %p145, %p146
      %p148 = scmp.ne.s32.totalorder %s140, %s142
      %p149 = scmp.eq.s32.totalorder %s27, 1
      %p150 = por %p148, %p149
      %p151 = scmp.ne.s32.totalorder %s142, %s143
      %p152 = scmp.eq.s32.totalorder %s27, 0
      %p153 = por %p151, %p152
      %p154 = scmp.ne.s32.totalorder %s142, %s143
      %p155 = scmp.eq.s32.totalorder %s28, 1
      %p156 = por %p154, %p155
      %p158 = scmp.ne.s32.totalorder %s143, %s157
      %p159 = scmp.eq.s32.totalorder %s28, 0
      %p160 = por %p158, %p159
      %s162 = sadd.s32 %s161, 1
      %p165 = scmp.eq.s32.totalorder %s22, 1
      %p166 = scmp.ne.s32.totalorder %s161, %s163
      %p167 = scmp.eq.s32.totalorder %s22, 0
      %p168 = por %p166, %p167
      %p169 = scmp.ne.s32.totalorder %s161, %s163
      %p170 = scmp.eq.s32.totalorder %s27, 1
      %p171 = por %p169, %p170
      %p172 = scmp.ne.s32.totalorder %s163, %s164
      %p173 = scmp.eq.s32.totalorder %s27, 0
      %p174 = por %p172, %p173
      %p175 = scmp.ne.s32.totalorder %s163, %s164
      %p176 = scmp.eq.s32.totalorder %s28, 1
      %p177 = por %p175, %p176
      %p179 = scmp.ne.s32.totalorder %s164, %s178
      %p180 = scmp.eq.s32.totalorder %s28, 0
      %p181 = por %p179, %p180
      %s182 = ssub.s32 %s22, %s29
      %p183 = scmp.eq.s32.totalorder %s182, 0
      %s185 = sadd.s32 %s184, 1
      %s186 = scalar_select %p183, %s184, %s185
      %p189 = pneg %p183
      %p190 = scmp.eq.s32.totalorder %s22, 1
      %p191 = por %p189, %p190
      %p192 = scmp.ne.s32.totalorder %s184, %s187
      %p193 = scmp.eq.s32.totalorder %s22, 0
      %p194 = por %p192, %p193
      %p195 = scmp.ne.s32.totalorder %s184, %s187
      %p196 = scmp.eq.s32.totalorder %s27, 1
      %p197 = por %p195, %p196
      %p198 = scmp.ne.s32.totalorder %s187, %s188
      %p199 = scmp.eq.s32.totalorder %s27, 0
      %p200 = por %p198, %p199
      %p201 = scmp.ne.s32.totalorder %s187, %s188
      %p202 = scmp.eq.s32.totalorder %s28, 1
      %p203 = por %p201, %p202
      %p205 = scmp.ne.s32.totalorder %s188, %s204
      %p206 = scmp.eq.s32.totalorder %s28, 0
      %p207 = por %p205, %p206
      %p208 = scmp.le.s32.totalorder 1, %s22
      %p209 = scmp.lt.s32.totalorder %s22, 3
      %p210 = pnand %p208, %p209
      %p211 = pneg %p210
      // Predicated region
      $region9: #{tpu_custom_call.1} parent=5 // pred_check
        _
      $region10: #{tpu_custom_call.1} parent=5 // pred_check_branch
        %213 = sbr.rel (%p210) target = $region12
      $region11: #{tpu_custom_call.1} parent=5 // pred_region
        %s214 = ssub.s32 %s22, 1
        // Predicated region
        $region13: #{tpu_custom_call.1} parent=11 // pred_check
          %p215 = pneg %p43
        $region14: #{tpu_custom_call.1} parent=11 // pred_check_branch
          %217 = sbr.rel (%p215) target = $region16
        $region15: #{tpu_custom_call.1} parent=11 // pred_region
          _
        $region16: #{tpu_custom_call.1} parent=11 // pred_fallthru
          _
        // Predicated region
        $region17: #{tpu_custom_call.1} parent=11 // pred_check
          %p218 = pneg %p64
        $region18: #{tpu_custom_call.1} parent=11 // pred_check_branch
          %220 = sbr.rel (%p218) target = $region20
        $region19: #{tpu_custom_call.1} parent=11 // pred_region
          _
        $region20: #{tpu_custom_call.1} parent=11 // pred_fallthru
          _
        // Predicated region
        $region21: #{tpu_custom_call.1} parent=11 // pred_check
          %p221 = pneg %p111
        $region22: #{tpu_custom_call.1} parent=11 // pred_check_branch
          %223 = sbr.rel (%p221) target = $region24
        $region23: #{tpu_custom_call.1} parent=11 // pred_region
          %225 = vsyncadd [#allocation8], 0
          %s226 = sshll.u32 %s3, 4
          %s227 = int_to_ptr.hbm [resolvable:$true] %s226
          %s228 = sshll.u32 [#allocation7], 4
          %s229 = int_to_ptr.vmem [resolvable:$true] %s228
          %234 = dma.hbm_to_vmem [thread:$0]  %s227, 8192, %s229, [#allocation8], 256, 256, 16
        $region24: #{tpu_custom_call.1} parent=11 // pred_fallthru
          _
        // Predicated region
        $region25: #{tpu_custom_call.1} parent=11 // pred_check
          %p235 = pneg %p132
        $region26: #{tpu_custom_call.1} parent=11 // pred_check_branch
          %237 = sbr.rel (%p235) target = $region28
        $region27: #{tpu_custom_call.1} parent=11 // pred_region
          _
        $region28: #{tpu_custom_call.1} parent=11 // pred_fallthru
          _
        // Predicated region
        $region29: #{tpu_custom_call.1} parent=11 // pred_check
          %p238 = pneg %p153
        $region30: #{tpu_custom_call.1} parent=11 // pred_check_branch
          %240 = sbr.rel (%p238) target = $region32
        $region31: #{tpu_custom_call.1} parent=11 // pred_region
          %242 = vsyncadd [#allocation8], 0
          %s243 = sshll.u32 %s5, 4
          %s244 = int_to_ptr.hbm [resolvable:$true] %s243
          %s245 = sshll.u32 [#allocation9], 4
          %s246 = int_to_ptr.vmem [resolvable:$true] %s245
          %251 = dma.hbm_to_vmem [thread:$0]  %s244, 8192, %s246, [#allocation8], 128, 128, 8
        $region32: #{tpu_custom_call.1} parent=11 // pred_fallthru
          _
        // Predicated region
        $region33: #{tpu_custom_call.1} parent=11 // pred_check
          %p252 = pneg %p174
        $region34: #{tpu_custom_call.1} parent=11 // pred_check_branch
          %254 = sbr.rel (%p252) target = $region36
        $region35: #{tpu_custom_call.1} parent=11 // pred_region
          _
        $region36: #{tpu_custom_call.1} parent=11 // pred_fallthru
          _
      $region12: #{tpu_custom_call.1} parent=5 // pred_fallthru
        _
      %p255 = scmp.lt.s32.totalorder %s22, 2
      // Predicated region
      $region37: #{tpu_custom_call.1} parent=5 // pred_check
        %p256 = pneg %p255
      $region38: #{tpu_custom_call.1} parent=5 // pred_check_branch
        %258 = sbr.rel (%p256) target = $region40
      $region39: #{tpu_custom_call.1} parent=5 // pred_region
        // Predicated region
        $region41: #{tpu_custom_call.1} parent=39 // pred_check
          %p259 = pneg %p84
        $region42: #{tpu_custom_call.1} parent=39 // pred_check_branch
          %261 = sbr.rel (%p259) target = $region44
        $region43: #{tpu_custom_call.1} parent=39 // pred_region
          %s262 = sand.u32 %s74, 1
          %s263 = scalar_lea.sflag [#allocation5], %s262
          %s264 = sand.u32 %s74, 1
          %s265 = smul.addr %s264, 256
          %s266 = scalar_lea.vmem [#allocation4], %s265
          %s267 = smul.u32 32, %s22
          %269 = vsyncadd %s263, 0
          %s270 = smul.addr %s267, 8
          %s271 = scalar_lea.hbm %s2, %s270
          %s272 = sshll.u32 %s271, 4
          %s273 = int_to_ptr.hbm [resolvable:$true] %s272
          %s274 = sshll.u32 %s266, 4
          %s275 = int_to_ptr.vmem [resolvable:$true] %s274
          %280 = dma.hbm_to_vmem [thread:$0]  %s273, 4096, %s275, %s263, 128, 128, 8
        $region44: #{tpu_custom_call.1} parent=39 // pred_fallthru
          _
      $region40: #{tpu_custom_call.1} parent=5 // pred_fallthru
        _
      %p281 = scmp.le.s32.totalorder 1, %s22
      %p282 = scmp.lt.s32.totalorder %s22, 3
      %p283 = pnand %p281, %p282
      %p284 = pneg %p283
      // Predicated region
      $region45: #{tpu_custom_call.1} parent=5 // pred_check
        _
      $region46: #{tpu_custom_call.1} parent=5 // pred_check_branch
        %286 = sbr.rel (%p283) target = $region48
      $region47: #{tpu_custom_call.1} parent=5 // pred_region
        %s287 = ssub.s32 %s22, 1
        %s288 = sand.u32 %s77, 1
        %s289 = scalar_lea.sflag [#allocation5], %s288
        %s290 = sand.u32 %s77, 1
        %s291 = smul.addr %s290, 256
        %s292 = scalar_lea.vmem [#allocation4], %s291
        // Predicated region
        $region49: #{tpu_custom_call.1} parent=47 // pred_check
          %p293 = pneg %p90
        $region50: #{tpu_custom_call.1} parent=47 // pred_check_branch
          %295 = sbr.rel (%p293) target = $region52
        $region51: #{tpu_custom_call.1} parent=47 // pred_region
          %297 = dma.done %s289, 4096
        $region52: #{tpu_custom_call.1} parent=47 // pred_fallthru
          _
        // Predicated region
        $region53: #{tpu_custom_call.1} parent=47 // pred_check
          %p298 = pneg %p111
        $region54: #{tpu_custom_call.1} parent=47 // pred_check_branch
          %300 = sbr.rel (%p298) target = $region56
        $region55: #{tpu_custom_call.1} parent=47 // pred_region
          %302 = dma.done [#allocation8], 8192
        $region56: #{tpu_custom_call.1} parent=47 // pred_fallthru
          _
        // Predicated region
        $region57: #{tpu_custom_call.1} parent=47 // pred_check
          %p303 = pneg %p153
        $region58: #{tpu_custom_call.1} parent=47 // pred_check_branch
          %305 = sbr.rel (%p303) target = $region60
        $region59: #{tpu_custom_call.1} parent=47 // pred_region
          %307 = dma.done [#allocation8], 8192
        $region60: #{tpu_custom_call.1} parent=47 // pred_fallthru
          _
        %p308 = pneg %p43
        %p309 = pneg %p40
        %p310 = pneg %p64
        %p311 = pneg %p61
        %s312 = sand.u32 %s77, 1
        %s313 = scalar_lea.sflag [#allocation5], %s312
        %s314 = sand.u32 %s77, 1
        %s315 = smul.addr %s314, 256
        %s316 = scalar_lea.vmem [#allocation4], %s315
        %p317 = pneg %p90
        %p318 = pneg %p87
        %p319 = pneg %p111
        %p320 = pneg %p108
        %p321 = pneg %p132
        %p322 = pneg %p129
        %p323 = pneg %p153
        %p324 = pneg %p150
        %p325 = pneg %p174
        %p326 = pneg %p171
        %p327 = pneg %p200
        %p328 = pneg %p197
        %s329 = sand.u32 %s187, 1
        %s330 = scalar_lea.sflag [#allocation6], %s329
        %s331 = sand.u32 %s187, 1
        %s332 = smul.addr %s331, 256
        %s333 = scalar_lea.vmem [#allocation10], %s332
        %s334 = smul.u32 32, %s27
        %s335 = smul.u32 32, %s27
        %v336 = vld [vmem:[%s292] sm:$0xff]
        %v337 = vld [vmem:[%s292 + $0x8] sm:$0xff]
        %v338 = vld [vmem:[%s292 + $0x10] sm:$0xff]
        %v339 = vld [vmem:[%s292 + $0x18] sm:$0xff]
        %v340 = vld [vmem:[%s292 + $0x20] sm:$0xff]
        %v341 = vld [vmem:[%s292 + $0x28] sm:$0xff]
        %v342 = vld [vmem:[%s292 + $0x30] sm:$0xff]
        %v343 = vld [vmem:[%s292 + $0x38] sm:$0xff]
        %v344 = vld [vmem:[%s292 + $0x40] sm:$0xff]
        %v345 = vld [vmem:[%s292 + $0x48] sm:$0xff]
        %v346 = vld [vmem:[%s292 + $0x50] sm:$0xff]
        %v347 = vld [vmem:[%s292 + $0x58] sm:$0xff]
        %v348 = vld [vmem:[%s292 + $0x60] sm:$0xff]
        %v349 = vld [vmem:[%s292 + $0x68] sm:$0xff]
        %v350 = vld [vmem:[%s292 + $0x70] sm:$0xff]
        %v351 = vld [vmem:[%s292 + $0x78] sm:$0xff]
        %v352 = vld [vmem:[%s292 + $0x80] sm:$0xff]
        %v353 = vld [vmem:[%s292 + $0x88] sm:$0xff]
        %v354 = vld [vmem:[%s292 + $0x90] sm:$0xff]
        %v355 = vld [vmem:[%s292 + $0x98] sm:$0xff]
        %v356 = vld [vmem:[%s292 + $0xa0] sm:$0xff]
        %v357 = vld [vmem:[%s292 + $0xa8] sm:$0xff]
        %v358 = vld [vmem:[%s292 + $0xb0] sm:$0xff]
        %v359 = vld [vmem:[%s292 + $0xb8] sm:$0xff]
        %v360 = vld [vmem:[%s292 + $0xc0] sm:$0xff]
        %v361 = vld [vmem:[%s292 + $0xc8] sm:$0xff]
        %v362 = vld [vmem:[%s292 + $0xd0] sm:$0xff]
        %v363 = vld [vmem:[%s292 + $0xd8] sm:$0xff]
        %v364 = vld [vmem:[%s292 + $0xe0] sm:$0xff]
        %v365 = vld [vmem:[%s292 + $0xe8] sm:$0xff]
        %v366 = vld [vmem:[%s292 + $0xf0] sm:$0xff]
        %v367 = vld [vmem:[%s292 + $0xf8] sm:$0xff]
        %v368 = vld [vmem:[#allocation7] sm:$0xff]
        %v369 = vld [vmem:[#allocation7 + $0x8] sm:$0xff]
        %v370 = vld [vmem:[#allocation7 + $0x10] sm:$0xff]
        %v371 = vld [vmem:[#allocation7 + $0x18] sm:$0xff]
        %v372 = vld [vmem:[#allocation7 + $0x20] sm:$0xff]
        %v373 = vld [vmem:[#allocation7 + $0x28] sm:$0xff]
        %v374 = vld [vmem:[#allocation7 + $0x30] sm:$0xff]
        %v375 = vld [vmem:[#allocation7 + $0x38] sm:$0xff]
        %v376 = vld [vmem:[#allocation7 + $0x40] sm:$0xff]
        %v377 = vld [vmem:[#allocation7 + $0x48] sm:$0xff]
        %v378 = vld [vmem:[#allocation7 + $0x50] sm:$0xff]
        %v379 = vld [vmem:[#allocation7 + $0x58] sm:$0xff]
        %v380 = vld [vmem:[#allocation7 + $0x60] sm:$0xff]
        %v381 = vld [vmem:[#allocation7 + $0x68] sm:$0xff]
        %v382 = vld [vmem:[#allocation7 + $0x70] sm:$0xff]
        %v383 = vld [vmem:[#allocation7 + $0x78] sm:$0xff]
        %v384 = vld [vmem:[#allocation7 + $0x80] sm:$0xff]
        %v385 = vld [vmem:[#allocation7 + $0x88] sm:$0xff]
        %v386 = vld [vmem:[#allocation7 + $0x90] sm:$0xff]
        %v387 = vld [vmem:[#allocation7 + $0x98] sm:$0xff]
        %v388 = vld [vmem:[#allocation7 + $0xa0] sm:$0xff]
        %v389 = vld [vmem:[#allocation7 + $0xa8] sm:$0xff]
        %v390 = vld [vmem:[#allocation7 + $0xb0] sm:$0xff]
        %v391 = vld [vmem:[#allocation7 + $0xb8] sm:$0xff]
        %v392 = vld [vmem:[#allocation7 + $0xc0] sm:$0xff]
        %v393 = vld [vmem:[#allocation7 + $0xc8] sm:$0xff]
        %v394 = vld [vmem:[#allocation7 + $0xd0] sm:$0xff]
        %v395 = vld [vmem:[#allocation7 + $0xd8] sm:$0xff]
        %v396 = vld [vmem:[#allocation7 + $0xe0] sm:$0xff]
        %v397 = vld [vmem:[#allocation7 + $0xe8] sm:$0xff]
        %v398 = vld [vmem:[#allocation7 + $0xf0] sm:$0xff]
        %v399 = vld [vmem:[#allocation7 + $0xf8] sm:$0xff]
        %v400 = vld [vmem:[%s4] sm:$0x3]
        %v402 = vperm.slane %v400, 0
        %v403 = vperm.slane %v400, 1
        %406 = vmatpush.msra.mxu0 %v398
        %407 = vmatpush.msra.mxu0 %v396
        %408 = vmatpush.msra.mxu0 %v394
        %409 = vmatpush.msra.mxu0 %v392
        %410 = vmatpush.msra.mxu0 %v390
        %411 = vmatpush.msra.mxu0 %v388
        %412 = vmatpush.msra.mxu0 %v386
        %413 = vmatpush.msra.mxu0 %v384
        %414 = vmatpush.msra.mxu0 %v382
        %415 = vmatpush.msra.mxu0 %v380
        %416 = vmatpush.msra.mxu0 %v378
        %417 = vmatpush.msra.mxu0 %v376
        %418 = vmatpush.msra.mxu0 %v374
        %419 = vmatpush.msra.mxu0 %v372
        %420 = vmatpush.msra.mxu0 %v370
        %421 = vmatpush.msra.mxu0 %v368
        %422 = vmatmul.f32.gmra.mxu0 %v336
        %v423 = vpop.f32.mrf.mxu0
        %v424 = vadd.f32 %v402, %v423
        %425 = vmatmul.f32.gmra.mxu0 %v337
        %v426 = vpop.f32.mrf.mxu0
        %v427 = vadd.f32 %v402, %v426
        %428 = vmatmul.f32.gmra.mxu0 %v338
        %v429 = vpop.f32.mrf.mxu0
        %v430 = vadd.f32 %v402, %v429
        %431 = vmatmul.f32.gmra.mxu0 %v339
        %v432 = vpop.f32.mrf.mxu0
        %v433 = vadd.f32 %v402, %v432
        %434 = vmatmul.f32.gmra.mxu0 %v340
        %v435 = vpop.f32.mrf.mxu0
        %v436 = vadd.f32 %v402, %v435
        %437 = vmatmul.f32.gmra.mxu0 %v341
        %v438 = vpop.f32.mrf.mxu0
        %v439 = vadd.f32 %v402, %v438
        %440 = vmatmul.f32.gmra.mxu0 %v342
        %v441 = vpop.f32.mrf.mxu0
        %v442 = vadd.f32 %v402, %v441
        %443 = vmatmul.f32.gmra.mxu0 %v343
        %v444 = vpop.f32.mrf.mxu0
        %v445 = vadd.f32 %v402, %v444
        %446 = vmatmul.f32.gmra.mxu0 %v344
        %v447 = vpop.f32.mrf.mxu0
        %v448 = vadd.f32 %v402, %v447
        %449 = vmatmul.f32.gmra.mxu0 %v345
        %v450 = vpop.f32.mrf.mxu0
        %v451 = vadd.f32 %v402, %v450
        %452 = vmatmul.f32.gmra.mxu0 %v346
        %v453 = vpop.f32.mrf.mxu0
        %v454 = vadd.f32 %v402, %v453
        %455 = vmatmul.f32.gmra.mxu0 %v347
        %v456 = vpop.f32.mrf.mxu0
        %v457 = vadd.f32 %v402, %v456
        %458 = vmatmul.f32.gmra.mxu0 %v348
        %v459 = vpop.f32.mrf.mxu0
        %v460 = vadd.f32 %v402, %v459
        %461 = vmatmul.f32.gmra.mxu0 %v349
        %v462 = vpop.f32.mrf.mxu0
        %v463 = vadd.f32 %v402, %v462
        %464 = vmatmul.f32.gmra.mxu0 %v350
        %v465 = vpop.f32.mrf.mxu0
        %v466 = vadd.f32 %v402, %v465
        %467 = vmatmul.f32.gmra.mxu0 %v351
        %v468 = vpop.f32.mrf.mxu0
        %v469 = vadd.f32 %v402, %v468
        %470 = vmatmul.f32.gmra.mxu0 %v352
        %v471 = vpop.f32.mrf.mxu0
        %v472 = vadd.f32 %v402, %v471
        %473 = vmatmul.f32.gmra.mxu0 %v353
        %v474 = vpop.f32.mrf.mxu0
        %v475 = vadd.f32 %v402, %v474
        %476 = vmatmul.f32.gmra.mxu0 %v354
        %v477 = vpop.f32.mrf.mxu0
        %v478 = vadd.f32 %v402, %v477
        %479 = vmatmul.f32.gmra.mxu0 %v355
        %v480 = vpop.f32.mrf.mxu0
        %v481 = vadd.f32 %v402, %v480
        %482 = vmatmul.f32.gmra.mxu0 %v356
        %v483 = vpop.f32.mrf.mxu0
        %v484 = vadd.f32 %v402, %v483
        %485 = vmatmul.f32.gmra.mxu0 %v357
        %v486 = vpop.f32.mrf.mxu0
        %v487 = vadd.f32 %v402, %v486
        %488 = vmatmul.f32.gmra.mxu0 %v358
        %v489 = vpop.f32.mrf.mxu0
        %v490 = vadd.f32 %v402, %v489
        %491 = vmatmul.f32.gmra.mxu0 %v359
        %v492 = vpop.f32.mrf.mxu0
        %v493 = vadd.f32 %v402, %v492
        %494 = vmatmul.f32.gmra.mxu0 %v360
        %v495 = vpop.f32.mrf.mxu0
        %v496 = vadd.f32 %v402, %v495
        %497 = vmatmul.f32.gmra.mxu0 %v361
        %v498 = vpop.f32.mrf.mxu0
        %v499 = vadd.f32 %v402, %v498
        %500 = vmatmul.f32.gmra.mxu0 %v362
        %v501 = vpop.f32.mrf.mxu0
        %v502 = vadd.f32 %v402, %v501
        %503 = vmatmul.f32.gmra.mxu0 %v363
        %v504 = vpop.f32.mrf.mxu0
        %v505 = vadd.f32 %v402, %v504
        %506 = vmatmul.f32.gmra.mxu0 %v364
        %v507 = vpop.f32.mrf.mxu0
        %v508 = vadd.f32 %v402, %v507
        %509 = vmatmul.f32.gmra.mxu0 %v365
        %v510 = vpop.f32.mrf.mxu0
        %v511 = vadd.f32 %v402, %v510
        %512 = vmatmul.f32.gmra.mxu0 %v366
        %v513 = vpop.f32.mrf.mxu0
        %v514 = vadd.f32 %v402, %v513
        %515 = vmatmul.f32.gmra.mxu0 %v367
        %v516 = vpop.f32.mrf.mxu0
        %v517 = vadd.f32 %v402, %v516
        %518 = vdwg.mxu0
        %519 = vmatpush.msra.mxu0 %v399
        %520 = vmatpush.msra.mxu0 %v397
        %521 = vmatpush.msra.mxu0 %v395
        %522 = vmatpush.msra.mxu0 %v393
        %523 = vmatpush.msra.mxu0 %v391
        %524 = vmatpush.msra.mxu0 %v389
        %525 = vmatpush.msra.mxu0 %v387
        %526 = vmatpush.msra.mxu0 %v385
        %527 = vmatpush.msra.mxu0 %v383
        %528 = vmatpush.msra.mxu0 %v381
        %529 = vmatpush.msra.mxu0 %v379
        %530 = vmatpush.msra.mxu0 %v377
        %531 = vmatpush.msra.mxu0 %v375
        %532 = vmatpush.msra.mxu0 %v373
        %533 = vmatpush.msra.mxu0 %v371
        %534 = vmatpush.msra.mxu0 %v369
        %535 = vmatmul.f32.gmra.mxu0 %v336
        %v536 = vpop.f32.mrf.mxu0
        %v537 = vadd.f32 %v403, %v536
        %538 = vmatmul.f32.gmra.mxu0 %v337
        %v539 = vpop.f32.mrf.mxu0
        %v540 = vadd.f32 %v403, %v539
        %541 = vmatmul.f32.gmra.mxu0 %v338
        %v542 = vpop.f32.mrf.mxu0
        %v543 = vadd.f32 %v403, %v542
        %544 = vmatmul.f32.gmra.mxu0 %v339
        %v545 = vpop.f32.mrf.mxu0
        %v546 = vadd.f32 %v403, %v545
        %547 = vmatmul.f32.gmra.mxu0 %v340
        %v548 = vpop.f32.mrf.mxu0
        %v549 = vadd.f32 %v403, %v548
        %550 = vmatmul.f32.gmra.mxu0 %v341
        %v551 = vpop.f32.mrf.mxu0
        %v552 = vadd.f32 %v403, %v551
        %553 = vmatmul.f32.gmra.mxu0 %v342
        %v554 = vpop.f32.mrf.mxu0
        %v555 = vadd.f32 %v403, %v554
        %556 = vmatmul.f32.gmra.mxu0 %v343
        %v557 = vpop.f32.mrf.mxu0
        %v558 = vadd.f32 %v403, %v557
        %559 = vmatmul.f32.gmra.mxu0 %v344
        %v560 = vpop.f32.mrf.mxu0
        %v561 = vadd.f32 %v403, %v560
        %562 = vmatmul.f32.gmra.mxu0 %v345
        %v563 = vpop.f32.mrf.mxu0
        %v564 = vadd.f32 %v403, %v563
        %565 = vmatmul.f32.gmra.mxu0 %v346
        %v566 = vpop.f32.mrf.mxu0
        %v567 = vadd.f32 %v403, %v566
        %568 = vmatmul.f32.gmra.mxu0 %v347
        %v569 = vpop.f32.mrf.mxu0
        %v570 = vadd.f32 %v403, %v569
        %571 = vmatmul.f32.gmra.mxu0 %v348
        %v572 = vpop.f32.mrf.mxu0
        %v573 = vadd.f32 %v403, %v572
        %574 = vmatmul.f32.gmra.mxu0 %v349
        %v575 = vpop.f32.mrf.mxu0
        %v576 = vadd.f32 %v403, %v575
        %577 = vmatmul.f32.gmra.mxu0 %v350
        %v578 = vpop.f32.mrf.mxu0
        %v579 = vadd.f32 %v403, %v578
        %580 = vmatmul.f32.gmra.mxu0 %v351
        %v581 = vpop.f32.mrf.mxu0
        %v582 = vadd.f32 %v403, %v581
        %583 = vmatmul.f32.gmra.mxu0 %v352
        %v584 = vpop.f32.mrf.mxu0
        %v585 = vadd.f32 %v403, %v584
        %586 = vmatmul.f32.gmra.mxu0 %v353
        %v587 = vpop.f32.mrf.mxu0
        %v588 = vadd.f32 %v403, %v587
        %589 = vmatmul.f32.gmra.mxu0 %v354
        %v590 = vpop.f32.mrf.mxu0
        %v591 = vadd.f32 %v403, %v590
        %592 = vmatmul.f32.gmra.mxu0 %v355
        %v593 = vpop.f32.mrf.mxu0
        %v594 = vadd.f32 %v403, %v593
        %595 = vmatmul.f32.gmra.mxu0 %v356
        %v596 = vpop.f32.mrf.mxu0
        %v597 = vadd.f32 %v403, %v596
        %598 = vmatmul.f32.gmra.mxu0 %v357
        %v599 = vpop.f32.mrf.mxu0
        %v600 = vadd.f32 %v403, %v599
        %601 = vmatmul.f32.gmra.mxu0 %v358
        %v602 = vpop.f32.mrf.mxu0
        %v603 = vadd.f32 %v403, %v602
        %604 = vmatmul.f32.gmra.mxu0 %v359
        %v605 = vpop.f32.mrf.mxu0
        %v606 = vadd.f32 %v403, %v605
        %607 = vmatmul.f32.gmra.mxu0 %v360
        %v608 = vpop.f32.mrf.mxu0
        %v609 = vadd.f32 %v403, %v608
        %610 = vmatmul.f32.gmra.mxu0 %v361
        %v611 = vpop.f32.mrf.mxu0
        %v612 = vadd.f32 %v403, %v611
        %613 = vmatmul.f32.gmra.mxu0 %v362
        %v614 = vpop.f32.mrf.mxu0
        %v615 = vadd.f32 %v403, %v614
        %616 = vmatmul.f32.gmra.mxu0 %v363
        %v617 = vpop.f32.mrf.mxu0
        %v618 = vadd.f32 %v403, %v617
        %619 = vmatmul.f32.gmra.mxu0 %v364
        %v620 = vpop.f32.mrf.mxu0
        %v621 = vadd.f32 %v403, %v620
        %622 = vmatmul.f32.gmra.mxu0 %v365
        %v623 = vpop.f32.mrf.mxu0
        %v624 = vadd.f32 %v403, %v623
        %625 = vmatmul.f32.gmra.mxu0 %v366
        %v626 = vpop.f32.mrf.mxu0
        %v627 = vadd.f32 %v403, %v626
        %628 = vmatmul.f32.gmra.mxu0 %v367
        %v629 = vpop.f32.mrf.mxu0
        %v630 = vadd.f32 %v403, %v629
        %631 = vdwg.mxu0
        %v632 = vmax.f32 %v424, 0.0
        %v633 = vmax.f32 %v537, 0.0
        %v634 = vmax.f32 %v427, 0.0
        %v635 = vmax.f32 %v540, 0.0
        %v636 = vmax.f32 %v430, 0.0
        %v637 = vmax.f32 %v543, 0.0
        %v638 = vmax.f32 %v433, 0.0
        %v639 = vmax.f32 %v546, 0.0
        %v640 = vmax.f32 %v436, 0.0
        %v641 = vmax.f32 %v549, 0.0
        %v642 = vmax.f32 %v439, 0.0
        %v643 = vmax.f32 %v552, 0.0
        %v644 = vmax.f32 %v442, 0.0
        %v645 = vmax.f32 %v555, 0.0
        %v646 = vmax.f32 %v445, 0.0
        %v647 = vmax.f32 %v558, 0.0
        %v648 = vmax.f32 %v448, 0.0
        %v649 = vmax.f32 %v561, 0.0
        %v650 = vmax.f32 %v451, 0.0
        %v651 = vmax.f32 %v564, 0.0
        %v652 = vmax.f32 %v454, 0.0
        %v653 = vmax.f32 %v567, 0.0
        %v654 = vmax.f32 %v457, 0.0
        %v655 = vmax.f32 %v570, 0.0
        %v656 = vmax.f32 %v460, 0.0
        %v657 = vmax.f32 %v573, 0.0
        %v658 = vmax.f32 %v463, 0.0
        %v659 = vmax.f32 %v576, 0.0
        %v660 = vmax.f32 %v466, 0.0
        %v661 = vmax.f32 %v579, 0.0
        %v662 = vmax.f32 %v469, 0.0
        %v663 = vmax.f32 %v582, 0.0
        %v664 = vmax.f32 %v472, 0.0
        %v665 = vmax.f32 %v585, 0.0
        %v666 = vmax.f32 %v475, 0.0
        %v667 = vmax.f32 %v588, 0.0
        %v668 = vmax.f32 %v478, 0.0
        %v669 = vmax.f32 %v591, 0.0
        %v670 = vmax.f32 %v481, 0.0
        %v671 = vmax.f32 %v594, 0.0
        %v672 = vmax.f32 %v484, 0.0
        %v673 = vmax.f32 %v597, 0.0
        %v674 = vmax.f32 %v487, 0.0
        %v675 = vmax.f32 %v600, 0.0
        %v676 = vmax.f32 %v490, 0.0
        %v677 = vmax.f32 %v603, 0.0
        %v678 = vmax.f32 %v493, 0.0
        %v679 = vmax.f32 %v606, 0.0
        %v680 = vmax.f32 %v496, 0.0
        %v681 = vmax.f32 %v609, 0.0
        %v682 = vmax.f32 %v499, 0.0
        %v683 = vmax.f32 %v612, 0.0
        %v684 = vmax.f32 %v502, 0.0
        %v685 = vmax.f32 %v615, 0.0
        %v686 = vmax.f32 %v505, 0.0
        %v687 = vmax.f32 %v618, 0.0
        %v688 = vmax.f32 %v508, 0.0
        %v689 = vmax.f32 %v621, 0.0
        %v690 = vmax.f32 %v511, 0.0
        %v691 = vmax.f32 %v624, 0.0
        %v692 = vmax.f32 %v514, 0.0
        %v693 = vmax.f32 %v627, 0.0
        %v694 = vmax.f32 %v517, 0.0
        %v695 = vmax.f32 %v630, 0.0
        %v696 = vld [vmem:[#allocation9] sm:$0xff]
        %v697 = vld [vmem:[#allocation9 + $0x8] sm:$0xff]
        %v698 = vld [vmem:[#allocation9 + $0x10] sm:$0xff]
        %v699 = vld [vmem:[#allocation9 + $0x18] sm:$0xff]
        %v700 = vld [vmem:[#allocation9 + $0x20] sm:$0xff]
        %v701 = vld [vmem:[#allocation9 + $0x28] sm:$0xff]
        %v702 = vld [vmem:[#allocation9 + $0x30] sm:$0xff]
        %v703 = vld [vmem:[#allocation9 + $0x38] sm:$0xff]
        %v704 = vld [vmem:[#allocation9 + $0x40] sm:$0xff]
        %v705 = vld [vmem:[#allocation9 + $0x48] sm:$0xff]
        %v706 = vld [vmem:[#allocation9 + $0x50] sm:$0xff]
        %v707 = vld [vmem:[#allocation9 + $0x58] sm:$0xff]
        %v708 = vld [vmem:[#allocation9 + $0x60] sm:$0xff]
        %v709 = vld [vmem:[#allocation9 + $0x68] sm:$0xff]
        %v710 = vld [vmem:[#allocation9 + $0x70] sm:$0xff]
        %v711 = vld [vmem:[#allocation9 + $0x78] sm:$0xff]
        %v712 = vld [vmem:[#allocation9 + $0x80] sm:$0xff]
        %v713 = vld [vmem:[#allocation9 + $0x88] sm:$0xff]
        %v714 = vld [vmem:[#allocation9 + $0x90] sm:$0xff]
        %v715 = vld [vmem:[#allocation9 + $0x98] sm:$0xff]
        %v716 = vld [vmem:[#allocation9 + $0xa0] sm:$0xff]
        %v717 = vld [vmem:[#allocation9 + $0xa8] sm:$0xff]
        %v718 = vld [vmem:[#allocation9 + $0xb0] sm:$0xff]
        %v719 = vld [vmem:[#allocation9 + $0xb8] sm:$0xff]
        %v720 = vld [vmem:[#allocation9 + $0xc0] sm:$0xff]
        %v721 = vld [vmem:[#allocation9 + $0xc8] sm:$0xff]
        %v722 = vld [vmem:[#allocation9 + $0xd0] sm:$0xff]
        %v723 = vld [vmem:[#allocation9 + $0xd8] sm:$0xff]
        %v724 = vld [vmem:[#allocation9 + $0xe0] sm:$0xff]
        %v725 = vld [vmem:[#allocation9 + $0xe8] sm:$0xff]
        %v726 = vld [vmem:[#allocation9 + $0xf0] sm:$0xff]
        %v727 = vld [vmem:[#allocation9 + $0xf8] sm:$0xff]
        %v728 = vld [vmem:[%s6] sm:$0x1]
        %v730 = vperm.slane %v728, 0
        %732 = vmatpush.msra.mxu0 %v711
        %733 = vmatpush.msra.mxu0 %v710
        %734 = vmatpush.msra.mxu0 %v709
        %735 = vmatpush.msra.mxu0 %v708
        %736 = vmatpush.msra.mxu0 %v707
        %737 = vmatpush.msra.mxu0 %v706
        %738 = vmatpush.msra.mxu0 %v705
        %739 = vmatpush.msra.mxu0 %v704
        %740 = vmatpush.msra.mxu0 %v703
        %741 = vmatpush.msra.mxu0 %v702
        %742 = vmatpush.msra.mxu0 %v701
        %743 = vmatpush.msra.mxu0 %v700
        %744 = vmatpush.msra.mxu0 %v699
        %745 = vmatpush.msra.mxu0 %v698
        %746 = vmatpush.msra.mxu0 %v697
        %747 = vmatpush.msra.mxu0 %v696
        %748 = vmatmul.f32.gmra.mxu0 %v632
        %v749 = vpop.f32.mrf.mxu0
        %v750 = vadd.f32 %v730, %v749
        %751 = vmatmul.f32.gmra.mxu0 %v634
        %v752 = vpop.f32.mrf.mxu0
        %v753 = vadd.f32 %v730, %v752
        %754 = vmatmul.f32.gmra.mxu0 %v636
        %v755 = vpop.f32.mrf.mxu0
        %v756 = vadd.f32 %v730, %v755
        %757 = vmatmul.f32.gmra.mxu0 %v638
        %v758 = vpop.f32.mrf.mxu0
        %v759 = vadd.f32 %v730, %v758
        %760 = vmatmul.f32.gmra.mxu0 %v640
        %v761 = vpop.f32.mrf.mxu0
        %v762 = vadd.f32 %v730, %v761
        %763 = vmatmul.f32.gmra.mxu0 %v642
        %v764 = vpop.f32.mrf.mxu0
        %v765 = vadd.f32 %v730, %v764
        %766 = vmatmul.f32.gmra.mxu0 %v644
        %v767 = vpop.f32.mrf.mxu0
        %v768 = vadd.f32 %v730, %v767
        %769 = vmatmul.f32.gmra.mxu0 %v646
        %v770 = vpop.f32.mrf.mxu0
        %v771 = vadd.f32 %v730, %v770
        %772 = vmatmul.f32.gmra.mxu0 %v648
        %v773 = vpop.f32.mrf.mxu0
        %v774 = vadd.f32 %v730, %v773
        %775 = vmatmul.f32.gmra.mxu0 %v650
        %v776 = vpop.f32.mrf.mxu0
        %v777 = vadd.f32 %v730, %v776
        %778 = vmatmul.f32.gmra.mxu0 %v652
        %v779 = vpop.f32.mrf.mxu0
        %v780 = vadd.f32 %v730, %v779
        %781 = vmatmul.f32.gmra.mxu0 %v654
        %v782 = vpop.f32.mrf.mxu0
        %v783 = vadd.f32 %v730, %v782
        %784 = vmatmul.f32.gmra.mxu0 %v656
        %v785 = vpop.f32.mrf.mxu0
        %v786 = vadd.f32 %v730, %v785
        %787 = vmatmul.f32.gmra.mxu0 %v658
        %v788 = vpop.f32.mrf.mxu0
        %v789 = vadd.f32 %v730, %v788
        %790 = vmatmul.f32.gmra.mxu0 %v660
        %v791 = vpop.f32.mrf.mxu0
        %v792 = vadd.f32 %v730, %v791
        %793 = vmatmul.f32.gmra.mxu0 %v662
        %v794 = vpop.f32.mrf.mxu0
        %v795 = vadd.f32 %v730, %v794
        %796 = vmatmul.f32.gmra.mxu0 %v664
        %v797 = vpop.f32.mrf.mxu0
        %v798 = vadd.f32 %v730, %v797
        %799 = vmatmul.f32.gmra.mxu0 %v666
        %v800 = vpop.f32.mrf.mxu0
        %v801 = vadd.f32 %v730, %v800
        %802 = vmatmul.f32.gmra.mxu0 %v668
        %v803 = vpop.f32.mrf.mxu0
        %v804 = vadd.f32 %v730, %v803
        %805 = vmatmul.f32.gmra.mxu0 %v670
        %v806 = vpop.f32.mrf.mxu0
        %v807 = vadd.f32 %v730, %v806
        %808 = vmatmul.f32.gmra.mxu0 %v672
        %v809 = vpop.f32.mrf.mxu0
        %v810 = vadd.f32 %v730, %v809
        %811 = vmatmul.f32.gmra.mxu0 %v674
        %v812 = vpop.f32.mrf.mxu0
        %v813 = vadd.f32 %v730, %v812
        %814 = vmatmul.f32.gmra.mxu0 %v676
        %v815 = vpop.f32.mrf.mxu0
        %v816 = vadd.f32 %v730, %v815
        %817 = vmatmul.f32.gmra.mxu0 %v678
        %v818 = vpop.f32.mrf.mxu0
        %v819 = vadd.f32 %v730, %v818
        %820 = vmatmul.f32.gmra.mxu0 %v680
        %v821 = vpop.f32.mrf.mxu0
        %v822 = vadd.f32 %v730, %v821
        %823 = vmatmul.f32.gmra.mxu0 %v682
        %v824 = vpop.f32.mrf.mxu0
        %v825 = vadd.f32 %v730, %v824
        %826 = vmatmul.f32.gmra.mxu0 %v684
        %v827 = vpop.f32.mrf.mxu0
        %v828 = vadd.f32 %v730, %v827
        %829 = vmatmul.f32.gmra.mxu0 %v686
        %v830 = vpop.f32.mrf.mxu0
        %v831 = vadd.f32 %v730, %v830
        %832 = vmatmul.f32.gmra.mxu0 %v688
        %v833 = vpop.f32.mrf.mxu0
        %v834 = vadd.f32 %v730, %v833
        %835 = vmatmul.f32.gmra.mxu0 %v690
        %v836 = vpop.f32.mrf.mxu0
        %v837 = vadd.f32 %v730, %v836
        %838 = vmatmul.f32.gmra.mxu0 %v692
        %v839 = vpop.f32.mrf.mxu0
        %v840 = vadd.f32 %v730, %v839
        %841 = vmatmul.f32.gmra.mxu0 %v694
        %v842 = vpop.f32.mrf.mxu0
        %v843 = vadd.f32 %v730, %v842
        %844 = vdwg.mxu0
        %845 = vmatpush.msra.mxu0 %v727
        %846 = vmatpush.msra.mxu0 %v726
        %847 = vmatpush.msra.mxu0 %v725
        %848 = vmatpush.msra.mxu0 %v724
        %849 = vmatpush.msra.mxu0 %v723
        %850 = vmatpush.msra.mxu0 %v722
        %851 = vmatpush.msra.mxu0 %v721
        %852 = vmatpush.msra.mxu0 %v720
        %853 = vmatpush.msra.mxu0 %v719
        %854 = vmatpush.msra.mxu0 %v718
        %855 = vmatpush.msra.mxu0 %v717
        %856 = vmatpush.msra.mxu0 %v716
        %857 = vmatpush.msra.mxu0 %v715
        %858 = vmatpush.msra.mxu0 %v714
        %859 = vmatpush.msra.mxu0 %v713
        %860 = vmatpush.msra.mxu0 %v712
        %861 = vmatmul.f32.gmra.mxu0 %v633
        %v862 = vpop.f32.mrf.mxu0
        %v863 = vadd.f32 %v750, %v862
        %864 = vmatmul.f32.gmra.mxu0 %v635
        %v865 = vpop.f32.mrf.mxu0
        %v866 = vadd.f32 %v753, %v865
        %867 = vmatmul.f32.gmra.mxu0 %v637
        %v868 = vpop.f32.mrf.mxu0
        %v869 = vadd.f32 %v756, %v868
        %870 = vmatmul.f32.gmra.mxu0 %v639
        %v871 = vpop.f32.mrf.mxu0
        %v872 = vadd.f32 %v759, %v871
        %873 = vmatmul.f32.gmra.mxu0 %v641
        %v874 = vpop.f32.mrf.mxu0
        %v875 = vadd.f32 %v762, %v874
        %876 = vmatmul.f32.gmra.mxu0 %v643
        %v877 = vpop.f32.mrf.mxu0
        %v878 = vadd.f32 %v765, %v877
        %879 = vmatmul.f32.gmra.mxu0 %v645
        %v880 = vpop.f32.mrf.mxu0
        %v881 = vadd.f32 %v768, %v880
        %882 = vmatmul.f32.gmra.mxu0 %v647
        %v883 = vpop.f32.mrf.mxu0
        %v884 = vadd.f32 %v771, %v883
        %885 = vmatmul.f32.gmra.mxu0 %v649
        %v886 = vpop.f32.mrf.mxu0
        %v887 = vadd.f32 %v774, %v886
        %888 = vmatmul.f32.gmra.mxu0 %v651
        %v889 = vpop.f32.mrf.mxu0
        %v890 = vadd.f32 %v777, %v889
        %891 = vmatmul.f32.gmra.mxu0 %v653
        %v892 = vpop.f32.mrf.mxu0
        %v893 = vadd.f32 %v780, %v892
        %894 = vmatmul.f32.gmra.mxu0 %v655
        %v895 = vpop.f32.mrf.mxu0
        %v896 = vadd.f32 %v783, %v895
        %897 = vmatmul.f32.gmra.mxu0 %v657
        %v898 = vpop.f32.mrf.mxu0
        %v899 = vadd.f32 %v786, %v898
        %900 = vmatmul.f32.gmra.mxu0 %v659
        %v901 = vpop.f32.mrf.mxu0
        %v902 = vadd.f32 %v789, %v901
        %903 = vmatmul.f32.gmra.mxu0 %v661
        %v904 = vpop.f32.mrf.mxu0
        %v905 = vadd.f32 %v792, %v904
        %906 = vmatmul.f32.gmra.mxu0 %v663
        %v907 = vpop.f32.mrf.mxu0
        %v908 = vadd.f32 %v795, %v907
        %909 = vmatmul.f32.gmra.mxu0 %v665
        %v910 = vpop.f32.mrf.mxu0
        %v911 = vadd.f32 %v798, %v910
        %912 = vmatmul.f32.gmra.mxu0 %v667
        %v913 = vpop.f32.mrf.mxu0
        %v914 = vadd.f32 %v801, %v913
        %915 = vmatmul.f32.gmra.mxu0 %v669
        %v916 = vpop.f32.mrf.mxu0
        %v917 = vadd.f32 %v804, %v916
        %918 = vmatmul.f32.gmra.mxu0 %v671
        %v919 = vpop.f32.mrf.mxu0
        %v920 = vadd.f32 %v807, %v919
        %921 = vmatmul.f32.gmra.mxu0 %v673
        %v922 = vpop.f32.mrf.mxu0
        %v923 = vadd.f32 %v810, %v922
        %924 = vmatmul.f32.gmra.mxu0 %v675
        %v925 = vpop.f32.mrf.mxu0
        %v926 = vadd.f32 %v813, %v925
        %927 = vmatmul.f32.gmra.mxu0 %v677
        %v928 = vpop.f32.mrf.mxu0
        %v929 = vadd.f32 %v816, %v928
        %930 = vmatmul.f32.gmra.mxu0 %v679
        %v931 = vpop.f32.mrf.mxu0
        %v932 = vadd.f32 %v819, %v931
        %933 = vmatmul.f32.gmra.mxu0 %v681
        %v934 = vpop.f32.mrf.mxu0
        %v935 = vadd.f32 %v822, %v934
        %936 = vmatmul.f32.gmra.mxu0 %v683
        %v937 = vpop.f32.mrf.mxu0
        %v938 = vadd.f32 %v825, %v937
        %939 = vmatmul.f32.gmra.mxu0 %v685
        %v940 = vpop.f32.mrf.mxu0
        %v941 = vadd.f32 %v828, %v940
        %942 = vmatmul.f32.gmra.mxu0 %v687
        %v943 = vpop.f32.mrf.mxu0
        %v944 = vadd.f32 %v831, %v943
        %945 = vmatmul.f32.gmra.mxu0 %v689
        %v946 = vpop.f32.mrf.mxu0
        %v947 = vadd.f32 %v834, %v946
        %948 = vmatmul.f32.gmra.mxu0 %v691
        %v949 = vpop.f32.mrf.mxu0
        %v950 = vadd.f32 %v837, %v949
        %951 = vmatmul.f32.gmra.mxu0 %v693
        %v952 = vpop.f32.mrf.mxu0
        %v953 = vadd.f32 %v840, %v952
        %954 = vmatmul.f32.gmra.mxu0 %v695
        %v955 = vpop.f32.mrf.mxu0
        %v956 = vadd.f32 %v843, %v955
        %957 = vdwg.mxu0
        %v958 = vadd.f32 %v336, %v863
        %v959 = vadd.f32 %v337, %v866
        %v960 = vadd.f32 %v338, %v869
        %v961 = vadd.f32 %v339, %v872
        %v962 = vadd.f32 %v340, %v875
        %v963 = vadd.f32 %v341, %v878
        %v964 = vadd.f32 %v342, %v881
        %v965 = vadd.f32 %v343, %v884
        %v966 = vadd.f32 %v344, %v887
        %v967 = vadd.f32 %v345, %v890
        %v968 = vadd.f32 %v346, %v893
        %v969 = vadd.f32 %v347, %v896
        %v970 = vadd.f32 %v348, %v899
        %v971 = vadd.f32 %v349, %v902
        %v972 = vadd.f32 %v350, %v905
        %v973 = vadd.f32 %v351, %v908
        %v974 = vadd.f32 %v352, %v911
        %v975 = vadd.f32 %v353, %v914
        %v976 = vadd.f32 %v354, %v917
        %v977 = vadd.f32 %v355, %v920
        %v978 = vadd.f32 %v356, %v923
        %v979 = vadd.f32 %v357, %v926
        %v980 = vadd.f32 %v358, %v929
        %v981 = vadd.f32 %v359, %v932
        %v982 = vadd.f32 %v360, %v935
        %v983 = vadd.f32 %v361, %v938
        %v984 = vadd.f32 %v362, %v941
        %v985 = vadd.f32 %v363, %v944
        %v986 = vadd.f32 %v364, %v947
        %v987 = vadd.f32 %v365, %v950
        %v988 = vadd.f32 %v366, %v953
        %v989 = vadd.f32 %v367, %v956
        %s990 = scalar_lea.vmem [#allocation7], 256
        %v991 = vld [vmem:[%s990] sm:$0xff]
        %v992 = vld [vmem:[%s990 + $0x8] sm:$0xff]
        %v993 = vld [vmem:[%s990 + $0x10] sm:$0xff]
        %v994 = vld [vmem:[%s990 + $0x18] sm:$0xff]
        %v995 = vld [vmem:[%s990 + $0x20] sm:$0xff]
        %v996 = vld [vmem:[%s990 + $0x28] sm:$0xff]
        %v997 = vld [vmem:[%s990 + $0x30] sm:$0xff]
        %v998 = vld [vmem:[%s990 + $0x38] sm:$0xff]
        %v999 = vld [vmem:[%s990 + $0x40] sm:$0xff]
        %v1000 = vld [vmem:[%s990 + $0x48] sm:$0xff]
        %v1001 = vld [vmem:[%s990 + $0x50] sm:$0xff]
        %v1002 = vld [vmem:[%s990 + $0x58] sm:$0xff]
        %v1003 = vld [vmem:[%s990 + $0x60] sm:$0xff]
        %v1004 = vld [vmem:[%s990 + $0x68] sm:$0xff]
        %v1005 = vld [vmem:[%s990 + $0x70] sm:$0xff]
        %v1006 = vld [vmem:[%s990 + $0x78] sm:$0xff]
        %v1007 = vld [vmem:[%s990 + $0x80] sm:$0xff]
        %v1008 = vld [vmem:[%s990 + $0x88] sm:$0xff]
        %v1009 = vld [vmem:[%s990 + $0x90] sm:$0xff]
        %v1010 = vld [vmem:[%s990 + $0x98] sm:$0xff]
        %v1011 = vld [vmem:[%s990 + $0xa0] sm:$0xff]
        %v1012 = vld [vmem:[%s990 + $0xa8] sm:$0xff]
        %v1013 = vld [vmem:[%s990 + $0xb0] sm:$0xff]
        %v1014 = vld [vmem:[%s990 + $0xb8] sm:$0xff]
        %v1015 = vld [vmem:[%s990 + $0xc0] sm:$0xff]
        %v1016 = vld [vmem:[%s990 + $0xc8] sm:$0xff]
        %v1017 = vld [vmem:[%s990 + $0xd0] sm:$0xff]
        %v1018 = vld [vmem:[%s990 + $0xd8] sm:$0xff]
        %v1019 = vld [vmem:[%s990 + $0xe0] sm:$0xff]
        %v1020 = vld [vmem:[%s990 + $0xe8] sm:$0xff]
        %v1021 = vld [vmem:[%s990 + $0xf0] sm:$0xff]
        %v1022 = vld [vmem:[%s990 + $0xf8] sm:$0xff]
        %s1023 = scalar_lea.vmem %s4, 2
        %v1024 = vld [vmem:[%s1023] sm:$0x3]
        %v1026 = vperm.slane %v1024, 0
        %v1027 = vperm.slane %v1024, 1
        %1030 = vmatpush.msra.mxu0 %v1021
        %1031 = vmatpush.msra.mxu0 %v1019
        %1032 = vmatpush.msra.mxu0 %v1017
        %1033 = vmatpush.msra.mxu0 %v1015
        %1034 = vmatpush.msra.mxu0 %v1013
        %1035 = vmatpush.msra.mxu0 %v1011
        %1036 = vmatpush.msra.mxu0 %v1009
        %1037 = vmatpush.msra.mxu0 %v1007
        %1038 = vmatpush.msra.mxu0 %v1005
        %1039 = vmatpush.msra.mxu0 %v1003
        %1040 = vmatpush.msra.mxu0 %v1001
        %1041 = vmatpush.msra.mxu0 %v999
        %1042 = vmatpush.msra.mxu0 %v997
        %1043 = vmatpush.msra.mxu0 %v995
        %1044 = vmatpush.msra.mxu0 %v993
        %1045 = vmatpush.msra.mxu0 %v991
        %1046 = vmatmul.f32.gmra.mxu0 %v958
        %v1047 = vpop.f32.mrf.mxu0
        %v1048 = vadd.f32 %v1026, %v1047
        %1049 = vmatmul.f32.gmra.mxu0 %v959
        %v1050 = vpop.f32.mrf.mxu0
        %v1051 = vadd.f32 %v1026, %v1050
        %1052 = vmatmul.f32.gmra.mxu0 %v960
        %v1053 = vpop.f32.mrf.mxu0
        %v1054 = vadd.f32 %v1026, %v1053
        %1055 = vmatmul.f32.gmra.mxu0 %v961
        %v1056 = vpop.f32.mrf.mxu0
        %v1057 = vadd.f32 %v1026, %v1056
        %1058 = vmatmul.f32.gmra.mxu0 %v962
        %v1059 = vpop.f32.mrf.mxu0
        %v1060 = vadd.f32 %v1026, %v1059
        %1061 = vmatmul.f32.gmra.mxu0 %v963
        %v1062 = vpop.f32.mrf.mxu0
        %v1063 = vadd.f32 %v1026, %v1062
        %1064 = vmatmul.f32.gmra.mxu0 %v964
        %v1065 = vpop.f32.mrf.mxu0
        %v1066 = vadd.f32 %v1026, %v1065
        %1067 = vmatmul.f32.gmra.mxu0 %v965
        %v1068 = vpop.f32.mrf.mxu0
        %v1069 = vadd.f32 %v1026, %v1068
        %1070 = vmatmul.f32.gmra.mxu0 %v966
        %v1071 = vpop.f32.mrf.mxu0
        %v1072 = vadd.f32 %v1026, %v1071
        %1073 = vmatmul.f32.gmra.mxu0 %v967
        %v1074 = vpop.f32.mrf.mxu0
        %v1075 = vadd.f32 %v1026, %v1074
        %1076 = vmatmul.f32.gmra.mxu0 %v968
        %v1077 = vpop.f32.mrf.mxu0
        %v1078 = vadd.f32 %v1026, %v1077
        %1079 = vmatmul.f32.gmra.mxu0 %v969
        %v1080 = vpop.f32.mrf.mxu0
        %v1081 = vadd.f32 %v1026, %v1080
        %1082 = vmatmul.f32.gmra.mxu0 %v970
        %v1083 = vpop.f32.mrf.mxu0
        %v1084 = vadd.f32 %v1026, %v1083
        %1085 = vmatmul.f32.gmra.mxu0 %v971
        %v1086 = vpop.f32.mrf.mxu0
        %v1087 = vadd.f32 %v1026, %v1086
        %1088 = vmatmul.f32.gmra.mxu0 %v972
        %v1089 = vpop.f32.mrf.mxu0
        %v1090 = vadd.f32 %v1026, %v1089
        %1091 = vmatmul.f32.gmra.mxu0 %v973
        %v1092 = vpop.f32.mrf.mxu0
        %v1093 = vadd.f32 %v1026, %v1092
        %1094 = vmatmul.f32.gmra.mxu0 %v974
        %v1095 = vpop.f32.mrf.mxu0
        %v1096 = vadd.f32 %v1026, %v1095
        %1097 = vmatmul.f32.gmra.mxu0 %v975
        %v1098 = vpop.f32.mrf.mxu0
        %v1099 = vadd.f32 %v1026, %v1098
        %1100 = vmatmul.f32.gmra.mxu0 %v976
        %v1101 = vpop.f32.mrf.mxu0
        %v1102 = vadd.f32 %v1026, %v1101
        %1103 = vmatmul.f32.gmra.mxu0 %v977
        %v1104 = vpop.f32.mrf.mxu0
        %v1105 = vadd.f32 %v1026, %v1104
        %1106 = vmatmul.f32.gmra.mxu0 %v978
        %v1107 = vpop.f32.mrf.mxu0
        %v1108 = vadd.f32 %v1026, %v1107
        %1109 = vmatmul.f32.gmra.mxu0 %v979
        %v1110 = vpop.f32.mrf.mxu0
        %v1111 = vadd.f32 %v1026, %v1110
        %1112 = vmatmul.f32.gmra.mxu0 %v980
        %v1113 = vpop.f32.mrf.mxu0
        %v1114 = vadd.f32 %v1026, %v1113
        %1115 = vmatmul.f32.gmra.mxu0 %v981
        %v1116 = vpop.f32.mrf.mxu0
        %v1117 = vadd.f32 %v1026, %v1116
        %1118 = vmatmul.f32.gmra.mxu0 %v982
        %v1119 = vpop.f32.mrf.mxu0
        %v1120 = vadd.f32 %v1026, %v1119
        %1121 = vmatmul.f32.gmra.mxu0 %v983
        %v1122 = vpop.f32.mrf.mxu0
        %v1123 = vadd.f32 %v1026, %v1122
        %1124 = vmatmul.f32.gmra.mxu0 %v984
        %v1125 = vpop.f32.mrf.mxu0
        %v1126 = vadd.f32 %v1026, %v1125
        %1127 = vmatmul.f32.gmra.mxu0 %v985
        %v1128 = vpop.f32.mrf.mxu0
        %v1129 = vadd.f32 %v1026, %v1128
        %1130 = vmatmul.f32.gmra.mxu0 %v986
        %v1131 = vpop.f32.mrf.mxu0
        %v1132 = vadd.f32 %v1026, %v1131
        %1133 = vmatmul.f32.gmra.mxu0 %v987
        %v1134 = vpop.f32.mrf.mxu0
        %v1135 = vadd.f32 %v1026, %v1134
        %1136 = vmatmul.f32.gmra.mxu0 %v988
        %v1137 = vpop.f32.mrf.mxu0
        %v1138 = vadd.f32 %v1026, %v1137
        %1139 = vmatmul.f32.gmra.mxu0 %v989
        %v1140 = vpop.f32.mrf.mxu0
        %v1141 = vadd.f32 %v1026, %v1140
        %1142 = vdwg.mxu0
        %1143 = vmatpush.msra.mxu0 %v1022
        %1144 = vmatpush.msra.mxu0 %v1020
        %1145 = vmatpush.msra.mxu0 %v1018
        %1146 = vmatpush.msra.mxu0 %v1016
        %1147 = vmatpush.msra.mxu0 %v1014
        %1148 = vmatpush.msra.mxu0 %v1012
        %1149 = vmatpush.msra.mxu0 %v1010
        %1150 = vmatpush.msra.mxu0 %v1008
        %1151 = vmatpush.msra.mxu0 %v1006
        %1152 = vmatpush.msra.mxu0 %v1004
        %1153 = vmatpush.msra.mxu0 %v1002
        %1154 = vmatpush.msra.mxu0 %v1000
        %1155 = vmatpush.msra.mxu0 %v998
        %1156 = vmatpush.msra.mxu0 %v996
        %1157 = vmatpush.msra.mxu0 %v994
        %1158 = vmatpush.msra.mxu0 %v992
        %1159 = vmatmul.f32.gmra.mxu0 %v958
        %v1160 = vpop.f32.mrf.mxu0
        %v1161 = vadd.f32 %v1027, %v1160
        %1162 = vmatmul.f32.gmra.mxu0 %v959
        %v1163 = vpop.f32.mrf.mxu0
        %v1164 = vadd.f32 %v1027, %v1163
        %1165 = vmatmul.f32.gmra.mxu0 %v960
        %v1166 = vpop.f32.mrf.mxu0
        %v1167 = vadd.f32 %v1027, %v1166
        %1168 = vmatmul.f32.gmra.mxu0 %v961
        %v1169 = vpop.f32.mrf.mxu0
        %v1170 = vadd.f32 %v1027, %v1169
        %1171 = vmatmul.f32.gmra.mxu0 %v962
        %v1172 = vpop.f32.mrf.mxu0
        %v1173 = vadd.f32 %v1027, %v1172
        %1174 = vmatmul.f32.gmra.mxu0 %v963
        %v1175 = vpop.f32.mrf.mxu0
        %v1176 = vadd.f32 %v1027, %v1175
        %1177 = vmatmul.f32.gmra.mxu0 %v964
        %v1178 = vpop.f32.mrf.mxu0
        %v1179 = vadd.f32 %v1027, %v1178
        %1180 = vmatmul.f32.gmra.mxu0 %v965
        %v1181 = vpop.f32.mrf.mxu0
        %v1182 = vadd.f32 %v1027, %v1181
        %1183 = vmatmul.f32.gmra.mxu0 %v966
        %v1184 = vpop.f32.mrf.mxu0
        %v1185 = vadd.f32 %v1027, %v1184
        %1186 = vmatmul.f32.gmra.mxu0 %v967
        %v1187 = vpop.f32.mrf.mxu0
        %v1188 = vadd.f32 %v1027, %v1187
        %1189 = vmatmul.f32.gmra.mxu0 %v968
        %v1190 = vpop.f32.mrf.mxu0
        %v1191 = vadd.f32 %v1027, %v1190
        %1192 = vmatmul.f32.gmra.mxu0 %v969
        %v1193 = vpop.f32.mrf.mxu0
        %v1194 = vadd.f32 %v1027, %v1193
        %1195 = vmatmul.f32.gmra.mxu0 %v970
        %v1196 = vpop.f32.mrf.mxu0
        %v1197 = vadd.f32 %v1027, %v1196
        %1198 = vmatmul.f32.gmra.mxu0 %v971
        %v1199 = vpop.f32.mrf.mxu0
        %v1200 = vadd.f32 %v1027, %v1199
        %1201 = vmatmul.f32.gmra.mxu0 %v972
        %v1202 = vpop.f32.mrf.mxu0
        %v1203 = vadd.f32 %v1027, %v1202
        %1204 = vmatmul.f32.gmra.mxu0 %v973
        %v1205 = vpop.f32.mrf.mxu0
        %v1206 = vadd.f32 %v1027, %v1205
        %1207 = vmatmul.f32.gmra.mxu0 %v974
        %v1208 = vpop.f32.mrf.mxu0
        %v1209 = vadd.f32 %v1027, %v1208
        %1210 = vmatmul.f32.gmra.mxu0 %v975
        %v1211 = vpop.f32.mrf.mxu0
        %v1212 = vadd.f32 %v1027, %v1211
        %1213 = vmatmul.f32.gmra.mxu0 %v976
        %v1214 = vpop.f32.mrf.mxu0
        %v1215 = vadd.f32 %v1027, %v1214
        %1216 = vmatmul.f32.gmra.mxu0 %v977
        %v1217 = vpop.f32.mrf.mxu0
        %v1218 = vadd.f32 %v1027, %v1217
        %1219 = vmatmul.f32.gmra.mxu0 %v978
        %v1220 = vpop.f32.mrf.mxu0
        %v1221 = vadd.f32 %v1027, %v1220
        %1222 = vmatmul.f32.gmra.mxu0 %v979
        %v1223 = vpop.f32.mrf.mxu0
        %v1224 = vadd.f32 %v1027, %v1223
        %1225 = vmatmul.f32.gmra.mxu0 %v980
        %v1226 = vpop.f32.mrf.mxu0
        %v1227 = vadd.f32 %v1027, %v1226
        %1228 = vmatmul.f32.gmra.mxu0 %v981
        %v1229 = vpop.f32.mrf.mxu0
        %v1230 = vadd.f32 %v1027, %v1229
        %1231 = vmatmul.f32.gmra.mxu0 %v982
        %v1232 = vpop.f32.mrf.mxu0
        %v1233 = vadd.f32 %v1027, %v1232
        %1234 = vmatmul.f32.gmra.mxu0 %v983
        %v1235 = vpop.f32.mrf.mxu0
        %v1236 = vadd.f32 %v1027, %v1235
        %1237 = vmatmul.f32.gmra.mxu0 %v984
        %v1238 = vpop.f32.mrf.mxu0
        %v1239 = vadd.f32 %v1027, %v1238
        %1240 = vmatmul.f32.gmra.mxu0 %v985
        %v1241 = vpop.f32.mrf.mxu0
        %v1242 = vadd.f32 %v1027, %v1241
        %1243 = vmatmul.f32.gmra.mxu0 %v986
        %v1244 = vpop.f32.mrf.mxu0
        %v1245 = vadd.f32 %v1027, %v1244
        %1246 = vmatmul.f32.gmra.mxu0 %v987
        %v1247 = vpop.f32.mrf.mxu0
        %v1248 = vadd.f32 %v1027, %v1247
        %1249 = vmatmul.f32.gmra.mxu0 %v988
        %v1250 = vpop.f32.mrf.mxu0
        %v1251 = vadd.f32 %v1027, %v1250
        %1252 = vmatmul.f32.gmra.mxu0 %v989
        %v1253 = vpop.f32.mrf.mxu0
        %v1254 = vadd.f32 %v1027, %v1253
        %1255 = vdwg.mxu0
        %v1256 = vmax.f32 %v1048, 0.0
        %v1257 = vmax.f32 %v1161, 0.0
        %v1258 = vmax.f32 %v1051, 0.0
        %v1259 = vmax.f32 %v1164, 0.0
        %v1260 = vmax.f32 %v1054, 0.0
        %v1261 = vmax.f32 %v1167, 0.0
        %v1262 = vmax.f32 %v1057, 0.0
        %v1263 = vmax.f32 %v1170, 0.0
        %v1264 = vmax.f32 %v1060, 0.0
        %v1265 = vmax.f32 %v1173, 0.0
        %v1266 = vmax.f32 %v1063, 0.0
        %v1267 = vmax.f32 %v1176, 0.0
        %v1268 = vmax.f32 %v1066, 0.0
        %v1269 = vmax.f32 %v1179, 0.0
        %v1270 = vmax.f32 %v1069, 0.0
        %v1271 = vmax.f32 %v1182, 0.0
        %v1272 = vmax.f32 %v1072, 0.0
        %v1273 = vmax.f32 %v1185, 0.0
        %v1274 = vmax.f32 %v1075, 0.0
        %v1275 = vmax.f32 %v1188, 0.0
        %v1276 = vmax.f32 %v1078, 0.0
        %v1277 = vmax.f32 %v1191, 0.0
        %v1278 = vmax.f32 %v1081, 0.0
        %v1279 = vmax.f32 %v1194, 0.0
        %v1280 = vmax.f32 %v1084, 0.0
        %v1281 = vmax.f32 %v1197, 0.0
        %v1282 = vmax.f32 %v1087, 0.0
        %v1283 = vmax.f32 %v1200, 0.0
        %v1284 = vmax.f32 %v1090, 0.0
        %v1285 = vmax.f32 %v1203, 0.0
        %v1286 = vmax.f32 %v1093, 0.0
        %v1287 = vmax.f32 %v1206, 0.0
        %v1288 = vmax.f32 %v1096, 0.0
        %v1289 = vmax.f32 %v1209, 0.0
        %v1290 = vmax.f32 %v1099, 0.0
        %v1291 = vmax.f32 %v1212, 0.0
        %v1292 = vmax.f32 %v1102, 0.0
        %v1293 = vmax.f32 %v1215, 0.0
        %v1294 = vmax.f32 %v1105, 0.0
        %v1295 = vmax.f32 %v1218, 0.0
        %v1296 = vmax.f32 %v1108, 0.0
        %v1297 = vmax.f32 %v1221, 0.0
        %v1298 = vmax.f32 %v1111, 0.0
        %v1299 = vmax.f32 %v1224, 0.0
        %v1300 = vmax.f32 %v1114, 0.0
        %v1301 = vmax.f32 %v1227, 0.0
        %v1302 = vmax.f32 %v1117, 0.0
        %v1303 = vmax.f32 %v1230, 0.0
        %v1304 = vmax.f32 %v1120, 0.0
        %v1305 = vmax.f32 %v1233, 0.0
        %v1306 = vmax.f32 %v1123, 0.0
        %v1307 = vmax.f32 %v1236, 0.0
        %v1308 = vmax.f32 %v1126, 0.0
        %v1309 = vmax.f32 %v1239, 0.0
        %v1310 = vmax.f32 %v1129, 0.0
        %v1311 = vmax.f32 %v1242, 0.0
        %v1312 = vmax.f32 %v1132, 0.0
        %v1313 = vmax.f32 %v1245, 0.0
        %v1314 = vmax.f32 %v1135, 0.0
        %v1315 = vmax.f32 %v1248, 0.0
        %v1316 = vmax.f32 %v1138, 0.0
        %v1317 = vmax.f32 %v1251, 0.0
        %v1318 = vmax.f32 %v1141, 0.0
        %v1319 = vmax.f32 %v1254, 0.0
        %s1320 = scalar_lea.vmem [#allocation9], 256
        %v1321 = vld [vmem:[%s1320] sm:$0xff]
        %v1322 = vld [vmem:[%s1320 + $0x8] sm:$0xff]
        %v1323 = vld [vmem:[%s1320 + $0x10] sm:$0xff]
        %v1324 = vld [vmem:[%s1320 + $0x18] sm:$0xff]
        %v1325 = vld [vmem:[%s1320 + $0x20] sm:$0xff]
        %v1326 = vld [vmem:[%s1320 + $0x28] sm:$0xff]
        %v1327 = vld [vmem:[%s1320 + $0x30] sm:$0xff]
        %v1328 = vld [vmem:[%s1320 + $0x38] sm:$0xff]
        %v1329 = vld [vmem:[%s1320 + $0x40] sm:$0xff]
        %v1330 = vld [vmem:[%s1320 + $0x48] sm:$0xff]
        %v1331 = vld [vmem:[%s1320 + $0x50] sm:$0xff]
        %v1332 = vld [vmem:[%s1320 + $0x58] sm:$0xff]
        %v1333 = vld [vmem:[%s1320 + $0x60] sm:$0xff]
        %v1334 = vld [vmem:[%s1320 + $0x68] sm:$0xff]
        %v1335 = vld [vmem:[%s1320 + $0x70] sm:$0xff]
        %v1336 = vld [vmem:[%s1320 + $0x78] sm:$0xff]
        %v1337 = vld [vmem:[%s1320 + $0x80] sm:$0xff]
        %v1338 = vld [vmem:[%s1320 + $0x88] sm:$0xff]
        %v1339 = vld [vmem:[%s1320 + $0x90] sm:$0xff]
        %v1340 = vld [vmem:[%s1320 + $0x98] sm:$0xff]
        %v1341 = vld [vmem:[%s1320 + $0xa0] sm:$0xff]
        %v1342 = vld [vmem:[%s1320 + $0xa8] sm:$0xff]
        %v1343 = vld [vmem:[%s1320 + $0xb0] sm:$0xff]
        %v1344 = vld [vmem:[%s1320 + $0xb8] sm:$0xff]
        %v1345 = vld [vmem:[%s1320 + $0xc0] sm:$0xff]
        %v1346 = vld [vmem:[%s1320 + $0xc8] sm:$0xff]
        %v1347 = vld [vmem:[%s1320 + $0xd0] sm:$0xff]
        %v1348 = vld [vmem:[%s1320 + $0xd8] sm:$0xff]
        %v1349 = vld [vmem:[%s1320 + $0xe0] sm:$0xff]
        %v1350 = vld [vmem:[%s1320 + $0xe8] sm:$0xff]
        %v1351 = vld [vmem:[%s1320 + $0xf0] sm:$0xff]
        %v1352 = vld [vmem:[%s1320 + $0xf8] sm:$0xff]
        %s1353 = scalar_lea.vmem %s6, 1
        %v1354 = vld [vmem:[%s1353] sm:$0x1]
        %v1356 = vperm.slane %v1354, 0
        %1358 = vmatpush.msra.mxu0 %v1336
        %1359 = vmatpush.msra.mxu0 %v1335
        %1360 = vmatpush.msra.mxu0 %v1334
        %1361 = vmatpush.msra.mxu0 %v1333
        %1362 = vmatpush.msra.mxu0 %v1332
        %1363 = vmatpush.msra.mxu0 %v1331
        %1364 = vmatpush.msra.mxu0 %v1330
        %1365 = vmatpush.msra.mxu0 %v1329
        %1366 = vmatpush.msra.mxu0 %v1328
        %1367 = vmatpush.msra.mxu0 %v1327
        %1368 = vmatpush.msra.mxu0 %v1326
        %1369 = vmatpush.msra.mxu0 %v1325
        %1370 = vmatpush.msra.mxu0 %v1324
        %1371 = vmatpush.msra.mxu0 %v1323
        %1372 = vmatpush.msra.mxu0 %v1322
        %1373 = vmatpush.msra.mxu0 %v1321
        %1374 = vmatmul.f32.gmra.mxu0 %v1256
        %v1375 = vpop.f32.mrf.mxu0
        %v1376 = vadd.f32 %v1356, %v1375
        %1377 = vmatmul.f32.gmra.mxu0 %v1258
        %v1378 = vpop.f32.mrf.mxu0
        %v1379 = vadd.f32 %v1356, %v1378
        %1380 = vmatmul.f32.gmra.mxu0 %v1260
        %v1381 = vpop.f32.mrf.mxu0
        %v1382 = vadd.f32 %v1356, %v1381
        %1383 = vmatmul.f32.gmra.mxu0 %v1262
        %v1384 = vpop.f32.mrf.mxu0
        %v1385 = vadd.f32 %v1356, %v1384
        %1386 = vmatmul.f32.gmra.mxu0 %v1264
        %v1387 = vpop.f32.mrf.mxu0
        %v1388 = vadd.f32 %v1356, %v1387
        %1389 = vmatmul.f32.gmra.mxu0 %v1266
        %v1390 = vpop.f32.mrf.mxu0
        %v1391 = vadd.f32 %v1356, %v1390
        %1392 = vmatmul.f32.gmra.mxu0 %v1268
        %v1393 = vpop.f32.mrf.mxu0
        %v1394 = vadd.f32 %v1356, %v1393
        %1395 = vmatmul.f32.gmra.mxu0 %v1270
        %v1396 = vpop.f32.mrf.mxu0
        %v1397 = vadd.f32 %v1356, %v1396
        %1398 = vmatmul.f32.gmra.mxu0 %v1272
        %v1399 = vpop.f32.mrf.mxu0
        %v1400 = vadd.f32 %v1356, %v1399
        %1401 = vmatmul.f32.gmra.mxu0 %v1274
        %v1402 = vpop.f32.mrf.mxu0
        %v1403 = vadd.f32 %v1356, %v1402
        %1404 = vmatmul.f32.gmra.mxu0 %v1276
        %v1405 = vpop.f32.mrf.mxu0
        %v1406 = vadd.f32 %v1356, %v1405
        %1407 = vmatmul.f32.gmra.mxu0 %v1278
        %v1408 = vpop.f32.mrf.mxu0
        %v1409 = vadd.f32 %v1356, %v1408
        %1410 = vmatmul.f32.gmra.mxu0 %v1280
        %v1411 = vpop.f32.mrf.mxu0
        %v1412 = vadd.f32 %v1356, %v1411
        %1413 = vmatmul.f32.gmra.mxu0 %v1282
        %v1414 = vpop.f32.mrf.mxu0
        %v1415 = vadd.f32 %v1356, %v1414
        %1416 = vmatmul.f32.gmra.mxu0 %v1284
        %v1417 = vpop.f32.mrf.mxu0
        %v1418 = vadd.f32 %v1356, %v1417
        %1419 = vmatmul.f32.gmra.mxu0 %v1286
        %v1420 = vpop.f32.mrf.mxu0
        %v1421 = vadd.f32 %v1356, %v1420
        %1422 = vmatmul.f32.gmra.mxu0 %v1288
        %v1423 = vpop.f32.mrf.mxu0
        %v1424 = vadd.f32 %v1356, %v1423
        %1425 = vmatmul.f32.gmra.mxu0 %v1290
        %v1426 = vpop.f32.mrf.mxu0
        %v1427 = vadd.f32 %v1356, %v1426
        %1428 = vmatmul.f32.gmra.mxu0 %v1292
        %v1429 = vpop.f32.mrf.mxu0
        %v1430 = vadd.f32 %v1356, %v1429
        %1431 = vmatmul.f32.gmra.mxu0 %v1294
        %v1432 = vpop.f32.mrf.mxu0
        %v1433 = vadd.f32 %v1356, %v1432
        %1434 = vmatmul.f32.gmra.mxu0 %v1296
        %v1435 = vpop.f32.mrf.mxu0
        %v1436 = vadd.f32 %v1356, %v1435
        %1437 = vmatmul.f32.gmra.mxu0 %v1298
        %v1438 = vpop.f32.mrf.mxu0
        %v1439 = vadd.f32 %v1356, %v1438
        %1440 = vmatmul.f32.gmra.mxu0 %v1300
        %v1441 = vpop.f32.mrf.mxu0
        %v1442 = vadd.f32 %v1356, %v1441
        %1443 = vmatmul.f32.gmra.mxu0 %v1302
        %v1444 = vpop.f32.mrf.mxu0
        %v1445 = vadd.f32 %v1356, %v1444
        %1446 = vmatmul.f32.gmra.mxu0 %v1304
        %v1447 = vpop.f32.mrf.mxu0
        %v1448 = vadd.f32 %v1356, %v1447
        %1449 = vmatmul.f32.gmra.mxu0 %v1306
        %v1450 = vpop.f32.mrf.mxu0
        %v1451 = vadd.f32 %v1356, %v1450
        %1452 = vmatmul.f32.gmra.mxu0 %v1308
        %v1453 = vpop.f32.mrf.mxu0
        %v1454 = vadd.f32 %v1356, %v1453
        %1455 = vmatmul.f32.gmra.mxu0 %v1310
        %v1456 = vpop.f32.mrf.mxu0
        %v1457 = vadd.f32 %v1356, %v1456
        %1458 = vmatmul.f32.gmra.mxu0 %v1312
        %v1459 = vpop.f32.mrf.mxu0
        %v1460 = vadd.f32 %v1356, %v1459
        %1461 = vmatmul.f32.gmra.mxu0 %v1314
        %v1462 = vpop.f32.mrf.mxu0
        %v1463 = vadd.f32 %v1356, %v1462
        %1464 = vmatmul.f32.gmra.mxu0 %v1316
        %v1465 = vpop.f32.mrf.mxu0
        %v1466 = vadd.f32 %v1356, %v1465
        %1467 = vmatmul.f32.gmra.mxu0 %v1318
        %v1468 = vpop.f32.mrf.mxu0
        %v1469 = vadd.f32 %v1356, %v1468
        %1470 = vdwg.mxu0
        %1471 = vmatpush.msra.mxu0 %v1352
        %1472 = vmatpush.msra.mxu0 %v1351
        %1473 = vmatpush.msra.mxu0 %v1350
        %1474 = vmatpush.msra.mxu0 %v1349
        %1475 = vmatpush.msra.mxu0 %v1348
        %1476 = vmatpush.msra.mxu0 %v1347
        %1477 = vmatpush.msra.mxu0 %v1346
        %1478 = vmatpush.msra.mxu0 %v1345
        %1479 = vmatpush.msra.mxu0 %v1344
        %1480 = vmatpush.msra.mxu0 %v1343
        %1481 = vmatpush.msra.mxu0 %v1342
        %1482 = vmatpush.msra.mxu0 %v1341
        %1483 = vmatpush.msra.mxu0 %v1340
        %1484 = vmatpush.msra.mxu0 %v1339
        %1485 = vmatpush.msra.mxu0 %v1338
        %1486 = vmatpush.msra.mxu0 %v1337
        %1487 = vmatmul.f32.gmra.mxu0 %v1257
        %v1488 = vpop.f32.mrf.mxu0
        %v1489 = vadd.f32 %v1376, %v1488
        %1490 = vmatmul.f32.gmra.mxu0 %v1259
        %v1491 = vpop.f32.mrf.mxu0
        %v1492 = vadd.f32 %v1379, %v1491
        %1493 = vmatmul.f32.gmra.mxu0 %v1261
        %v1494 = vpop.f32.mrf.mxu0
        %v1495 = vadd.f32 %v1382, %v1494
        %1496 = vmatmul.f32.gmra.mxu0 %v1263
        %v1497 = vpop.f32.mrf.mxu0
        %v1498 = vadd.f32 %v1385, %v1497
        %1499 = vmatmul.f32.gmra.mxu0 %v1265
        %v1500 = vpop.f32.mrf.mxu0
        %v1501 = vadd.f32 %v1388, %v1500
        %1502 = vmatmul.f32.gmra.mxu0 %v1267
        %v1503 = vpop.f32.mrf.mxu0
        %v1504 = vadd.f32 %v1391, %v1503
        %1505 = vmatmul.f32.gmra.mxu0 %v1269
        %v1506 = vpop.f32.mrf.mxu0
        %v1507 = vadd.f32 %v1394, %v1506
        %1508 = vmatmul.f32.gmra.mxu0 %v1271
        %v1509 = vpop.f32.mrf.mxu0
        %v1510 = vadd.f32 %v1397, %v1509
        %1511 = vmatmul.f32.gmra.mxu0 %v1273
        %v1512 = vpop.f32.mrf.mxu0
        %v1513 = vadd.f32 %v1400, %v1512
        %1514 = vmatmul.f32.gmra.mxu0 %v1275
        %v1515 = vpop.f32.mrf.mxu0
        %v1516 = vadd.f32 %v1403, %v1515
        %1517 = vmatmul.f32.gmra.mxu0 %v1277
        %v1518 = vpop.f32.mrf.mxu0
        %v1519 = vadd.f32 %v1406, %v1518
        %1520 = vmatmul.f32.gmra.mxu0 %v1279
        %v1521 = vpop.f32.mrf.mxu0
        %v1522 = vadd.f32 %v1409, %v1521
        %1523 = vmatmul.f32.gmra.mxu0 %v1281
        %v1524 = vpop.f32.mrf.mxu0
        %v1525 = vadd.f32 %v1412, %v1524
        %1526 = vmatmul.f32.gmra.mxu0 %v1283
        %v1527 = vpop.f32.mrf.mxu0
        %v1528 = vadd.f32 %v1415, %v1527
        %1529 = vmatmul.f32.gmra.mxu0 %v1285
        %v1530 = vpop.f32.mrf.mxu0
        %v1531 = vadd.f32 %v1418, %v1530
        %1532 = vmatmul.f32.gmra.mxu0 %v1287
        %v1533 = vpop.f32.mrf.mxu0
        %v1534 = vadd.f32 %v1421, %v1533
        %1535 = vmatmul.f32.gmra.mxu0 %v1289
        %v1536 = vpop.f32.mrf.mxu0
        %v1537 = vadd.f32 %v1424, %v1536
        %1538 = vmatmul.f32.gmra.mxu0 %v1291
        %v1539 = vpop.f32.mrf.mxu0
        %v1540 = vadd.f32 %v1427, %v1539
        %1541 = vmatmul.f32.gmra.mxu0 %v1293
        %v1542 = vpop.f32.mrf.mxu0
        %v1543 = vadd.f32 %v1430, %v1542
        %1544 = vmatmul.f32.gmra.mxu0 %v1295
        %v1545 = vpop.f32.mrf.mxu0
        %v1546 = vadd.f32 %v1433, %v1545
        %1547 = vmatmul.f32.gmra.mxu0 %v1297
        %v1548 = vpop.f32.mrf.mxu0
        %v1549 = vadd.f32 %v1436, %v1548
        %1550 = vmatmul.f32.gmra.mxu0 %v1299
        %v1551 = vpop.f32.mrf.mxu0
        %v1552 = vadd.f32 %v1439, %v1551
        %1553 = vmatmul.f32.gmra.mxu0 %v1301
        %v1554 = vpop.f32.mrf.mxu0
        %v1555 = vadd.f32 %v1442, %v1554
        %1556 = vmatmul.f32.gmra.mxu0 %v1303
        %v1557 = vpop.f32.mrf.mxu0
        %v1558 = vadd.f32 %v1445, %v1557
        %1559 = vmatmul.f32.gmra.mxu0 %v1305
        %v1560 = vpop.f32.mrf.mxu0
        %v1561 = vadd.f32 %v1448, %v1560
        %1562 = vmatmul.f32.gmra.mxu0 %v1307
        %v1563 = vpop.f32.mrf.mxu0
        %v1564 = vadd.f32 %v1451, %v1563
        %1565 = vmatmul.f32.gmra.mxu0 %v1309
        %v1566 = vpop.f32.mrf.mxu0
        %v1567 = vadd.f32 %v1454, %v1566
        %1568 = vmatmul.f32.gmra.mxu0 %v1311
        %v1569 = vpop.f32.mrf.mxu0
        %v1570 = vadd.f32 %v1457, %v1569
        %1571 = vmatmul.f32.gmra.mxu0 %v1313
        %v1572 = vpop.f32.mrf.mxu0
        %v1573 = vadd.f32 %v1460, %v1572
        %1574 = vmatmul.f32.gmra.mxu0 %v1315
        %v1575 = vpop.f32.mrf.mxu0
        %v1576 = vadd.f32 %v1463, %v1575
        %1577 = vmatmul.f32.gmra.mxu0 %v1317
        %v1578 = vpop.f32.mrf.mxu0
        %v1579 = vadd.f32 %v1466, %v1578
        %1580 = vmatmul.f32.gmra.mxu0 %v1319
        %v1581 = vpop.f32.mrf.mxu0
        %v1582 = vadd.f32 %v1469, %v1581
        %1583 = vdwg.mxu0
        %v1584 = vadd.f32 %v958, %v1489
        %v1585 = vadd.f32 %v959, %v1492
        %v1586 = vadd.f32 %v960, %v1495
        %v1587 = vadd.f32 %v961, %v1498
        %v1588 = vadd.f32 %v962, %v1501
        %v1589 = vadd.f32 %v963, %v1504
        %v1590 = vadd.f32 %v964, %v1507
        %v1591 = vadd.f32 %v965, %v1510
        %v1592 = vadd.f32 %v966, %v1513
        %v1593 = vadd.f32 %v967, %v1516
        %v1594 = vadd.f32 %v968, %v1519
        %v1595 = vadd.f32 %v969, %v1522
        %v1596 = vadd.f32 %v970, %v1525
        %v1597 = vadd.f32 %v971, %v1528
        %v1598 = vadd.f32 %v972, %v1531
        %v1599 = vadd.f32 %v973, %v1534
        %v1600 = vadd.f32 %v974, %v1537
        %v1601 = vadd.f32 %v975, %v1540
        %v1602 = vadd.f32 %v976, %v1543
        %v1603 = vadd.f32 %v977, %v1546
        %v1604 = vadd.f32 %v978, %v1549
        %v1605 = vadd.f32 %v979, %v1552
        %v1606 = vadd.f32 %v980, %v1555
        %v1607 = vadd.f32 %v981, %v1558
        %v1608 = vadd.f32 %v982, %v1561
        %v1609 = vadd.f32 %v983, %v1564
        %v1610 = vadd.f32 %v984, %v1567
        %v1611 = vadd.f32 %v985, %v1570
        %v1612 = vadd.f32 %v986, %v1573
        %v1613 = vadd.f32 %v987, %v1576
        %v1614 = vadd.f32 %v988, %v1579
        %v1615 = vadd.f32 %v989, %v1582
        %1616 = vadd.xlane.f32.xlu0 %v1584
        %v1617 = vpop.xlane.xlu0 %1616
        %1618 = vadd.xlane.f32.xlu0 %v1585
        %v1619 = vpop.xlane.xlu0 %1618
        %1620 = vadd.xlane.f32.xlu0 %v1586
        %v1621 = vpop.xlane.xlu0 %1620
        %1622 = vadd.xlane.f32.xlu0 %v1587
        %v1623 = vpop.xlane.xlu0 %1622
        %1624 = vadd.xlane.f32.xlu0 %v1588
        %v1625 = vpop.xlane.xlu0 %1624
        %1626 = vadd.xlane.f32.xlu0 %v1589
        %v1627 = vpop.xlane.xlu0 %1626
        %1628 = vadd.xlane.f32.xlu0 %v1590
        %v1629 = vpop.xlane.xlu0 %1628
        %1630 = vadd.xlane.f32.xlu0 %v1591
        %v1631 = vpop.xlane.xlu0 %1630
        %1632 = vadd.xlane.f32.xlu0 %v1592
        %v1633 = vpop.xlane.xlu0 %1632
        %1634 = vadd.xlane.f32.xlu0 %v1593
        %v1635 = vpop.xlane.xlu0 %1634
        %1636 = vadd.xlane.f32.xlu0 %v1594
        %v1637 = vpop.xlane.xlu0 %1636
        %1638 = vadd.xlane.f32.xlu0 %v1595
        %v1639 = vpop.xlane.xlu0 %1638
        %1640 = vadd.xlane.f32.xlu0 %v1596
        %v1641 = vpop.xlane.xlu0 %1640
        %1642 = vadd.xlane.f32.xlu0 %v1597
        %v1643 = vpop.xlane.xlu0 %1642
        %1644 = vadd.xlane.f32.xlu0 %v1598
        %v1645 = vpop.xlane.xlu0 %1644
        %1646 = vadd.xlane.f32.xlu0 %v1599
        %v1647 = vpop.xlane.xlu0 %1646
        %1648 = vadd.xlane.f32.xlu0 %v1600
        %v1649 = vpop.xlane.xlu0 %1648
        %1650 = vadd.xlane.f32.xlu0 %v1601
        %v1651 = vpop.xlane.xlu0 %1650
        %1652 = vadd.xlane.f32.xlu0 %v1602
        %v1653 = vpop.xlane.xlu0 %1652
        %1654 = vadd.xlane.f32.xlu0 %v1603
        %v1655 = vpop.xlane.xlu0 %1654
        %1656 = vadd.xlane.f32.xlu0 %v1604
        %v1657 = vpop.xlane.xlu0 %1656
        %1658 = vadd.xlane.f32.xlu0 %v1605
        %v1659 = vpop.xlane.xlu0 %1658
        %1660 = vadd.xlane.f32.xlu0 %v1606
        %v1661 = vpop.xlane.xlu0 %1660
        %1662 = vadd.xlane.f32.xlu0 %v1607
        %v1663 = vpop.xlane.xlu0 %1662
        %1664 = vadd.xlane.f32.xlu0 %v1608
        %v1665 = vpop.xlane.xlu0 %1664
        %1666 = vadd.xlane.f32.xlu0 %v1609
        %v1667 = vpop.xlane.xlu0 %1666
        %1668 = vadd.xlane.f32.xlu0 %v1610
        %v1669 = vpop.xlane.xlu0 %1668
        %1670 = vadd.xlane.f32.xlu0 %v1611
        %v1671 = vpop.xlane.xlu0 %1670
        %1672 = vadd.xlane.f32.xlu0 %v1612
        %v1673 = vpop.xlane.xlu0 %1672
        %1674 = vadd.xlane.f32.xlu0 %v1613
        %v1675 = vpop.xlane.xlu0 %1674
        %1676 = vadd.xlane.f32.xlu0 %v1614
        %v1677 = vpop.xlane.xlu0 %1676
        %1678 = vadd.xlane.f32.xlu0 %v1615
        %v1679 = vpop.xlane.xlu0 %1678
        %v1680 = vrcp.pop 128.0
        %v1681 = vmul.f32 128.0, %v1680
        %v1682 = vsub.f32 1.0, %v1681
        %v1683 = vmul.f32 %v1680, %v1682
        %v1684 = vadd.f32 %v1680, %v1683
        %vm1685 = vweird.f32 %v1680
        %v1686 = vsel %vm1685, %v1680, %v1684
        %v1687 = vmul.f32 %v1617, %v1686
        %v1688 = vmul.f32 %v1619, %v1686
        %v1689 = vmul.f32 %v1621, %v1686
        %v1690 = vmul.f32 %v1623, %v1686
        %v1691 = vmul.f32 %v1625, %v1686
        %v1692 = vmul.f32 %v1627, %v1686
        %v1693 = vmul.f32 %v1629, %v1686
        %v1694 = vmul.f32 %v1631, %v1686
        %v1695 = vmul.f32 %v1633, %v1686
        %v1696 = vmul.f32 %v1635, %v1686
        %v1697 = vmul.f32 %v1637, %v1686
        %v1698 = vmul.f32 %v1639, %v1686
        %v1699 = vmul.f32 %v1641, %v1686
        %v1700 = vmul.f32 %v1643, %v1686
        %v1701 = vmul.f32 %v1645, %v1686
        %v1702 = vmul.f32 %v1647, %v1686
        %v1703 = vmul.f32 %v1649, %v1686
        %v1704 = vmul.f32 %v1651, %v1686
        %v1705 = vmul.f32 %v1653, %v1686
        %v1706 = vmul.f32 %v1655, %v1686
        %v1707 = vmul.f32 %v1657, %v1686
        %v1708 = vmul.f32 %v1659, %v1686
        %v1709 = vmul.f32 %v1661, %v1686
        %v1710 = vmul.f32 %v1663, %v1686
        %v1711 = vmul.f32 %v1665, %v1686
        %v1712 = vmul.f32 %v1667, %v1686
        %v1713 = vmul.f32 %v1669, %v1686
        %v1714 = vmul.f32 %v1671, %v1686
        %v1715 = vmul.f32 %v1673, %v1686
        %v1716 = vmul.f32 %v1675, %v1686
        %v1717 = vmul.f32 %v1677, %v1686
        %v1718 = vmul.f32 %v1679, %v1686
        %v1719 = vsub.f32 %v1584, %v1687
        %v1720 = vsub.f32 %v1585, %v1688
        %v1721 = vsub.f32 %v1586, %v1689
        %v1722 = vsub.f32 %v1587, %v1690
        %v1723 = vsub.f32 %v1588, %v1691
        %v1724 = vsub.f32 %v1589, %v1692
        %v1725 = vsub.f32 %v1590, %v1693
        %v1726 = vsub.f32 %v1591, %v1694
        %v1727 = vsub.f32 %v1592, %v1695
        %v1728 = vsub.f32 %v1593, %v1696
        %v1729 = vsub.f32 %v1594, %v1697
        %v1730 = vsub.f32 %v1595, %v1698
        %v1731 = vsub.f32 %v1596, %v1699
        %v1732 = vsub.f32 %v1597, %v1700
        %v1733 = vsub.f32 %v1598, %v1701
        %v1734 = vsub.f32 %v1599, %v1702
        %v1735 = vsub.f32 %v1600, %v1703
        %v1736 = vsub.f32 %v1601, %v1704
        %v1737 = vsub.f32 %v1602, %v1705
        %v1738 = vsub.f32 %v1603, %v1706
        %v1739 = vsub.f32 %v1604, %v1707
        %v1740 = vsub.f32 %v1605, %v1708
        %v1741 = vsub.f32 %v1606, %v1709
        %v1742 = vsub.f32 %v1607, %v1710
        %v1743 = vsub.f32 %v1608, %v1711
        %v1744 = vsub.f32 %v1609, %v1712
        %v1745 = vsub.f32 %v1610, %v1713
        %v1746 = vsub.f32 %v1611, %v1714
        %v1747 = vsub.f32 %v1612, %v1715
        %v1748 = vsub.f32 %v1613, %v1716
        %v1749 = vsub.f32 %v1614, %v1717
        %v1750 = vsub.f32 %v1615, %v1718
        %v1751 = vmul.f32 %v1719, %v1719
        %v1752 = vmul.f32 %v1720, %v1720
        %v1753 = vmul.f32 %v1721, %v1721
        %v1754 = vmul.f32 %v1722, %v1722
        %v1755 = vmul.f32 %v1723, %v1723
        %v1756 = vmul.f32 %v1724, %v1724
        %v1757 = vmul.f32 %v1725, %v1725
        %v1758 = vmul.f32 %v1726, %v1726
        %v1759 = vmul.f32 %v1727, %v1727
        %v1760 = vmul.f32 %v1728, %v1728
        %v1761 = vmul.f32 %v1729, %v1729
        %v1762 = vmul.f32 %v1730, %v1730
        %v1763 = vmul.f32 %v1731, %v1731
        %v1764 = vmul.f32 %v1732, %v1732
        %v1765 = vmul.f32 %v1733, %v1733
        %v1766 = vmul.f32 %v1734, %v1734
        %v1767 = vmul.f32 %v1735, %v1735
        %v1768 = vmul.f32 %v1736, %v1736
        %v1769 = vmul.f32 %v1737, %v1737
        %v1770 = vmul.f32 %v1738, %v1738
        %v1771 = vmul.f32 %v1739, %v1739
        %v1772 = vmul.f32 %v1740, %v1740
        %v1773 = vmul.f32 %v1741, %v1741
        %v1774 = vmul.f32 %v1742, %v1742
        %v1775 = vmul.f32 %v1743, %v1743
        %v1776 = vmul.f32 %v1744, %v1744
        %v1777 = vmul.f32 %v1745, %v1745
        %v1778 = vmul.f32 %v1746, %v1746
        %v1779 = vmul.f32 %v1747, %v1747
        %v1780 = vmul.f32 %v1748, %v1748
        %v1781 = vmul.f32 %v1749, %v1749
        %v1782 = vmul.f32 %v1750, %v1750
        %1783 = vadd.xlane.f32.xlu0 %v1751
        %v1784 = vpop.xlane.xlu0 %1783
        %1785 = vadd.xlane.f32.xlu0 %v1752
        %v1786 = vpop.xlane.xlu0 %1785
        %1787 = vadd.xlane.f32.xlu0 %v1753
        %v1788 = vpop.xlane.xlu0 %1787
        %1789 = vadd.xlane.f32.xlu0 %v1754
        %v1790 = vpop.xlane.xlu0 %1789
        %1791 = vadd.xlane.f32.xlu0 %v1755
        %v1792 = vpop.xlane.xlu0 %1791
        %1793 = vadd.xlane.f32.xlu0 %v1756
        %v1794 = vpop.xlane.xlu0 %1793
        %1795 = vadd.xlane.f32.xlu0 %v1757
        %v1796 = vpop.xlane.xlu0 %1795
        %1797 = vadd.xlane.f32.xlu0 %v1758
        %v1798 = vpop.xlane.xlu0 %1797
        %1799 = vadd.xlane.f32.xlu0 %v1759
        %v1800 = vpop.xlane.xlu0 %1799
        %1801 = vadd.xlane.f32.xlu0 %v1760
        %v1802 = vpop.xlane.xlu0 %1801
        %1803 = vadd.xlane.f32.xlu0 %v1761
        %v1804 = vpop.xlane.xlu0 %1803
        %1805 = vadd.xlane.f32.xlu0 %v1762
        %v1806 = vpop.xlane.xlu0 %1805
        %1807 = vadd.xlane.f32.xlu0 %v1763
        %v1808 = vpop.xlane.xlu0 %1807
        %1809 = vadd.xlane.f32.xlu0 %v1764
        %v1810 = vpop.xlane.xlu0 %1809
        %1811 = vadd.xlane.f32.xlu0 %v1765
        %v1812 = vpop.xlane.xlu0 %1811
        %1813 = vadd.xlane.f32.xlu0 %v1766
        %v1814 = vpop.xlane.xlu0 %1813
        %1815 = vadd.xlane.f32.xlu0 %v1767
        %v1816 = vpop.xlane.xlu0 %1815
        %1817 = vadd.xlane.f32.xlu0 %v1768
        %v1818 = vpop.xlane.xlu0 %1817
        %1819 = vadd.xlane.f32.xlu0 %v1769
        %v1820 = vpop.xlane.xlu0 %1819
        %1821 = vadd.xlane.f32.xlu0 %v1770
        %v1822 = vpop.xlane.xlu0 %1821
        %1823 = vadd.xlane.f32.xlu0 %v1771
        %v1824 = vpop.xlane.xlu0 %1823
        %1825 = vadd.xlane.f32.xlu0 %v1772
        %v1826 = vpop.xlane.xlu0 %1825
        %1827 = vadd.xlane.f32.xlu0 %v1773
        %v1828 = vpop.xlane.xlu0 %1827
        %1829 = vadd.xlane.f32.xlu0 %v1774
        %v1830 = vpop.xlane.xlu0 %1829
        %1831 = vadd.xlane.f32.xlu0 %v1775
        %v1832 = vpop.xlane.xlu0 %1831
        %1833 = vadd.xlane.f32.xlu0 %v1776
        %v1834 = vpop.xlane.xlu0 %1833
        %1835 = vadd.xlane.f32.xlu0 %v1777
        %v1836 = vpop.xlane.xlu0 %1835
        %1837 = vadd.xlane.f32.xlu0 %v1778
        %v1838 = vpop.xlane.xlu0 %1837
        %1839 = vadd.xlane.f32.xlu0 %v1779
        %v1840 = vpop.xlane.xlu0 %1839
        %1841 = vadd.xlane.f32.xlu0 %v1780
        %v1842 = vpop.xlane.xlu0 %1841
        %1843 = vadd.xlane.f32.xlu0 %v1781
        %v1844 = vpop.xlane.xlu0 %1843
        %1845 = vadd.xlane.f32.xlu0 %v1782
        %v1846 = vpop.xlane.xlu0 %1845
        %v1847 = vrcp.pop 127.0
        %v1848 = vmul.f32 127.0, %v1847
        %v1849 = vsub.f32 1.0, %v1848
        %v1850 = vmul.f32 %v1847, %v1849
        %v1851 = vadd.f32 %v1847, %v1850
        %vm1852 = vweird.f32 %v1847
        %v1853 = vsel %vm1852, %v1847, %v1851
        %v1854 = vmul.f32 %v1784, %v1853
        %v1855 = vmul.f32 %v1786, %v1853
        %v1856 = vmul.f32 %v1788, %v1853
        %v1857 = vmul.f32 %v1790, %v1853
        %v1858 = vmul.f32 %v1792, %v1853
        %v1859 = vmul.f32 %v1794, %v1853
        %v1860 = vmul.f32 %v1796, %v1853
        %v1861 = vmul.f32 %v1798, %v1853
        %v1862 = vmul.f32 %v1800, %v1853
        %v1863 = vmul.f32 %v1802, %v1853
        %v1864 = vmul.f32 %v1804, %v1853
        %v1865 = vmul.f32 %v1806, %v1853
        %v1866 = vmul.f32 %v1808, %v1853
        %v1867 = vmul.f32 %v1810, %v1853
        %v1868 = vmul.f32 %v1812, %v1853
        %v1869 = vmul.f32 %v1814, %v1853
        %v1870 = vmul.f32 %v1816, %v1853
        %v1871 = vmul.f32 %v1818, %v1853
        %v1872 = vmul.f32 %v1820, %v1853
        %v1873 = vmul.f32 %v1822, %v1853
        %v1874 = vmul.f32 %v1824, %v1853
        %v1875 = vmul.f32 %v1826, %v1853
        %v1876 = vmul.f32 %v1828, %v1853
        %v1877 = vmul.f32 %v1830, %v1853
        %v1878 = vmul.f32 %v1832, %v1853
        %v1879 = vmul.f32 %v1834, %v1853
        %v1880 = vmul.f32 %v1836, %v1853
        %v1881 = vmul.f32 %v1838, %v1853
        %v1882 = vmul.f32 %v1840, %v1853
        %v1883 = vmul.f32 %v1842, %v1853
        %v1884 = vmul.f32 %v1844, %v1853
        %v1885 = vmul.f32 %v1846, %v1853
        %s1886 = sld [smem:[#allocation2]]
        %v1887 = vrsqrt.pop %v1854
        %v1888 = vmul.f32 %v1887, %v1854
        %v1889 = vmul.f32 %v1888, %v1887
        %v1890 = vmul.f32 0.5, %v1889
        %v1891 = vsub.f32 1.5, %v1890
        %v1892 = vmul.f32 %v1887, %v1891
        %v1893 = vmul.f32 %v1854, %v1892
        %vm1894 = vcmp.eq.f32.partialorder %v1854, inf
        %v1895 = vsel %vm1894, %v1854, %v1893
        %vm1896 = vcmp.eq.f32.partialorder %v1854, 0.0
        %v1897 = vand.u32 %v1854, 2147483648
        %v1898 = vsel %vm1896, %v1897, %v1895
        %v1899 = vrsqrt.pop %v1855
        %v1900 = vmul.f32 %v1899, %v1855
        %v1901 = vmul.f32 %v1900, %v1899
        %v1902 = vmul.f32 0.5, %v1901
        %v1903 = vsub.f32 1.5, %v1902
        %v1904 = vmul.f32 %v1899, %v1903
        %v1905 = vmul.f32 %v1855, %v1904
        %vm1906 = vcmp.eq.f32.partialorder %v1855, inf
        %v1907 = vsel %vm1906, %v1855, %v1905
        %vm1908 = vcmp.eq.f32.partialorder %v1855, 0.0
        %v1909 = vand.u32 %v1855, 2147483648
        %v1910 = vsel %vm1908, %v1909, %v1907
        %v1911 = vrsqrt.pop %v1856
        %v1912 = vmul.f32 %v1911, %v1856
        %v1913 = vmul.f32 %v1912, %v1911
        %v1914 = vmul.f32 0.5, %v1913
        %v1915 = vsub.f32 1.5, %v1914
        %v1916 = vmul.f32 %v1911, %v1915
        %v1917 = vmul.f32 %v1856, %v1916
        %vm1918 = vcmp.eq.f32.partialorder %v1856, inf
        %v1919 = vsel %vm1918, %v1856, %v1917
        %vm1920 = vcmp.eq.f32.partialorder %v1856, 0.0
        %v1921 = vand.u32 %v1856, 2147483648
        %v1922 = vsel %vm1920, %v1921, %v1919
        %v1923 = vrsqrt.pop %v1857
        %v1924 = vmul.f32 %v1923, %v1857
        %v1925 = vmul.f32 %v1924, %v1923
        %v1926 = vmul.f32 0.5, %v1925
        %v1927 = vsub.f32 1.5, %v1926
        %v1928 = vmul.f32 %v1923, %v1927
        %v1929 = vmul.f32 %v1857, %v1928
        %vm1930 = vcmp.eq.f32.partialorder %v1857, inf
        %v1931 = vsel %vm1930, %v1857, %v1929
        %vm1932 = vcmp.eq.f32.partialorder %v1857, 0.0
        %v1933 = vand.u32 %v1857, 2147483648
        %v1934 = vsel %vm1932, %v1933, %v1931
        %v1935 = vrsqrt.pop %v1858
        %v1936 = vmul.f32 %v1935, %v1858
        %v1937 = vmul.f32 %v1936, %v1935
        %v1938 = vmul.f32 0.5, %v1937
        %v1939 = vsub.f32 1.5, %v1938
        %v1940 = vmul.f32 %v1935, %v1939
        %v1941 = vmul.f32 %v1858, %v1940
        %vm1942 = vcmp.eq.f32.partialorder %v1858, inf
        %v1943 = vsel %vm1942, %v1858, %v1941
        %vm1944 = vcmp.eq.f32.partialorder %v1858, 0.0
        %v1945 = vand.u32 %v1858, 2147483648
        %v1946 = vsel %vm1944, %v1945, %v1943
        %v1947 = vrsqrt.pop %v1859
        %v1948 = vmul.f32 %v1947, %v1859
        %v1949 = vmul.f32 %v1948, %v1947
        %v1950 = vmul.f32 0.5, %v1949
        %v1951 = vsub.f32 1.5, %v1950
        %v1952 = vmul.f32 %v1947, %v1951
        %v1953 = vmul.f32 %v1859, %v1952
        %vm1954 = vcmp.eq.f32.partialorder %v1859, inf
        %v1955 = vsel %vm1954, %v1859, %v1953
        %vm1956 = vcmp.eq.f32.partialorder %v1859, 0.0
        %v1957 = vand.u32 %v1859, 2147483648
        %v1958 = vsel %vm1956, %v1957, %v1955
        %v1959 = vrsqrt.pop %v1860
        %v1960 = vmul.f32 %v1959, %v1860
        %v1961 = vmul.f32 %v1960, %v1959
        %v1962 = vmul.f32 0.5, %v1961
        %v1963 = vsub.f32 1.5, %v1962
        %v1964 = vmul.f32 %v1959, %v1963
        %v1965 = vmul.f32 %v1860, %v1964
        %vm1966 = vcmp.eq.f32.partialorder %v1860, inf
        %v1967 = vsel %vm1966, %v1860, %v1965
        %vm1968 = vcmp.eq.f32.partialorder %v1860, 0.0
        %v1969 = vand.u32 %v1860, 2147483648
        %v1970 = vsel %vm1968, %v1969, %v1967
        %v1971 = vrsqrt.pop %v1861
        %v1972 = vmul.f32 %v1971, %v1861
        %v1973 = vmul.f32 %v1972, %v1971
        %v1974 = vmul.f32 0.5, %v1973
        %v1975 = vsub.f32 1.5, %v1974
        %v1976 = vmul.f32 %v1971, %v1975
        %v1977 = vmul.f32 %v1861, %v1976
        %vm1978 = vcmp.eq.f32.partialorder %v1861, inf
        %v1979 = vsel %vm1978, %v1861, %v1977
        %vm1980 = vcmp.eq.f32.partialorder %v1861, 0.0
        %v1981 = vand.u32 %v1861, 2147483648
        %v1982 = vsel %vm1980, %v1981, %v1979
        %v1983 = vrsqrt.pop %v1862
        %v1984 = vmul.f32 %v1983, %v1862
        %v1985 = vmul.f32 %v1984, %v1983
        %v1986 = vmul.f32 0.5, %v1985
        %v1987 = vsub.f32 1.5, %v1986
        %v1988 = vmul.f32 %v1983, %v1987
        %v1989 = vmul.f32 %v1862, %v1988
        %vm1990 = vcmp.eq.f32.partialorder %v1862, inf
        %v1991 = vsel %vm1990, %v1862, %v1989
        %vm1992 = vcmp.eq.f32.partialorder %v1862, 0.0
        %v1993 = vand.u32 %v1862, 2147483648
        %v1994 = vsel %vm1992, %v1993, %v1991
        %v1995 = vrsqrt.pop %v1863
        %v1996 = vmul.f32 %v1995, %v1863
        %v1997 = vmul.f32 %v1996, %v1995
        %v1998 = vmul.f32 0.5, %v1997
        %v1999 = vsub.f32 1.5, %v1998
        %v2000 = vmul.f32 %v1995, %v1999
        %v2001 = vmul.f32 %v1863, %v2000
        %vm2002 = vcmp.eq.f32.partialorder %v1863, inf
        %v2003 = vsel %vm2002, %v1863, %v2001
        %vm2004 = vcmp.eq.f32.partialorder %v1863, 0.0
        %v2005 = vand.u32 %v1863, 2147483648
        %v2006 = vsel %vm2004, %v2005, %v2003
        %v2007 = vrsqrt.pop %v1864
        %v2008 = vmul.f32 %v2007, %v1864
        %v2009 = vmul.f32 %v2008, %v2007
        %v2010 = vmul.f32 0.5, %v2009
        %v2011 = vsub.f32 1.5, %v2010
        %v2012 = vmul.f32 %v2007, %v2011
        %v2013 = vmul.f32 %v1864, %v2012
        %vm2014 = vcmp.eq.f32.partialorder %v1864, inf
        %v2015 = vsel %vm2014, %v1864, %v2013
        %vm2016 = vcmp.eq.f32.partialorder %v1864, 0.0
        %v2017 = vand.u32 %v1864, 2147483648
        %v2018 = vsel %vm2016, %v2017, %v2015
        %v2019 = vrsqrt.pop %v1865
        %v2020 = vmul.f32 %v2019, %v1865
        %v2021 = vmul.f32 %v2020, %v2019
        %v2022 = vmul.f32 0.5, %v2021
        %v2023 = vsub.f32 1.5, %v2022
        %v2024 = vmul.f32 %v2019, %v2023
        %v2025 = vmul.f32 %v1865, %v2024
        %vm2026 = vcmp.eq.f32.partialorder %v1865, inf
        %v2027 = vsel %vm2026, %v1865, %v2025
        %vm2028 = vcmp.eq.f32.partialorder %v1865, 0.0
        %v2029 = vand.u32 %v1865, 2147483648
        %v2030 = vsel %vm2028, %v2029, %v2027
        %v2031 = vrsqrt.pop %v1866
        %v2032 = vmul.f32 %v2031, %v1866
        %v2033 = vmul.f32 %v2032, %v2031
        %v2034 = vmul.f32 0.5, %v2033
        %v2035 = vsub.f32 1.5, %v2034
        %v2036 = vmul.f32 %v2031, %v2035
        %v2037 = vmul.f32 %v1866, %v2036
        %vm2038 = vcmp.eq.f32.partialorder %v1866, inf
        %v2039 = vsel %vm2038, %v1866, %v2037
        %vm2040 = vcmp.eq.f32.partialorder %v1866, 0.0
        %v2041 = vand.u32 %v1866, 2147483648
        %v2042 = vsel %vm2040, %v2041, %v2039
        %v2043 = vrsqrt.pop %v1867
        %v2044 = vmul.f32 %v2043, %v1867
        %v2045 = vmul.f32 %v2044, %v2043
        %v2046 = vmul.f32 0.5, %v2045
        %v2047 = vsub.f32 1.5, %v2046
        %v2048 = vmul.f32 %v2043, %v2047
        %v2049 = vmul.f32 %v1867, %v2048
        %vm2050 = vcmp.eq.f32.partialorder %v1867, inf
        %v2051 = vsel %vm2050, %v1867, %v2049
        %vm2052 = vcmp.eq.f32.partialorder %v1867, 0.0
        %v2053 = vand.u32 %v1867, 2147483648
        %v2054 = vsel %vm2052, %v2053, %v2051
        %v2055 = vrsqrt.pop %v1868
        %v2056 = vmul.f32 %v2055, %v1868
        %v2057 = vmul.f32 %v2056, %v2055
        %v2058 = vmul.f32 0.5, %v2057
        %v2059 = vsub.f32 1.5, %v2058
        %v2060 = vmul.f32 %v2055, %v2059
        %v2061 = vmul.f32 %v1868, %v2060
        %vm2062 = vcmp.eq.f32.partialorder %v1868, inf
        %v2063 = vsel %vm2062, %v1868, %v2061
        %vm2064 = vcmp.eq.f32.partialorder %v1868, 0.0
        %v2065 = vand.u32 %v1868, 2147483648
        %v2066 = vsel %vm2064, %v2065, %v2063
        %v2067 = vrsqrt.pop %v1869
        %v2068 = vmul.f32 %v2067, %v1869
        %v2069 = vmul.f32 %v2068, %v2067
        %v2070 = vmul.f32 0.5, %v2069
        %v2071 = vsub.f32 1.5, %v2070
        %v2072 = vmul.f32 %v2067, %v2071
        %v2073 = vmul.f32 %v1869, %v2072
        %vm2074 = vcmp.eq.f32.partialorder %v1869, inf
        %v2075 = vsel %vm2074, %v1869, %v2073
        %vm2076 = vcmp.eq.f32.partialorder %v1869, 0.0
        %v2077 = vand.u32 %v1869, 2147483648
        %v2078 = vsel %vm2076, %v2077, %v2075
        %v2079 = vrsqrt.pop %v1870
        %v2080 = vmul.f32 %v2079, %v1870
        %v2081 = vmul.f32 %v2080, %v2079
        %v2082 = vmul.f32 0.5, %v2081
        %v2083 = vsub.f32 1.5, %v2082
        %v2084 = vmul.f32 %v2079, %v2083
        %v2085 = vmul.f32 %v1870, %v2084
        %vm2086 = vcmp.eq.f32.partialorder %v1870, inf
        %v2087 = vsel %vm2086, %v1870, %v2085
        %vm2088 = vcmp.eq.f32.partialorder %v1870, 0.0
        %v2089 = vand.u32 %v1870, 2147483648
        %v2090 = vsel %vm2088, %v2089, %v2087
        %v2091 = vrsqrt.pop %v1871
        %v2092 = vmul.f32 %v2091, %v1871
        %v2093 = vmul.f32 %v2092, %v2091
        %v2094 = vmul.f32 0.5, %v2093
        %v2095 = vsub.f32 1.5, %v2094
        %v2096 = vmul.f32 %v2091, %v2095
        %v2097 = vmul.f32 %v1871, %v2096
        %vm2098 = vcmp.eq.f32.partialorder %v1871, inf
        %v2099 = vsel %vm2098, %v1871, %v2097
        %vm2100 = vcmp.eq.f32.partialorder %v1871, 0.0
        %v2101 = vand.u32 %v1871, 2147483648
        %v2102 = vsel %vm2100, %v2101, %v2099
        %v2103 = vrsqrt.pop %v1872
        %v2104 = vmul.f32 %v2103, %v1872
        %v2105 = vmul.f32 %v2104, %v2103
        %v2106 = vmul.f32 0.5, %v2105
        %v2107 = vsub.f32 1.5, %v2106
        %v2108 = vmul.f32 %v2103, %v2107
        %v2109 = vmul.f32 %v1872, %v2108
        %vm2110 = vcmp.eq.f32.partialorder %v1872, inf
        %v2111 = vsel %vm2110, %v1872, %v2109
        %vm2112 = vcmp.eq.f32.partialorder %v1872, 0.0
        %v2113 = vand.u32 %v1872, 2147483648
        %v2114 = vsel %vm2112, %v2113, %v2111
        %v2115 = vrsqrt.pop %v1873
        %v2116 = vmul.f32 %v2115, %v1873
        %v2117 = vmul.f32 %v2116, %v2115
        %v2118 = vmul.f32 0.5, %v2117
        %v2119 = vsub.f32 1.5, %v2118
        %v2120 = vmul.f32 %v2115, %v2119
        %v2121 = vmul.f32 %v1873, %v2120
        %vm2122 = vcmp.eq.f32.partialorder %v1873, inf
        %v2123 = vsel %vm2122, %v1873, %v2121
        %vm2124 = vcmp.eq.f32.partialorder %v1873, 0.0
        %v2125 = vand.u32 %v1873, 2147483648
        %v2126 = vsel %vm2124, %v2125, %v2123
        %v2127 = vrsqrt.pop %v1874
        %v2128 = vmul.f32 %v2127, %v1874
        %v2129 = vmul.f32 %v2128, %v2127
        %v2130 = vmul.f32 0.5, %v2129
        %v2131 = vsub.f32 1.5, %v2130
        %v2132 = vmul.f32 %v2127, %v2131
        %v2133 = vmul.f32 %v1874, %v2132
        %vm2134 = vcmp.eq.f32.partialorder %v1874, inf
        %v2135 = vsel %vm2134, %v1874, %v2133
        %vm2136 = vcmp.eq.f32.partialorder %v1874, 0.0
        %v2137 = vand.u32 %v1874, 2147483648
        %v2138 = vsel %vm2136, %v2137, %v2135
        %v2139 = vrsqrt.pop %v1875
        %v2140 = vmul.f32 %v2139, %v1875
        %v2141 = vmul.f32 %v2140, %v2139
        %v2142 = vmul.f32 0.5, %v2141
        %v2143 = vsub.f32 1.5, %v2142
        %v2144 = vmul.f32 %v2139, %v2143
        %v2145 = vmul.f32 %v1875, %v2144
        %vm2146 = vcmp.eq.f32.partialorder %v1875, inf
        %v2147 = vsel %vm2146, %v1875, %v2145
        %vm2148 = vcmp.eq.f32.partialorder %v1875, 0.0
        %v2149 = vand.u32 %v1875, 2147483648
        %v2150 = vsel %vm2148, %v2149, %v2147
        %v2151 = vrsqrt.pop %v1876
        %v2152 = vmul.f32 %v2151, %v1876
        %v2153 = vmul.f32 %v2152, %v2151
        %v2154 = vmul.f32 0.5, %v2153
        %v2155 = vsub.f32 1.5, %v2154
        %v2156 = vmul.f32 %v2151, %v2155
        %v2157 = vmul.f32 %v1876, %v2156
        %vm2158 = vcmp.eq.f32.partialorder %v1876, inf
        %v2159 = vsel %vm2158, %v1876, %v2157
        %vm2160 = vcmp.eq.f32.partialorder %v1876, 0.0
        %v2161 = vand.u32 %v1876, 2147483648
        %v2162 = vsel %vm2160, %v2161, %v2159
        %v2163 = vrsqrt.pop %v1877
        %v2164 = vmul.f32 %v2163, %v1877
        %v2165 = vmul.f32 %v2164, %v2163
        %v2166 = vmul.f32 0.5, %v2165
        %v2167 = vsub.f32 1.5, %v2166
        %v2168 = vmul.f32 %v2163, %v2167
        %v2169 = vmul.f32 %v1877, %v2168
        %vm2170 = vcmp.eq.f32.partialorder %v1877, inf
        %v2171 = vsel %vm2170, %v1877, %v2169
        %vm2172 = vcmp.eq.f32.partialorder %v1877, 0.0
        %v2173 = vand.u32 %v1877, 2147483648
        %v2174 = vsel %vm2172, %v2173, %v2171
        %v2175 = vrsqrt.pop %v1878
        %v2176 = vmul.f32 %v2175, %v1878
        %v2177 = vmul.f32 %v2176, %v2175
        %v2178 = vmul.f32 0.5, %v2177
        %v2179 = vsub.f32 1.5, %v2178
        %v2180 = vmul.f32 %v2175, %v2179
        %v2181 = vmul.f32 %v1878, %v2180
        %vm2182 = vcmp.eq.f32.partialorder %v1878, inf
        %v2183 = vsel %vm2182, %v1878, %v2181
        %vm2184 = vcmp.eq.f32.partialorder %v1878, 0.0
        %v2185 = vand.u32 %v1878, 2147483648
        %v2186 = vsel %vm2184, %v2185, %v2183
        %v2187 = vrsqrt.pop %v1879
        %v2188 = vmul.f32 %v2187, %v1879
        %v2189 = vmul.f32 %v2188, %v2187
        %v2190 = vmul.f32 0.5, %v2189
        %v2191 = vsub.f32 1.5, %v2190
        %v2192 = vmul.f32 %v2187, %v2191
        %v2193 = vmul.f32 %v1879, %v2192
        %vm2194 = vcmp.eq.f32.partialorder %v1879, inf
        %v2195 = vsel %vm2194, %v1879, %v2193
        %vm2196 = vcmp.eq.f32.partialorder %v1879, 0.0
        %v2197 = vand.u32 %v1879, 2147483648
        %v2198 = vsel %vm2196, %v2197, %v2195
        %v2199 = vrsqrt.pop %v1880
        %v2200 = vmul.f32 %v2199, %v1880
        %v2201 = vmul.f32 %v2200, %v2199
        %v2202 = vmul.f32 0.5, %v2201
        %v2203 = vsub.f32 1.5, %v2202
        %v2204 = vmul.f32 %v2199, %v2203
        %v2205 = vmul.f32 %v1880, %v2204
        %vm2206 = vcmp.eq.f32.partialorder %v1880, inf
        %v2207 = vsel %vm2206, %v1880, %v2205
        %vm2208 = vcmp.eq.f32.partialorder %v1880, 0.0
        %v2209 = vand.u32 %v1880, 2147483648
        %v2210 = vsel %vm2208, %v2209, %v2207
        %v2211 = vrsqrt.pop %v1881
        %v2212 = vmul.f32 %v2211, %v1881
        %v2213 = vmul.f32 %v2212, %v2211
        %v2214 = vmul.f32 0.5, %v2213
        %v2215 = vsub.f32 1.5, %v2214
        %v2216 = vmul.f32 %v2211, %v2215
        %v2217 = vmul.f32 %v1881, %v2216
        %vm2218 = vcmp.eq.f32.partialorder %v1881, inf
        %v2219 = vsel %vm2218, %v1881, %v2217
        %vm2220 = vcmp.eq.f32.partialorder %v1881, 0.0
        %v2221 = vand.u32 %v1881, 2147483648
        %v2222 = vsel %vm2220, %v2221, %v2219
        %v2223 = vrsqrt.pop %v1882
        %v2224 = vmul.f32 %v2223, %v1882
        %v2225 = vmul.f32 %v2224, %v2223
        %v2226 = vmul.f32 0.5, %v2225
        %v2227 = vsub.f32 1.5, %v2226
        %v2228 = vmul.f32 %v2223, %v2227
        %v2229 = vmul.f32 %v1882, %v2228
        %vm2230 = vcmp.eq.f32.partialorder %v1882, inf
        %v2231 = vsel %vm2230, %v1882, %v2229
        %vm2232 = vcmp.eq.f32.partialorder %v1882, 0.0
        %v2233 = vand.u32 %v1882, 2147483648
        %v2234 = vsel %vm2232, %v2233, %v2231
        %v2235 = vrsqrt.pop %v1883
        %v2236 = vmul.f32 %v2235, %v1883
        %v2237 = vmul.f32 %v2236, %v2235
        %v2238 = vmul.f32 0.5, %v2237
        %v2239 = vsub.f32 1.5, %v2238
        %v2240 = vmul.f32 %v2235, %v2239
        %v2241 = vmul.f32 %v1883, %v2240
        %vm2242 = vcmp.eq.f32.partialorder %v1883, inf
        %v2243 = vsel %vm2242, %v1883, %v2241
        %vm2244 = vcmp.eq.f32.partialorder %v1883, 0.0
        %v2245 = vand.u32 %v1883, 2147483648
        %v2246 = vsel %vm2244, %v2245, %v2243
        %v2247 = vrsqrt.pop %v1884
        %v2248 = vmul.f32 %v2247, %v1884
        %v2249 = vmul.f32 %v2248, %v2247
        %v2250 = vmul.f32 0.5, %v2249
        %v2251 = vsub.f32 1.5, %v2250
        %v2252 = vmul.f32 %v2247, %v2251
        %v2253 = vmul.f32 %v1884, %v2252
        %vm2254 = vcmp.eq.f32.partialorder %v1884, inf
        %v2255 = vsel %vm2254, %v1884, %v2253
        %vm2256 = vcmp.eq.f32.partialorder %v1884, 0.0
        %v2257 = vand.u32 %v1884, 2147483648
        %v2258 = vsel %vm2256, %v2257, %v2255
        %v2259 = vrsqrt.pop %v1885
        %v2260 = vmul.f32 %v2259, %v1885
        %v2261 = vmul.f32 %v2260, %v2259
        %v2262 = vmul.f32 0.5, %v2261
        %v2263 = vsub.f32 1.5, %v2262
        %v2264 = vmul.f32 %v2259, %v2263
        %v2265 = vmul.f32 %v1885, %v2264
        %vm2266 = vcmp.eq.f32.partialorder %v1885, inf
        %v2267 = vsel %vm2266, %v1885, %v2265
        %vm2268 = vcmp.eq.f32.partialorder %v1885, 0.0
        %v2269 = vand.u32 %v1885, 2147483648
        %v2270 = vsel %vm2268, %v2269, %v2267
        %v2271 = vadd.f32 %v1898, 1e-06
        %v2272 = vadd.f32 %v1910, 1e-06
        %v2273 = vadd.f32 %v1922, 1e-06
        %v2274 = vadd.f32 %v1934, 1e-06
        %v2275 = vadd.f32 %v1946, 1e-06
        %v2276 = vadd.f32 %v1958, 1e-06
        %v2277 = vadd.f32 %v1970, 1e-06
        %v2278 = vadd.f32 %v1982, 1e-06
        %v2279 = vadd.f32 %v1994, 1e-06
        %v2280 = vadd.f32 %v2006, 1e-06
        %v2281 = vadd.f32 %v2018, 1e-06
        %v2282 = vadd.f32 %v2030, 1e-06
        %v2283 = vadd.f32 %v2042, 1e-06
        %v2284 = vadd.f32 %v2054, 1e-06
        %v2285 = vadd.f32 %v2066, 1e-06
        %v2286 = vadd.f32 %v2078, 1e-06
        %v2287 = vadd.f32 %v2090, 1e-06
        %v2288 = vadd.f32 %v2102, 1e-06
        %v2289 = vadd.f32 %v2114, 1e-06
        %v2290 = vadd.f32 %v2126, 1e-06
        %v2291 = vadd.f32 %v2138, 1e-06
        %v2292 = vadd.f32 %v2150, 1e-06
        %v2293 = vadd.f32 %v2162, 1e-06
        %v2294 = vadd.f32 %v2174, 1e-06
        %v2295 = vadd.f32 %v2186, 1e-06
        %v2296 = vadd.f32 %v2198, 1e-06
        %v2297 = vadd.f32 %v2210, 1e-06
        %v2298 = vadd.f32 %v2222, 1e-06
        %v2299 = vadd.f32 %v2234, 1e-06
        %v2300 = vadd.f32 %v2246, 1e-06
        %v2301 = vadd.f32 %v2258, 1e-06
        %v2302 = vadd.f32 %v2270, 1e-06
        %v2303 = vstv %s1886
        %v2304 = vrcp.pop %v2271
        %v2305 = vmul.f32 %v2271, %v2304
        %v2306 = vsub.f32 1.0, %v2305
        %v2307 = vmul.f32 %v2304, %v2306
        %v2308 = vadd.f32 %v2304, %v2307
        %vm2309 = vweird.f32 %v2271
        %vm2310 = vweird.f32 %v2304
        %vm2311 = vmor %vm2309, %vm2310
        %v2312 = vsel %vm2311, %v2304, %v2308
        %v2313 = vand.u32 2147483647, %v2271
        %vm2314 = vcmp.eq.f32.partialorder %v2313, 8.507059e+37
        %v2315 = vand.u32 %v2271, 2147483648
        %v2316 = vor.u32 1.1754944e-38, %v2315
        %v2317 = vsel %vm2314, %v2316, %v2312
        %v2318 = vmul.f32 %v2303, %v2317
        %v2319 = vrcp.pop %v2272
        %v2320 = vmul.f32 %v2272, %v2319
        %v2321 = vsub.f32 1.0, %v2320
        %v2322 = vmul.f32 %v2319, %v2321
        %v2323 = vadd.f32 %v2319, %v2322
        %vm2324 = vweird.f32 %v2272
        %vm2325 = vweird.f32 %v2319
        %vm2326 = vmor %vm2324, %vm2325
        %v2327 = vsel %vm2326, %v2319, %v2323
        %v2328 = vand.u32 2147483647, %v2272
        %vm2329 = vcmp.eq.f32.partialorder %v2328, 8.507059e+37
        %v2330 = vand.u32 %v2272, 2147483648
        %v2331 = vor.u32 1.1754944e-38, %v2330
        %v2332 = vsel %vm2329, %v2331, %v2327
        %v2333 = vmul.f32 %v2303, %v2332
        %v2334 = vrcp.pop %v2273
        %v2335 = vmul.f32 %v2273, %v2334
        %v2336 = vsub.f32 1.0, %v2335
        %v2337 = vmul.f32 %v2334, %v2336
        %v2338 = vadd.f32 %v2334, %v2337
        %vm2339 = vweird.f32 %v2273
        %vm2340 = vweird.f32 %v2334
        %vm2341 = vmor %vm2339, %vm2340
        %v2342 = vsel %vm2341, %v2334, %v2338
        %v2343 = vand.u32 2147483647, %v2273
        %vm2344 = vcmp.eq.f32.partialorder %v2343, 8.507059e+37
        %v2345 = vand.u32 %v2273, 2147483648
        %v2346 = vor.u32 1.1754944e-38, %v2345
        %v2347 = vsel %vm2344, %v2346, %v2342
        %v2348 = vmul.f32 %v2303, %v2347
        %v2349 = vrcp.pop %v2274
        %v2350 = vmul.f32 %v2274, %v2349
        %v2351 = vsub.f32 1.0, %v2350
        %v2352 = vmul.f32 %v2349, %v2351
        %v2353 = vadd.f32 %v2349, %v2352
        %vm2354 = vweird.f32 %v2274
        %vm2355 = vweird.f32 %v2349
        %vm2356 = vmor %vm2354, %vm2355
        %v2357 = vsel %vm2356, %v2349, %v2353
        %v2358 = vand.u32 2147483647, %v2274
        %vm2359 = vcmp.eq.f32.partialorder %v2358, 8.507059e+37
        %v2360 = vand.u32 %v2274, 2147483648
        %v2361 = vor.u32 1.1754944e-38, %v2360
        %v2362 = vsel %vm2359, %v2361, %v2357
        %v2363 = vmul.f32 %v2303, %v2362
        %v2364 = vrcp.pop %v2275
        %v2365 = vmul.f32 %v2275, %v2364
        %v2366 = vsub.f32 1.0, %v2365
        %v2367 = vmul.f32 %v2364, %v2366
        %v2368 = vadd.f32 %v2364, %v2367
        %vm2369 = vweird.f32 %v2275
        %vm2370 = vweird.f32 %v2364
        %vm2371 = vmor %vm2369, %vm2370
        %v2372 = vsel %vm2371, %v2364, %v2368
        %v2373 = vand.u32 2147483647, %v2275
        %vm2374 = vcmp.eq.f32.partialorder %v2373, 8.507059e+37
        %v2375 = vand.u32 %v2275, 2147483648
        %v2376 = vor.u32 1.1754944e-38, %v2375
        %v2377 = vsel %vm2374, %v2376, %v2372
        %v2378 = vmul.f32 %v2303, %v2377
        %v2379 = vrcp.pop %v2276
        %v2380 = vmul.f32 %v2276, %v2379
        %v2381 = vsub.f32 1.0, %v2380
        %v2382 = vmul.f32 %v2379, %v2381
        %v2383 = vadd.f32 %v2379, %v2382
        %vm2384 = vweird.f32 %v2276
        %vm2385 = vweird.f32 %v2379
        %vm2386 = vmor %vm2384, %vm2385
        %v2387 = vsel %vm2386, %v2379, %v2383
        %v2388 = vand.u32 2147483647, %v2276
        %vm2389 = vcmp.eq.f32.partialorder %v2388, 8.507059e+37
        %v2390 = vand.u32 %v2276, 2147483648
        %v2391 = vor.u32 1.1754944e-38, %v2390
        %v2392 = vsel %vm2389, %v2391, %v2387
        %v2393 = vmul.f32 %v2303, %v2392
        %v2394 = vrcp.pop %v2277
        %v2395 = vmul.f32 %v2277, %v2394
        %v2396 = vsub.f32 1.0, %v2395
        %v2397 = vmul.f32 %v2394, %v2396
        %v2398 = vadd.f32 %v2394, %v2397
        %vm2399 = vweird.f32 %v2277
        %vm2400 = vweird.f32 %v2394
        %vm2401 = vmor %vm2399, %vm2400
        %v2402 = vsel %vm2401, %v2394, %v2398
        %v2403 = vand.u32 2147483647, %v2277
        %vm2404 = vcmp.eq.f32.partialorder %v2403, 8.507059e+37
        %v2405 = vand.u32 %v2277, 2147483648
        %v2406 = vor.u32 1.1754944e-38, %v2405
        %v2407 = vsel %vm2404, %v2406, %v2402
        %v2408 = vmul.f32 %v2303, %v2407
        %v2409 = vrcp.pop %v2278
        %v2410 = vmul.f32 %v2278, %v2409
        %v2411 = vsub.f32 1.0, %v2410
        %v2412 = vmul.f32 %v2409, %v2411
        %v2413 = vadd.f32 %v2409, %v2412
        %vm2414 = vweird.f32 %v2278
        %vm2415 = vweird.f32 %v2409
        %vm2416 = vmor %vm2414, %vm2415
        %v2417 = vsel %vm2416, %v2409, %v2413
        %v2418 = vand.u32 2147483647, %v2278
        %vm2419 = vcmp.eq.f32.partialorder %v2418, 8.507059e+37
        %v2420 = vand.u32 %v2278, 2147483648
        %v2421 = vor.u32 1.1754944e-38, %v2420
        %v2422 = vsel %vm2419, %v2421, %v2417
        %v2423 = vmul.f32 %v2303, %v2422
        %v2424 = vrcp.pop %v2279
        %v2425 = vmul.f32 %v2279, %v2424
        %v2426 = vsub.f32 1.0, %v2425
        %v2427 = vmul.f32 %v2424, %v2426
        %v2428 = vadd.f32 %v2424, %v2427
        %vm2429 = vweird.f32 %v2279
        %vm2430 = vweird.f32 %v2424
        %vm2431 = vmor %vm2429, %vm2430
        %v2432 = vsel %vm2431, %v2424, %v2428
        %v2433 = vand.u32 2147483647, %v2279
        %vm2434 = vcmp.eq.f32.partialorder %v2433, 8.507059e+37
        %v2435 = vand.u32 %v2279, 2147483648
        %v2436 = vor.u32 1.1754944e-38, %v2435
        %v2437 = vsel %vm2434, %v2436, %v2432
        %v2438 = vmul.f32 %v2303, %v2437
        %v2439 = vrcp.pop %v2280
        %v2440 = vmul.f32 %v2280, %v2439
        %v2441 = vsub.f32 1.0, %v2440
        %v2442 = vmul.f32 %v2439, %v2441
        %v2443 = vadd.f32 %v2439, %v2442
        %vm2444 = vweird.f32 %v2280
        %vm2445 = vweird.f32 %v2439
        %vm2446 = vmor %vm2444, %vm2445
        %v2447 = vsel %vm2446, %v2439, %v2443
        %v2448 = vand.u32 2147483647, %v2280
        %vm2449 = vcmp.eq.f32.partialorder %v2448, 8.507059e+37
        %v2450 = vand.u32 %v2280, 2147483648
        %v2451 = vor.u32 1.1754944e-38, %v2450
        %v2452 = vsel %vm2449, %v2451, %v2447
        %v2453 = vmul.f32 %v2303, %v2452
        %v2454 = vrcp.pop %v2281
        %v2455 = vmul.f32 %v2281, %v2454
        %v2456 = vsub.f32 1.0, %v2455
        %v2457 = vmul.f32 %v2454, %v2456
        %v2458 = vadd.f32 %v2454, %v2457
        %vm2459 = vweird.f32 %v2281
        %vm2460 = vweird.f32 %v2454
        %vm2461 = vmor %vm2459, %vm2460
        %v2462 = vsel %vm2461, %v2454, %v2458
        %v2463 = vand.u32 2147483647, %v2281
        %vm2464 = vcmp.eq.f32.partialorder %v2463, 8.507059e+37
        %v2465 = vand.u32 %v2281, 2147483648
        %v2466 = vor.u32 1.1754944e-38, %v2465
        %v2467 = vsel %vm2464, %v2466, %v2462
        %v2468 = vmul.f32 %v2303, %v2467
        %v2469 = vrcp.pop %v2282
        %v2470 = vmul.f32 %v2282, %v2469
        %v2471 = vsub.f32 1.0, %v2470
        %v2472 = vmul.f32 %v2469, %v2471
        %v2473 = vadd.f32 %v2469, %v2472
        %vm2474 = vweird.f32 %v2282
        %vm2475 = vweird.f32 %v2469
        %vm2476 = vmor %vm2474, %vm2475
        %v2477 = vsel %vm2476, %v2469, %v2473
        %v2478 = vand.u32 2147483647, %v2282
        %vm2479 = vcmp.eq.f32.partialorder %v2478, 8.507059e+37
        %v2480 = vand.u32 %v2282, 2147483648
        %v2481 = vor.u32 1.1754944e-38, %v2480
        %v2482 = vsel %vm2479, %v2481, %v2477
        %v2483 = vmul.f32 %v2303, %v2482
        %v2484 = vrcp.pop %v2283
        %v2485 = vmul.f32 %v2283, %v2484
        %v2486 = vsub.f32 1.0, %v2485
        %v2487 = vmul.f32 %v2484, %v2486
        %v2488 = vadd.f32 %v2484, %v2487
        %vm2489 = vweird.f32 %v2283
        %vm2490 = vweird.f32 %v2484
        %vm2491 = vmor %vm2489, %vm2490
        %v2492 = vsel %vm2491, %v2484, %v2488
        %v2493 = vand.u32 2147483647, %v2283
        %vm2494 = vcmp.eq.f32.partialorder %v2493, 8.507059e+37
        %v2495 = vand.u32 %v2283, 2147483648
        %v2496 = vor.u32 1.1754944e-38, %v2495
        %v2497 = vsel %vm2494, %v2496, %v2492
        %v2498 = vmul.f32 %v2303, %v2497
        %v2499 = vrcp.pop %v2284
        %v2500 = vmul.f32 %v2284, %v2499
        %v2501 = vsub.f32 1.0, %v2500
        %v2502 = vmul.f32 %v2499, %v2501
        %v2503 = vadd.f32 %v2499, %v2502
        %vm2504 = vweird.f32 %v2284
        %vm2505 = vweird.f32 %v2499
        %vm2506 = vmor %vm2504, %vm2505
        %v2507 = vsel %vm2506, %v2499, %v2503
        %v2508 = vand.u32 2147483647, %v2284
        %vm2509 = vcmp.eq.f32.partialorder %v2508, 8.507059e+37
        %v2510 = vand.u32 %v2284, 2147483648
        %v2511 = vor.u32 1.1754944e-38, %v2510
        %v2512 = vsel %vm2509, %v2511, %v2507
        %v2513 = vmul.f32 %v2303, %v2512
        %v2514 = vrcp.pop %v2285
        %v2515 = vmul.f32 %v2285, %v2514
        %v2516 = vsub.f32 1.0, %v2515
        %v2517 = vmul.f32 %v2514, %v2516
        %v2518 = vadd.f32 %v2514, %v2517
        %vm2519 = vweird.f32 %v2285
        %vm2520 = vweird.f32 %v2514
        %vm2521 = vmor %vm2519, %vm2520
        %v2522 = vsel %vm2521, %v2514, %v2518
        %v2523 = vand.u32 2147483647, %v2285
        %vm2524 = vcmp.eq.f32.partialorder %v2523, 8.507059e+37
        %v2525 = vand.u32 %v2285, 2147483648
        %v2526 = vor.u32 1.1754944e-38, %v2525
        %v2527 = vsel %vm2524, %v2526, %v2522
        %v2528 = vmul.f32 %v2303, %v2527
        %v2529 = vrcp.pop %v2286
        %v2530 = vmul.f32 %v2286, %v2529
        %v2531 = vsub.f32 1.0, %v2530
        %v2532 = vmul.f32 %v2529, %v2531
        %v2533 = vadd.f32 %v2529, %v2532
        %vm2534 = vweird.f32 %v2286
        %vm2535 = vweird.f32 %v2529
        %vm2536 = vmor %vm2534, %vm2535
        %v2537 = vsel %vm2536, %v2529, %v2533
        %v2538 = vand.u32 2147483647, %v2286
        %vm2539 = vcmp.eq.f32.partialorder %v2538, 8.507059e+37
        %v2540 = vand.u32 %v2286, 2147483648
        %v2541 = vor.u32 1.1754944e-38, %v2540
        %v2542 = vsel %vm2539, %v2541, %v2537
        %v2543 = vmul.f32 %v2303, %v2542
        %v2544 = vrcp.pop %v2287
        %v2545 = vmul.f32 %v2287, %v2544
        %v2546 = vsub.f32 1.0, %v2545
        %v2547 = vmul.f32 %v2544, %v2546
        %v2548 = vadd.f32 %v2544, %v2547
        %vm2549 = vweird.f32 %v2287
        %vm2550 = vweird.f32 %v2544
        %vm2551 = vmor %vm2549, %vm2550
        %v2552 = vsel %vm2551, %v2544, %v2548
        %v2553 = vand.u32 2147483647, %v2287
        %vm2554 = vcmp.eq.f32.partialorder %v2553, 8.507059e+37
        %v2555 = vand.u32 %v2287, 2147483648
        %v2556 = vor.u32 1.1754944e-38, %v2555
        %v2557 = vsel %vm2554, %v2556, %v2552
        %v2558 = vmul.f32 %v2303, %v2557
        %v2559 = vrcp.pop %v2288
        %v2560 = vmul.f32 %v2288, %v2559
        %v2561 = vsub.f32 1.0, %v2560
        %v2562 = vmul.f32 %v2559, %v2561
        %v2563 = vadd.f32 %v2559, %v2562
        %vm2564 = vweird.f32 %v2288
        %vm2565 = vweird.f32 %v2559
        %vm2566 = vmor %vm2564, %vm2565
        %v2567 = vsel %vm2566, %v2559, %v2563
        %v2568 = vand.u32 2147483647, %v2288
        %vm2569 = vcmp.eq.f32.partialorder %v2568, 8.507059e+37
        %v2570 = vand.u32 %v2288, 2147483648
        %v2571 = vor.u32 1.1754944e-38, %v2570
        %v2572 = vsel %vm2569, %v2571, %v2567
        %v2573 = vmul.f32 %v2303, %v2572
        %v2574 = vrcp.pop %v2289
        %v2575 = vmul.f32 %v2289, %v2574
        %v2576 = vsub.f32 1.0, %v2575
        %v2577 = vmul.f32 %v2574, %v2576
        %v2578 = vadd.f32 %v2574, %v2577
        %vm2579 = vweird.f32 %v2289
        %vm2580 = vweird.f32 %v2574
        %vm2581 = vmor %vm2579, %vm2580
        %v2582 = vsel %vm2581, %v2574, %v2578
        %v2583 = vand.u32 2147483647, %v2289
        %vm2584 = vcmp.eq.f32.partialorder %v2583, 8.507059e+37
        %v2585 = vand.u32 %v2289, 2147483648
        %v2586 = vor.u32 1.1754944e-38, %v2585
        %v2587 = vsel %vm2584, %v2586, %v2582
        %v2588 = vmul.f32 %v2303, %v2587
        %v2589 = vrcp.pop %v2290
        %v2590 = vmul.f32 %v2290, %v2589
        %v2591 = vsub.f32 1.0, %v2590
        %v2592 = vmul.f32 %v2589, %v2591
        %v2593 = vadd.f32 %v2589, %v2592
        %vm2594 = vweird.f32 %v2290
        %vm2595 = vweird.f32 %v2589
        %vm2596 = vmor %vm2594, %vm2595
        %v2597 = vsel %vm2596, %v2589, %v2593
        %v2598 = vand.u32 2147483647, %v2290
        %vm2599 = vcmp.eq.f32.partialorder %v2598, 8.507059e+37
        %v2600 = vand.u32 %v2290, 2147483648
        %v2601 = vor.u32 1.1754944e-38, %v2600
        %v2602 = vsel %vm2599, %v2601, %v2597
        %v2603 = vmul.f32 %v2303, %v2602
        %v2604 = vrcp.pop %v2291
        %v2605 = vmul.f32 %v2291, %v2604
        %v2606 = vsub.f32 1.0, %v2605
        %v2607 = vmul.f32 %v2604, %v2606
        %v2608 = vadd.f32 %v2604, %v2607
        %vm2609 = vweird.f32 %v2291
        %vm2610 = vweird.f32 %v2604
        %vm2611 = vmor %vm2609, %vm2610
        %v2612 = vsel %vm2611, %v2604, %v2608
        %v2613 = vand.u32 2147483647, %v2291
        %vm2614 = vcmp.eq.f32.partialorder %v2613, 8.507059e+37
        %v2615 = vand.u32 %v2291, 2147483648
        %v2616 = vor.u32 1.1754944e-38, %v2615
        %v2617 = vsel %vm2614, %v2616, %v2612
        %v2618 = vmul.f32 %v2303, %v2617
        %v2619 = vrcp.pop %v2292
        %v2620 = vmul.f32 %v2292, %v2619
        %v2621 = vsub.f32 1.0, %v2620
        %v2622 = vmul.f32 %v2619, %v2621
        %v2623 = vadd.f32 %v2619, %v2622
        %vm2624 = vweird.f32 %v2292
        %vm2625 = vweird.f32 %v2619
        %vm2626 = vmor %vm2624, %vm2625
        %v2627 = vsel %vm2626, %v2619, %v2623
        %v2628 = vand.u32 2147483647, %v2292
        %vm2629 = vcmp.eq.f32.partialorder %v2628, 8.507059e+37
        %v2630 = vand.u32 %v2292, 2147483648
        %v2631 = vor.u32 1.1754944e-38, %v2630
        %v2632 = vsel %vm2629, %v2631, %v2627
        %v2633 = vmul.f32 %v2303, %v2632
        %v2634 = vrcp.pop %v2293
        %v2635 = vmul.f32 %v2293, %v2634
        %v2636 = vsub.f32 1.0, %v2635
        %v2637 = vmul.f32 %v2634, %v2636
        %v2638 = vadd.f32 %v2634, %v2637
        %vm2639 = vweird.f32 %v2293
        %vm2640 = vweird.f32 %v2634
        %vm2641 = vmor %vm2639, %vm2640
        %v2642 = vsel %vm2641, %v2634, %v2638
        %v2643 = vand.u32 2147483647, %v2293
        %vm2644 = vcmp.eq.f32.partialorder %v2643, 8.507059e+37
        %v2645 = vand.u32 %v2293, 2147483648
        %v2646 = vor.u32 1.1754944e-38, %v2645
        %v2647 = vsel %vm2644, %v2646, %v2642
        %v2648 = vmul.f32 %v2303, %v2647
        %v2649 = vrcp.pop %v2294
        %v2650 = vmul.f32 %v2294, %v2649
        %v2651 = vsub.f32 1.0, %v2650
        %v2652 = vmul.f32 %v2649, %v2651
        %v2653 = vadd.f32 %v2649, %v2652
        %vm2654 = vweird.f32 %v2294
        %vm2655 = vweird.f32 %v2649
        %vm2656 = vmor %vm2654, %vm2655
        %v2657 = vsel %vm2656, %v2649, %v2653
        %v2658 = vand.u32 2147483647, %v2294
        %vm2659 = vcmp.eq.f32.partialorder %v2658, 8.507059e+37
        %v2660 = vand.u32 %v2294, 2147483648
        %v2661 = vor.u32 1.1754944e-38, %v2660
        %v2662 = vsel %vm2659, %v2661, %v2657
        %v2663 = vmul.f32 %v2303, %v2662
        %v2664 = vrcp.pop %v2295
        %v2665 = vmul.f32 %v2295, %v2664
        %v2666 = vsub.f32 1.0, %v2665
        %v2667 = vmul.f32 %v2664, %v2666
        %v2668 = vadd.f32 %v2664, %v2667
        %vm2669 = vweird.f32 %v2295
        %vm2670 = vweird.f32 %v2664
        %vm2671 = vmor %vm2669, %vm2670
        %v2672 = vsel %vm2671, %v2664, %v2668
        %v2673 = vand.u32 2147483647, %v2295
        %vm2674 = vcmp.eq.f32.partialorder %v2673, 8.507059e+37
        %v2675 = vand.u32 %v2295, 2147483648
        %v2676 = vor.u32 1.1754944e-38, %v2675
        %v2677 = vsel %vm2674, %v2676, %v2672
        %v2678 = vmul.f32 %v2303, %v2677
        %v2679 = vrcp.pop %v2296
        %v2680 = vmul.f32 %v2296, %v2679
        %v2681 = vsub.f32 1.0, %v2680
        %v2682 = vmul.f32 %v2679, %v2681
        %v2683 = vadd.f32 %v2679, %v2682
        %vm2684 = vweird.f32 %v2296
        %vm2685 = vweird.f32 %v2679
        %vm2686 = vmor %vm2684, %vm2685
        %v2687 = vsel %vm2686, %v2679, %v2683
        %v2688 = vand.u32 2147483647, %v2296
        %vm2689 = vcmp.eq.f32.partialorder %v2688, 8.507059e+37
        %v2690 = vand.u32 %v2296, 2147483648
        %v2691 = vor.u32 1.1754944e-38, %v2690
        %v2692 = vsel %vm2689, %v2691, %v2687
        %v2693 = vmul.f32 %v2303, %v2692
        %v2694 = vrcp.pop %v2297
        %v2695 = vmul.f32 %v2297, %v2694
        %v2696 = vsub.f32 1.0, %v2695
        %v2697 = vmul.f32 %v2694, %v2696
        %v2698 = vadd.f32 %v2694, %v2697
        %vm2699 = vweird.f32 %v2297
        %vm2700 = vweird.f32 %v2694
        %vm2701 = vmor %vm2699, %vm2700
        %v2702 = vsel %vm2701, %v2694, %v2698
        %v2703 = vand.u32 2147483647, %v2297
        %vm2704 = vcmp.eq.f32.partialorder %v2703, 8.507059e+37
        %v2705 = vand.u32 %v2297, 2147483648
        %v2706 = vor.u32 1.1754944e-38, %v2705
        %v2707 = vsel %vm2704, %v2706, %v2702
        %v2708 = vmul.f32 %v2303, %v2707
        %v2709 = vrcp.pop %v2298
        %v2710 = vmul.f32 %v2298, %v2709
        %v2711 = vsub.f32 1.0, %v2710
        %v2712 = vmul.f32 %v2709, %v2711
        %v2713 = vadd.f32 %v2709, %v2712
        %vm2714 = vweird.f32 %v2298
        %vm2715 = vweird.f32 %v2709
        %vm2716 = vmor %vm2714, %vm2715
        %v2717 = vsel %vm2716, %v2709, %v2713
        %v2718 = vand.u32 2147483647, %v2298
        %vm2719 = vcmp.eq.f32.partialorder %v2718, 8.507059e+37
        %v2720 = vand.u32 %v2298, 2147483648
        %v2721 = vor.u32 1.1754944e-38, %v2720
        %v2722 = vsel %vm2719, %v2721, %v2717
        %v2723 = vmul.f32 %v2303, %v2722
        %v2724 = vrcp.pop %v2299
        %v2725 = vmul.f32 %v2299, %v2724
        %v2726 = vsub.f32 1.0, %v2725
        %v2727 = vmul.f32 %v2724, %v2726
        %v2728 = vadd.f32 %v2724, %v2727
        %vm2729 = vweird.f32 %v2299
        %vm2730 = vweird.f32 %v2724
        %vm2731 = vmor %vm2729, %vm2730
        %v2732 = vsel %vm2731, %v2724, %v2728
        %v2733 = vand.u32 2147483647, %v2299
        %vm2734 = vcmp.eq.f32.partialorder %v2733, 8.507059e+37
        %v2735 = vand.u32 %v2299, 2147483648
        %v2736 = vor.u32 1.1754944e-38, %v2735
        %v2737 = vsel %vm2734, %v2736, %v2732
        %v2738 = vmul.f32 %v2303, %v2737
        %v2739 = vrcp.pop %v2300
        %v2740 = vmul.f32 %v2300, %v2739
        %v2741 = vsub.f32 1.0, %v2740
        %v2742 = vmul.f32 %v2739, %v2741
        %v2743 = vadd.f32 %v2739, %v2742
        %vm2744 = vweird.f32 %v2300
        %vm2745 = vweird.f32 %v2739
        %vm2746 = vmor %vm2744, %vm2745
        %v2747 = vsel %vm2746, %v2739, %v2743
        %v2748 = vand.u32 2147483647, %v2300
        %vm2749 = vcmp.eq.f32.partialorder %v2748, 8.507059e+37
        %v2750 = vand.u32 %v2300, 2147483648
        %v2751 = vor.u32 1.1754944e-38, %v2750
        %v2752 = vsel %vm2749, %v2751, %v2747
        %v2753 = vmul.f32 %v2303, %v2752
        %v2754 = vrcp.pop %v2301
        %v2755 = vmul.f32 %v2301, %v2754
        %v2756 = vsub.f32 1.0, %v2755
        %v2757 = vmul.f32 %v2754, %v2756
        %v2758 = vadd.f32 %v2754, %v2757
        %vm2759 = vweird.f32 %v2301
        %vm2760 = vweird.f32 %v2754
        %vm2761 = vmor %vm2759, %vm2760
        %v2762 = vsel %vm2761, %v2754, %v2758
        %v2763 = vand.u32 2147483647, %v2301
        %vm2764 = vcmp.eq.f32.partialorder %v2763, 8.507059e+37
        %v2765 = vand.u32 %v2301, 2147483648
        %v2766 = vor.u32 1.1754944e-38, %v2765
        %v2767 = vsel %vm2764, %v2766, %v2762
        %v2768 = vmul.f32 %v2303, %v2767
        %v2769 = vrcp.pop %v2302
        %v2770 = vmul.f32 %v2302, %v2769
        %v2771 = vsub.f32 1.0, %v2770
        %v2772 = vmul.f32 %v2769, %v2771
        %v2773 = vadd.f32 %v2769, %v2772
        %vm2774 = vweird.f32 %v2302
        %vm2775 = vweird.f32 %v2769
        %vm2776 = vmor %vm2774, %vm2775
        %v2777 = vsel %vm2776, %v2769, %v2773
        %v2778 = vand.u32 2147483647, %v2302
        %vm2779 = vcmp.eq.f32.partialorder %v2778, 8.507059e+37
        %v2780 = vand.u32 %v2302, 2147483648
        %v2781 = vor.u32 1.1754944e-38, %v2780
        %v2782 = vsel %vm2779, %v2781, %v2777
        %v2783 = vmul.f32 %v2303, %v2782
        %v2784 = vmul.f32 %v1719, %v2318
        %v2785 = vmul.f32 %v1720, %v2333
        %v2786 = vmul.f32 %v1721, %v2348
        %v2787 = vmul.f32 %v1722, %v2363
        %v2788 = vmul.f32 %v1723, %v2378
        %v2789 = vmul.f32 %v1724, %v2393
        %v2790 = vmul.f32 %v1725, %v2408
        %v2791 = vmul.f32 %v1726, %v2423
        %v2792 = vmul.f32 %v1727, %v2438
        %v2793 = vmul.f32 %v1728, %v2453
        %v2794 = vmul.f32 %v1729, %v2468
        %v2795 = vmul.f32 %v1730, %v2483
        %v2796 = vmul.f32 %v1731, %v2498
        %v2797 = vmul.f32 %v1732, %v2513
        %v2798 = vmul.f32 %v1733, %v2528
        %v2799 = vmul.f32 %v1734, %v2543
        %v2800 = vmul.f32 %v1735, %v2558
        %v2801 = vmul.f32 %v1736, %v2573
        %v2802 = vmul.f32 %v1737, %v2588
        %v2803 = vmul.f32 %v1738, %v2603
        %v2804 = vmul.f32 %v1739, %v2618
        %v2805 = vmul.f32 %v1740, %v2633
        %v2806 = vmul.f32 %v1741, %v2648
        %v2807 = vmul.f32 %v1742, %v2663
        %v2808 = vmul.f32 %v1743, %v2678
        %v2809 = vmul.f32 %v1744, %v2693
        %v2810 = vmul.f32 %v1745, %v2708
        %v2811 = vmul.f32 %v1746, %v2723
        %v2812 = vmul.f32 %v1747, %v2738
        %v2813 = vmul.f32 %v1748, %v2753
        %v2814 = vmul.f32 %v1749, %v2768
        %v2815 = vmul.f32 %v1750, %v2783
        %s2816 = sld [smem:[#allocation3]]
        %v2817 = vstv %s2816
        %v2818 = vadd.f32 %v2784, %v2817
        %v2819 = vadd.f32 %v2785, %v2817
        %v2820 = vadd.f32 %v2786, %v2817
        %v2821 = vadd.f32 %v2787, %v2817
        %v2822 = vadd.f32 %v2788, %v2817
        %v2823 = vadd.f32 %v2789, %v2817
        %v2824 = vadd.f32 %v2790, %v2817
        %v2825 = vadd.f32 %v2791, %v2817
        %v2826 = vadd.f32 %v2792, %v2817
        %v2827 = vadd.f32 %v2793, %v2817
        %v2828 = vadd.f32 %v2794, %v2817
        %v2829 = vadd.f32 %v2795, %v2817
        %v2830 = vadd.f32 %v2796, %v2817
        %v2831 = vadd.f32 %v2797, %v2817
        %v2832 = vadd.f32 %v2798, %v2817
        %v2833 = vadd.f32 %v2799, %v2817
        %v2834 = vadd.f32 %v2800, %v2817
        %v2835 = vadd.f32 %v2801, %v2817
        %v2836 = vadd.f32 %v2802, %v2817
        %v2837 = vadd.f32 %v2803, %v2817
        %v2838 = vadd.f32 %v2804, %v2817
        %v2839 = vadd.f32 %v2805, %v2817
        %v2840 = vadd.f32 %v2806, %v2817
        %v2841 = vadd.f32 %v2807, %v2817
        %v2842 = vadd.f32 %v2808, %v2817
        %v2843 = vadd.f32 %v2809, %v2817
        %v2844 = vadd.f32 %v2810, %v2817
        %v2845 = vadd.f32 %v2811, %v2817
        %v2846 = vadd.f32 %v2812, %v2817
        %v2847 = vadd.f32 %v2813, %v2817
        %v2848 = vadd.f32 %v2814, %v2817
        %v2849 = vadd.f32 %v2815, %v2817
        %2850 = vst [vmem:[%s333] sm:$0xff] %v2818
        %2851 = vst [vmem:[%s333 + $0x8] sm:$0xff] %v2819
        %2852 = vst [vmem:[%s333 + $0x10] sm:$0xff] %v2820
        %2853 = vst [vmem:[%s333 + $0x18] sm:$0xff] %v2821
        %2854 = vst [vmem:[%s333 + $0x20] sm:$0xff] %v2822
        %2855 = vst [vmem:[%s333 + $0x28] sm:$0xff] %v2823
        %2856 = vst [vmem:[%s333 + $0x30] sm:$0xff] %v2824
        %2857 = vst [vmem:[%s333 + $0x38] sm:$0xff] %v2825
        %2858 = vst [vmem:[%s333 + $0x40] sm:$0xff] %v2826
        %2859 = vst [vmem:[%s333 + $0x48] sm:$0xff] %v2827
        %2860 = vst [vmem:[%s333 + $0x50] sm:$0xff] %v2828
        %2861 = vst [vmem:[%s333 + $0x58] sm:$0xff] %v2829
        %2862 = vst [vmem:[%s333 + $0x60] sm:$0xff] %v2830
        %2863 = vst [vmem:[%s333 + $0x68] sm:$0xff] %v2831
        %2864 = vst [vmem:[%s333 + $0x70] sm:$0xff] %v2832
        %2865 = vst [vmem:[%s333 + $0x78] sm:$0xff] %v2833
        %2866 = vst [vmem:[%s333 + $0x80] sm:$0xff] %v2834
        %2867 = vst [vmem:[%s333 + $0x88] sm:$0xff] %v2835
        %2868 = vst [vmem:[%s333 + $0x90] sm:$0xff] %v2836
        %2869 = vst [vmem:[%s333 + $0x98] sm:$0xff] %v2837
        %2870 = vst [vmem:[%s333 + $0xa0] sm:$0xff] %v2838
        %2871 = vst [vmem:[%s333 + $0xa8] sm:$0xff] %v2839
        %2872 = vst [vmem:[%s333 + $0xb0] sm:$0xff] %v2840
        %2873 = vst [vmem:[%s333 + $0xb8] sm:$0xff] %v2841
        %2874 = vst [vmem:[%s333 + $0xc0] sm:$0xff] %v2842
        %2875 = vst [vmem:[%s333 + $0xc8] sm:$0xff] %v2843
        %2876 = vst [vmem:[%s333 + $0xd0] sm:$0xff] %v2844
        %2877 = vst [vmem:[%s333 + $0xd8] sm:$0xff] %v2845
        %2878 = vst [vmem:[%s333 + $0xe0] sm:$0xff] %v2846
        %2879 = vst [vmem:[%s333 + $0xe8] sm:$0xff] %v2847
        %2880 = vst [vmem:[%s333 + $0xf0] sm:$0xff] %v2848
        %2881 = vst [vmem:[%s333 + $0xf8] sm:$0xff] %v2849
        %s2882 = sand.u32 %s187, 1
        %s2883 = scalar_lea.sflag [#allocation6], %s2882
        %s2884 = sand.u32 %s187, 1
        %s2885 = smul.addr %s2884, 256
        %s2886 = scalar_lea.vmem [#allocation10], %s2885
        // Predicated region
        $region61: #{tpu_custom_call.1} parent=47 // pred_check
          %p2887 = pneg %p197
        $region62: #{tpu_custom_call.1} parent=47 // pred_check_branch
          %2889 = sbr.rel (%p2887) target = $region64
        $region63: #{tpu_custom_call.1} parent=47 // pred_region
          %s2890 = smul.u32 32, %s27
          %2892 = vsyncadd %s2883, 0
          %s2893 = smul.addr %s2890, 8
          %s2894 = scalar_lea.hbm %s7, %s2893
          %s2895 = sshll.u32 %s2886, 4
          %s2896 = int_to_ptr.vmem [resolvable:$true] %s2895
          %s2897 = sshll.u32 %s2894, 4
          %s2898 = int_to_ptr.hbm [resolvable:$true] %s2897
          %2903 = dma.vmem_to_hbm [thread:$0]  %s2896, 4096, %s2898, %s2883, 128, 128, 8
        $region64: #{tpu_custom_call.1} parent=47 // pred_fallthru
          _
      $region48: #{tpu_custom_call.1} parent=5 // pred_fallthru
        _
      %p2904 = scmp.le.s32.totalorder 2, %s22
      // Predicated region
      $region65: #{tpu_custom_call.1} parent=5 // pred_check
        %p2905 = pneg %p2904
      $region66: #{tpu_custom_call.1} parent=5 // pred_check_branch
        %2907 = sbr.rel (%p2905) target = $region68
      $region67: #{tpu_custom_call.1} parent=5 // pred_region
        %s2908 = ssub.s32 %s22, 2
        // Predicated region
        $region69: #{tpu_custom_call.1} parent=67 // pred_check
          %p2909 = pneg %p203
        $region70: #{tpu_custom_call.1} parent=67 // pred_check_branch
          %2911 = sbr.rel (%p2909) target = $region72
        $region71: #{tpu_custom_call.1} parent=67 // pred_region
          %s2912 = sand.u32 %s188, 1
          %s2913 = scalar_lea.sflag [#allocation6], %s2912
          %s2914 = sand.u32 %s188, 1
          %s2915 = smul.addr %s2914, 256
          %s2916 = scalar_lea.vmem [#allocation10], %s2915
          %2918 = dma.done %s2913, 4096
        $region72: #{tpu_custom_call.1} parent=67 // pred_fallthru
          _
      $region68: #{tpu_custom_call.1} parent=5 // pred_fallthru
        _
    $region6: #{tpu_custom_call.1} parent=1 // loop_footer
      %s26 = sadd.s32 1, %s22
    $region7: #{tpu_custom_call.1} parent=1 // loop_footer_branch
      %21 = sbr.rel target = $region3
    $region8: #{tpu_custom_call.1} parent=1 // loop_exit
      _
    %2919 = vsyncpa [#allocation5], 1
    %s2920 = scalar_lea.sflag [#allocation5], 1
    %2921 = vsyncpa %s2920, 1
    %2922 = vsyncpa [#allocation8], 1
    %2923 = vsyncpa [#allocation6], 1
    %s2924 = scalar_lea.sflag [#allocation6], 1
    %2925 = vsyncpa %s2924, 1

</llo_original>
